<compile_context>
chip_gen: v7x
topology: tpu7x:2x2x1
jax: 0.10.0
libtpu: 0.0.40
codegen_flags: <defaults>
</compile_context>

<pallas_src>
import functools

import jax
import jax.numpy as jnp
from jax.experimental import pallas as pl
from jax.experimental.pallas import tpu as pltpu

LANE = 128


# ------------------------------ small helpers --------------------------------
def _round_up(x, m):
    return ((x + m - 1) // m) * m


def _pad_block(a, rows, cols, row_off=0, col_off=0):
    """Zero-pad 2D array `a` into a (rows, cols) slab at (row_off, col_off)."""
    r, c = a.shape
    return jnp.pad(a, ((row_off, rows - r - row_off), (col_off, cols - c - col_off)))


def _fold_bn(w_next, b_next, scale, shift):
    # (relu_out * scale + shift) @ w_next + b_next
    #   == relu_out @ (scale^T * w_next) + (b_next + shift @ w_next)
    return scale.reshape(-1, 1) * w_next, b_next + shift @ w_next


def _detect_num_tensorcores():
    # v7x has 2 TensorCores per chip; v5e/v6e have 1.  Default conservatively
    # to 1 (a single fat grid step) if detection fails.
    try:
        kind = jax.devices()[0].device_kind.lower()
    except Exception:
        return 1
    return 2 if "v7" in kind else 1


# ----------------------------- Pallas kernel ---------------------------------
def _ae_kernel(x_ref, w1_ref, ws_ref, bs_ref, out_ref):
    """6 matmuls + 4 ReLUs; z and recon land in disjoint lanes of one slab."""
    mm_dtype = w1_ref.dtype  # f32, or bf16 when matmul_dtype=jnp.bfloat16

    def layer(a, w, k):
        b = bs_ref[pl.ds(k, 1), :]  # (1, W), f32
        y = jnp.dot(a.astype(mm_dtype), w, preferred_element_type=jnp.float32)
        return y + b  # bias add in f32

    x = x_ref[...]                                       # (tile, input_dim)
    h = jnp.maximum(layer(x, w1_ref[...], 0), 0.0)       # enc Linear1 + ReLU (BN1 folded ahead)
    h = jnp.maximum(layer(h, ws_ref[0], 1), 0.0)         # enc Linear2 + ReLU (BN2 folded ahead)
    z_slab = layer(h, ws_ref[1], 2)                      # enc Linear3 -> z in lanes [0, latent)
    d = jnp.maximum(layer(z_slab, ws_ref[2], 3), 0.0)    # dec Linear1 + ReLU
    d = jnp.maximum(layer(d, ws_ref[3], 4), 0.0)         # dec Linear2 + ReLU
    r_slab = layer(d, ws_ref[4], 5)                      # dec Linear3 -> recon in lanes [lat, lat+in)
    # Disjoint lanes (each slab is exactly zero where the other is non-zero),
    # so a plain add fuses them into one lane-dense output store.
    out_ref[...] = (z_slab + r_slab).astype(out_ref.dtype)


# ------------------------------- wrapper --------------------------------------
def tabular_autoencoder_forward(x_num, x_cat, params, *, batch_tile=1024,
                                matmul_dtype=jnp.float32, num_cores=None):
    """Forward pass matching TabularAutoencoder.forward (eval-mode BN)."""
    batch = x_num.shape[0]

    # Embedding lookup + concat (plain JAX glue outside the kernel).
    emb_tables = params["emb_tables"]
    if len(emb_tables) > 0:
        embs = [jnp.take(tbl, x_cat[:, i], axis=0) for i, tbl in enumerate(emb_tables)]
        x = jnp.concatenate([x_num] + embs, axis=1)
    else:
        x = x_num
    x = x.astype(jnp.float32)

    input_dim = x.shape[1]
    h1 = params["w1"].shape[1]
    h2 = params["w2"].shape[1]
    latent_dim = params["w3"].shape[1]

    # ---- fold eval-mode BatchNorm into the following Linear (exact) ----
    # TODO(synk): training-mode BatchNorm (batch statistics) not supported here.
    w1, b1 = params["w1"], params["b1"]
    w2, b2 = _fold_bn(params["w2"], params["b2"], params["s1"], params["t1"])
    w3, b3 = _fold_bn(params["w3"], params["b3"], params["s2"], params["t2"])
    w4, b4 = params["w4"], params["b4"]
    w5, b5 = _fold_bn(params["w5"], params["b5"], params["s4"], params["t4"])
    w6, b6 = _fold_bn(params["w6"], params["b6"], params["s5"], params["t5"])

    # ---- common lane width W and fused-output layout ----
    out_dim = latent_dim + input_dim
    W = max(_round_up(h1, LANE), _round_up(h2, LANE), _round_up(out_dim, LANE))

    w1p = _pad_block(w1, input_dim, W)                   # (input_dim, W)
    w2p = _pad_block(w2, W, W)
    w3p = _pad_block(w3, W, W)                           # z -> lanes [0, latent)
    w4p = _pad_block(w4, W, W)                           # zero rows beyond latent
    w5p = _pad_block(w5, W, W)
    w6p = _pad_block(w6, W, W, col_off=latent_dim)       # recon -> lanes [lat, lat+in)

    b1p = _pad_block(b1, 1, W)
    b2p = _pad_block(b2, 1, W)
    b3p = _pad_block(b3, 1, W)
    b4p = _pad_block(b4, 1, W)
    b5p = _pad_block(b5, 1, W)
    b6p = _pad_block(b6, 1, W, col_off=latent_dim)

    w1p = w1p.astype(matmul_dtype)
    w_stack = jnp.stack([w2p, w3p, w4p, w5p, w6p]).astype(matmul_dtype)  # (5, W, W)
    b_stack = jnp.concatenate([b1p, b2p, b3p, b4p, b5p, b6p], axis=0)    # (6, W) f32

    # ---- batch tiling: few fat steps; 2 steps on v7x so both TCs get work ----
    if num_cores is None:
        num_cores = _detect_num_tensorcores()
    steps = max(1, num_cores)
    tile = min(batch_tile, _round_up(pl.cdiv(batch, steps), 8))
    tile = max(tile, 8)
    batch_p = _round_up(batch, tile)
    if batch_p != batch:
        # Rows only; the lane dim stays at its natural width (no padded-x copy).
        x = jnp.pad(x, ((0, batch_p - batch), (0, 0)))
    grid = (batch_p // tile,)

    def const_spec(shape):
        ndim = len(shape)
        return pl.BlockSpec(shape, lambda i, _n=ndim: (0,) * _n)

    out = pl.pallas_call(
        _ae_kernel,
        out_shape=jax.ShapeDtypeStruct((batch_p, W), jnp.float32),
        grid_spec=pltpu.PrefetchScalarGridSpec(
            num_scalar_prefetch=0,
            grid=grid,
            in_specs=[
                pl.BlockSpec((tile, input_dim), lambda i: (i, 0)),  # x, natural width
                const_spec(w1p.shape),
                const_spec(w_stack.shape),
                const_spec(b_stack.shape),
            ],
            out_specs=pl.BlockSpec((tile, W), lambda i: (i, 0)),
        ),
        compiler_params=pltpu.CompilerParams(
            dimension_semantics=("parallel",),
        ),
    )(x, w1p, w_stack, b_stack)

    # Split the fused slab; strip batch padding.
    z = out[:batch, :latent_dim]
    recon = out[:batch, latent_dim:latent_dim + input_dim]
    return z, recon


# ------------------------- deterministic init --------------------------------
def init_params(key, num_feat_dim, cat_dims, emb_dim, latent_dim, hidden_dims):
    input_dim = num_feat_dim + emb_dim * len(cat_dims)
    h1, h2 = hidden_dims
    eps = 1e-5

    keys = jax.random.split(key, 32)
    k = iter(keys)

    def lin(kw, kb, d_in, d_out):
        w = jax.random.normal(kw, (d_in, d_out), jnp.float32) * 0.1
        b = jax.random.normal(kb, (1, d_out), jnp.float32) * 0.05
        return w, b

    def bn(kg, kb, km, kv, d):
        gamma = 1.0 + 0.1 * jax.random.normal(kg, (1, d), jnp.float32)
        beta = 0.05 * jax.random.normal(kb, (1, d), jnp.float32)
        rmean = 0.1 * jax.random.normal(km, (1, d), jnp.float32)
        rvar = 1.0 + 0.1 * jax.random.uniform(kv, (1, d), jnp.float32)
        scale = gamma / jnp.sqrt(rvar + eps)
        shift = beta - rmean * scale
        return scale, shift

    params = {}
    params["emb_tables"] = [
        jax.random.normal(next(k), (n_cat, emb_dim), jnp.float32) * 0.1
        for n_cat in cat_dims
    ]

    params["w1"], params["b1"] = lin(next(k), next(k), input_dim, h1)
    params["s1"], params["t1"] = bn(next(k), next(k), next(k), next(k), h1)
    params["w2"], params["b2"] = lin(next(k), next(k), h1, h2)
    params["s2"], params["t2"] = bn(next(k), next(k), next(k), next(k), h2)
    params["w3"], params["b3"] = lin(next(k), next(k), h2, latent_dim)

    params["w4"], params["b4"] = lin(next(k), next(k), latent_dim, h2)
    params["s4"], params["t4"] = bn(next(k), next(k), next(k), next(k), h2)
    params["w5"], params["b5"] = lin(next(k), next(k), h2, h1)
    params["s5"], params["t5"] = bn(next(k), next(k), next(k), next(k), h1)
    params["w6"], params["b6"] = lin(next(k), next(k), h1, input_dim)
    return params


# ----------------------------- pure-JAX reference ----------------------------
def reference_forward(x_num, x_cat, params):
    embs = [jnp.take(tbl, x_cat[:, i], axis=0) for i, tbl in enumerate(params["emb_tables"])]
    x = jnp.concatenate([x_num] + embs, axis=1)

    def lin_relu_bn(x, w, b, s, t):
        h = jnp.maximum(x @ w + b, 0.0)
        return h * s + t

    h = lin_relu_bn(x, params["w1"], params["b1"], params["s1"], params["t1"])
    h = lin_relu_bn(h, params["w2"], params["b2"], params["s2"], params["t2"])
    z = h @ params["w3"] + params["b3"]
    d = lin_relu_bn(z, params["w4"], params["b4"], params["s4"], params["t4"])
    d = lin_relu_bn(d, params["w5"], params["b5"], params["s5"], params["t5"])
    recon = d @ params["w6"] + params["b6"]
    return z, recon


# ------------------------------------ main ------------------------------------
if __name__ == "__main__":
    num_feat_dim = 6
    cat_dims = [5, 7]
    emb_dim = 8
    latent_dim = 32
    hidden_dims = [128, 64]
    batch = 512

    key = jax.random.PRNGKey(0)
    k_params, k_num, k_c0, k_c1 = jax.random.split(key, 4)

    params = init_params(k_params, num_feat_dim, cat_dims, emb_dim, latent_dim, hidden_dims)

    x_num = jax.random.normal(k_num, (batch, num_feat_dim), jnp.float32)
    x_cat = jnp.stack(
        [
            jax.random.randint(k_c0, (batch,), 0, cat_dims[0]),
            jax.random.randint(k_c1, (batch,), 0, cat_dims[1]),
        ],
        axis=1,
    ).astype(jnp.int32)

    input_dim = num_feat_dim + emb_dim * len(cat_dims)
    z_ref, recon_ref = reference_forward(x_num, x_cat, params)

    # ---- f32 matmul operands (default; exact vs reference at 1e-3) ----
    fwd = jax.jit(functools.partial(tabular_autoencoder_forward, params=params))
    z, recon = fwd(x_num, x_cat)
    jax.block_until_ready((z, recon))
    assert z.shape == (batch, latent_dim)
    assert recon.shape == (batch, input_dim)
    assert jnp.allclose(z, z_ref, atol=1e-3, rtol=1e-3)
    assert jnp.allclose(recon, recon_ref, atol=1e-3, rtol=1e-3)

    # ---- bf16 matmul operands (v6e/v7x fast path; f32 accumulation) ----
    fwd_bf16 = jax.jit(functools.partial(
        tabular_autoencoder_forward, params=params, matmul_dtype=jnp.bfloat16))
    z16, recon16 = fwd_bf16(x_num, x_cat)
    jax.block_until_ready((z16, recon16))
    assert z16.shape == (batch, latent_dim)
    assert recon16.shape == (batch, input_dim)
    assert float(jnp.max(jnp.abs(z16 - z_ref))) < 5e-2
    assert float(jnp.max(jnp.abs(recon16 - recon_ref))) < 5e-2

    print("KERNEL_OK")
</pallas_src>

<mosaic_0001>
module attributes {stable_mosaic.version = 11 : i64} {
  func.func @_ae_kernel(%arg0: i32, %arg1: memref<512x22xf32, #tpu.memory_space<vmem>>, %arg2: memref<22x128xf32, #tpu.memory_space<vmem>>, %arg3: memref<5x128x128xf32, #tpu.memory_space<vmem>>, %arg4: memref<6x128xf32, #tpu.memory_space<vmem>>, %arg5: memref<512x128xf32, #tpu.memory_space<vmem>>) attributes {dimension_semantics = [#tpu.dimension_semantics<parallel>], iteration_bounds = array<i64: 1>, scalar_prefetch = 0 : i64, scratch_operands = 0 : i64, tpu.core_type = #tpu.core_type<tc>, window_params = [{transform_indices = @transform_0, window_bounds = array<i64: 512, 22>}, {pipeline_mode = #tpu.pipeline_mode<synchronous>, transform_indices = @transform_1, window_bounds = array<i64: 22, 128>}, {pipeline_mode = #tpu.pipeline_mode<synchronous>, transform_indices = @transform_2, window_bounds = array<i64: 5, 128, 128>}, {pipeline_mode = #tpu.pipeline_mode<synchronous>, transform_indices = @transform_3, window_bounds = array<i64: 6, 128>}, {transform_indices = @transform_4, window_bounds = array<i64: 512, 128>}]} {
    %c0 = arith.constant 0 : index
    %c0_0 = arith.constant 0 : index
    %0 = vector.load %arg1[%c0, %c0_0] : memref<512x22xf32, #tpu.memory_space<vmem>>, vector<512x22xf32>
    %c0_1 = arith.constant 0 : index
    %c0_2 = arith.constant 0 : index
    %1 = vector.load %arg2[%c0_1, %c0_2] : memref<22x128xf32, #tpu.memory_space<vmem>>, vector<22x128xf32>
    %c0_3 = arith.constant 0 : index
    %c0_4 = arith.constant 0 : index
    %2 = vector.load %arg4[%c0_3, %c0_4] : memref<6x128xf32, #tpu.memory_space<vmem>>, vector<1x128xf32>
    %cst = arith.constant dense<0.000000e+00> : vector<512x128xf32>
    %3 = tpu.matmul %0, %1, %cst {dimension_numbers = #tpu.dot_dimension_numbers<[1], [0], [0], [1], [0, 0, 1, 1], [], []>} : vector<512x22xf32>, vector<22x128xf32>, vector<512x128xf32> -> vector<512x128xf32>
    %4 = vector.broadcast %2 : vector<1x128xf32> to vector<512x128xf32>
    %5 = arith.addf %3, %4 : vector<512x128xf32>
    %cst_5 = arith.constant 0.000000e+00 : f32
    %6 = vector.broadcast %cst_5 : f32 to vector<512x128xf32>
    %7 = arith.maximumf %5, %6 : vector<512x128xf32>
    %c0_6 = arith.constant 0 : index
    %c0_7 = arith.constant 0 : index
    %c0_8 = arith.constant 0 : index
    %8 = vector.load %arg3[%c0_6, %c0_7, %c0_8] : memref<5x128x128xf32, #tpu.memory_space<vmem>>, vector<1x128x128xf32>
    %9 = vector.shape_cast %8 : vector<1x128x128xf32> to vector<128x128xf32>
    %c1 = arith.constant 1 : index
    %c0_9 = arith.constant 0 : index
    %10 = vector.load %arg4[%c1, %c0_9] : memref<6x128xf32, #tpu.memory_space<vmem>>, vector<1x128xf32>
    %cst_10 = arith.constant dense<0.000000e+00> : vector<512x128xf32>
    %11 = tpu.matmul %7, %9, %cst_10 {dimension_numbers = #tpu.dot_dimension_numbers<[1], [0], [0], [1], [0, 0, 1, 1], [], []>} : vector<512x128xf32>, vector<128x128xf32>, vector<512x128xf32> -> vector<512x128xf32>
    %12 = vector.broadcast %10 : vector<1x128xf32> to vector<512x128xf32>
    %13 = arith.addf %11, %12 : vector<512x128xf32>
    %cst_11 = arith.constant 0.000000e+00 : f32
    %14 = vector.broadcast %cst_11 : f32 to vector<512x128xf32>
    %15 = arith.maximumf %13, %14 : vector<512x128xf32>
    %c1_12 = arith.constant 1 : index
    %c0_13 = arith.constant 0 : index
    %c0_14 = arith.constant 0 : index
    %16 = vector.load %arg3[%c1_12, %c0_13, %c0_14] : memref<5x128x128xf32, #tpu.memory_space<vmem>>, vector<1x128x128xf32>
    %17 = vector.shape_cast %16 : vector<1x128x128xf32> to vector<128x128xf32>
    %c2 = arith.constant 2 : index
    %c0_15 = arith.constant 0 : index
    %18 = vector.load %arg4[%c2, %c0_15] : memref<6x128xf32, #tpu.memory_space<vmem>>, vector<1x128xf32>
    %cst_16 = arith.constant dense<0.000000e+00> : vector<512x128xf32>
    %19 = tpu.matmul %15, %17, %cst_16 {dimension_numbers = #tpu.dot_dimension_numbers<[1], [0], [0], [1], [0, 0, 1, 1], [], []>} : vector<512x128xf32>, vector<128x128xf32>, vector<512x128xf32> -> vector<512x128xf32>
    %20 = vector.broadcast %18 : vector<1x128xf32> to vector<512x128xf32>
    %21 = arith.addf %19, %20 : vector<512x128xf32>
    %c2_17 = arith.constant 2 : index
    %c0_18 = arith.constant 0 : index
    %c0_19 = arith.constant 0 : index
    %22 = vector.load %arg3[%c2_17, %c0_18, %c0_19] : memref<5x128x128xf32, #tpu.memory_space<vmem>>, vector<1x128x128xf32>
    %23 = vector.shape_cast %22 : vector<1x128x128xf32> to vector<128x128xf32>
    %c3 = arith.constant 3 : index
    %c0_20 = arith.constant 0 : index
    %24 = vector.load %arg4[%c3, %c0_20] : memref<6x128xf32, #tpu.memory_space<vmem>>, vector<1x128xf32>
    %cst_21 = arith.constant dense<0.000000e+00> : vector<512x128xf32>
    %25 = tpu.matmul %21, %23, %cst_21 {dimension_numbers = #tpu.dot_dimension_numbers<[1], [0], [0], [1], [0, 0, 1, 1], [], []>} : vector<512x128xf32>, vector<128x128xf32>, vector<512x128xf32> -> vector<512x128xf32>
    %26 = vector.broadcast %24 : vector<1x128xf32> to vector<512x128xf32>
    %27 = arith.addf %25, %26 : vector<512x128xf32>
    %cst_22 = arith.constant 0.000000e+00 : f32
    %28 = vector.broadcast %cst_22 : f32 to vector<512x128xf32>
    %29 = arith.maximumf %27, %28 : vector<512x128xf32>
    %c3_23 = arith.constant 3 : index
    %c0_24 = arith.constant 0 : index
    %c0_25 = arith.constant 0 : index
    %30 = vector.load %arg3[%c3_23, %c0_24, %c0_25] : memref<5x128x128xf32, #tpu.memory_space<vmem>>, vector<1x128x128xf32>
    %31 = vector.shape_cast %30 : vector<1x128x128xf32> to vector<128x128xf32>
    %c4 = arith.constant 4 : index
    %c0_26 = arith.constant 0 : index
    %32 = vector.load %arg4[%c4, %c0_26] : memref<6x128xf32, #tpu.memory_space<vmem>>, vector<1x128xf32>
    %cst_27 = arith.constant dense<0.000000e+00> : vector<512x128xf32>
    %33 = tpu.matmul %29, %31, %cst_27 {dimension_numbers = #tpu.dot_dimension_numbers<[1], [0], [0], [1], [0, 0, 1, 1], [], []>} : vector<512x128xf32>, vector<128x128xf32>, vector<512x128xf32> -> vector<512x128xf32>
    %34 = vector.broadcast %32 : vector<1x128xf32> to vector<512x128xf32>
    %35 = arith.addf %33, %34 : vector<512x128xf32>
    %cst_28 = arith.constant 0.000000e+00 : f32
    %36 = vector.broadcast %cst_28 : f32 to vector<512x128xf32>
    %37 = arith.maximumf %35, %36 : vector<512x128xf32>
    %c4_29 = arith.constant 4 : index
    %c0_30 = arith.constant 0 : index
    %c0_31 = arith.constant 0 : index
    %38 = vector.load %arg3[%c4_29, %c0_30, %c0_31] : memref<5x128x128xf32, #tpu.memory_space<vmem>>, vector<1x128x128xf32>
    %39 = vector.shape_cast %38 : vector<1x128x128xf32> to vector<128x128xf32>
    %c5 = arith.constant 5 : index
    %c0_32 = arith.constant 0 : index
    %40 = vector.load %arg4[%c5, %c0_32] : memref<6x128xf32, #tpu.memory_space<vmem>>, vector<1x128xf32>
    %cst_33 = arith.constant dense<0.000000e+00> : vector<512x128xf32>
    %41 = tpu.matmul %37, %39, %cst_33 {dimension_numbers = #tpu.dot_dimension_numbers<[1], [0], [0], [1], [0, 0, 1, 1], [], []>} : vector<512x128xf32>, vector<128x128xf32>, vector<512x128xf32> -> vector<512x128xf32>
    %42 = vector.broadcast %40 : vector<1x128xf32> to vector<512x128xf32>
    %43 = arith.addf %41, %42 : vector<512x128xf32>
    %44 = arith.addf %21, %43 : vector<512x128xf32>
    %c0_34 = arith.constant 0 : index
    %c0_35 = arith.constant 0 : index
    %45 = vector.load %arg5[%c0_34, %c0_35] : memref<512x128xf32, #tpu.memory_space<vmem>>, vector<512x128xf32>
    tpu.vector_store %arg5[%c0_34, %c0_35], %44 {strides = array<i32>} : memref<512x128xf32, #tpu.memory_space<vmem>>, vector<512x128xf32>,
    return
  }
  func.func @transform_0(%arg0: i32) -> (i32, i32) {
    %c0_i32 = arith.constant 0 : i32
    %c0_i32_0 = arith.constant 0 : i32
    return %arg0, %c0_i32 : i32, i32
  }
  func.func @transform_1(%arg0: i32) -> (i32, i32) {
    %c0_i32 = arith.constant 0 : i32
    %c0_i32_0 = arith.constant 0 : i32
    %c0_i32_1 = arith.constant 0 : i32
    return %c0_i32, %c0_i32_0 : i32, i32
  }
  func.func @transform_2(%arg0: i32) -> (i32, i32, i32) {
    %c0_i32 = arith.constant 0 : i32
    %c0_i32_0 = arith.constant 0 : i32
    %c0_i32_1 = arith.constant 0 : i32
    %c0_i32_2 = arith.constant 0 : i32
    return %c0_i32, %c0_i32_0, %c0_i32_1 : i32, i32, i32
  }
  func.func @transform_3(%arg0: i32) -> (i32, i32) {
    %c0_i32 = arith.constant 0 : i32
    %c0_i32_0 = arith.constant 0 : i32
    %c0_i32_1 = arith.constant 0 : i32
    return %c0_i32, %c0_i32_0 : i32, i32
  }
  func.func @transform_4(%arg0: i32) -> (i32, i32) {
    %c0_i32 = arith.constant 0 : i32
    %c0_i32_0 = arith.constant 0 : i32
    return %arg0, %c0_i32 : i32, i32
  }
}

</mosaic_0001>

<llo_original>
// kernel: tabular_autoencoder_forward.1
$region0: #{tabular_autoencoder_forward.1}
  #allocation0 [shape = 'u32[]', space=smem, size = 0x4, offset = 0x4, fixed_abs, tag = 'smem constant byte address 0x4 - core index']
  #allocation1 [shape = 'u32[144,128]{1,0:T(1,128)}', space=vmem, size = 0x12000, scoped, tag = 'internal scratch']
  %s0 = inlined_call_operand.vmem [shape: f32[512,22], index: 0, kind: input, shape index: {}]
  %s1 = inlined_call_operand.vmem [shape: f32[22,128], index: 1, kind: input, shape index: {}]
  %s2 = inlined_call_operand.vmem [shape: f32[5,128,128], index: 2, kind: input, shape index: {}]
  %s3 = inlined_call_operand.vmem [shape: f32[6,128], index: 3, kind: input, shape index: {}]
  %s4 = inlined_call_operand.vmem [shape: f32[512,128], index: 4, kind: output, shape index: {}]
  %s5 = sld [smem:[#allocation0]]
  $region26: #{tabular_autoencoder_forward.1} parent=0
    _
  %s7 = ssub.s32 1, %s5
  %s8 = scalar_select 0, %s7, %s5
  // Predicated region
  $region2: #{tabular_autoencoder_forward.1} parent=0 // pred_check
    _
  $region3: #{tabular_autoencoder_forward.1} parent=0 // pred_check_branch
    %10 = sbr.rel (0) target = $region5
  $region4: #{tabular_autoencoder_forward.1} parent=0 // pred_region
    _
  $region5: #{tabular_autoencoder_forward.1} parent=0 // pred_fallthru
    _
  // Predicated region
  $region6: #{tabular_autoencoder_forward.1} parent=0 // pred_check
    _
  $region7: #{tabular_autoencoder_forward.1} parent=0 // pred_check_branch
    %12 = sbr.rel (0) target = $region9
  $region8: #{tabular_autoencoder_forward.1} parent=0 // pred_region
    _
  $region9: #{tabular_autoencoder_forward.1} parent=0 // pred_fallthru
    _
  // Predicated region
  $region10: #{tabular_autoencoder_forward.1} parent=0 // pred_check
    _
  $region11: #{tabular_autoencoder_forward.1} parent=0 // pred_check_branch
    %14 = sbr.rel (0) target = $region13
  $region12: #{tabular_autoencoder_forward.1} parent=0 // pred_region
    _
  $region13: #{tabular_autoencoder_forward.1} parent=0 // pred_fallthru
    _
  // Predicated region
  $region14: #{tabular_autoencoder_forward.1} parent=0 // pred_check
    _
  $region15: #{tabular_autoencoder_forward.1} parent=0 // pred_check_branch
    %16 = sbr.rel (0) target = $region17
  $region16: #{tabular_autoencoder_forward.1} parent=0 // pred_region
    _
  $region17: #{tabular_autoencoder_forward.1} parent=0 // pred_fallthru
    _
  %v17 = vld [vmem:[%s0] sm:$0xff]
  %v18 = vld [vmem:[%s0 + $0x8] sm:$0xff]
  %v19 = vld [vmem:[%s0 + $0x10] sm:$0xff]
  %v20 = vld [vmem:[%s0 + $0x18] sm:$0xff]
  %v21 = vld [vmem:[%s0 + $0x20] sm:$0xff]
  %v22 = vld [vmem:[%s0 + $0x28] sm:$0xff]
  %v23 = vld [vmem:[%s0 + $0x30] sm:$0xff]
  %v24 = vld [vmem:[%s0 + $0x38] sm:$0xff]
  %v25 = vld [vmem:[%s0 + $0x40] sm:$0xff]
  %v26 = vld [vmem:[%s0 + $0x48] sm:$0xff]
  %v27 = vld [vmem:[%s0 + $0x50] sm:$0xff]
  %v28 = vld [vmem:[%s0 + $0x58] sm:$0xff]
  %v29 = vld [vmem:[%s0 + $0x60] sm:$0xff]
  %v30 = vld [vmem:[%s0 + $0x68] sm:$0xff]
  %v31 = vld [vmem:[%s0 + $0x70] sm:$0xff]
  %v32 = vld [vmem:[%s0 + $0x78] sm:$0xff]
  %v33 = vld [vmem:[%s0 + $0x80] sm:$0xff]
  %v34 = vld [vmem:[%s0 + $0x88] sm:$0xff]
  %v35 = vld [vmem:[%s0 + $0x90] sm:$0xff]
  %v36 = vld [vmem:[%s0 + $0x98] sm:$0xff]
  %v37 = vld [vmem:[%s0 + $0xa0] sm:$0xff]
  %v38 = vld [vmem:[%s0 + $0xa8] sm:$0xff]
  %v39 = vld [vmem:[%s0 + $0xb0] sm:$0xff]
  %v40 = vld [vmem:[%s0 + $0xb8] sm:$0xff]
  %v41 = vld [vmem:[%s0 + $0xc0] sm:$0xff]
  %v42 = vld [vmem:[%s0 + $0xc8] sm:$0xff]
  %v43 = vld [vmem:[%s0 + $0xd0] sm:$0xff]
  %v44 = vld [vmem:[%s0 + $0xd8] sm:$0xff]
  %v45 = vld [vmem:[%s0 + $0xe0] sm:$0xff]
  %v46 = vld [vmem:[%s0 + $0xe8] sm:$0xff]
  %v47 = vld [vmem:[%s0 + $0xf0] sm:$0xff]
  %v48 = vld [vmem:[%s0 + $0xf8] sm:$0xff]
  %v49 = vld [vmem:[%s0 + $0x100] sm:$0xff]
  %v50 = vld [vmem:[%s0 + $0x108] sm:$0xff]
  %v51 = vld [vmem:[%s0 + $0x110] sm:$0xff]
  %v52 = vld [vmem:[%s0 + $0x118] sm:$0xff]
  %v53 = vld [vmem:[%s0 + $0x120] sm:$0xff]
  %v54 = vld [vmem:[%s0 + $0x128] sm:$0xff]
  %v55 = vld [vmem:[%s0 + $0x130] sm:$0xff]
  %v56 = vld [vmem:[%s0 + $0x138] sm:$0xff]
  %v57 = vld [vmem:[%s0 + $0x140] sm:$0xff]
  %v58 = vld [vmem:[%s0 + $0x148] sm:$0xff]
  %v59 = vld [vmem:[%s0 + $0x150] sm:$0xff]
  %v60 = vld [vmem:[%s0 + $0x158] sm:$0xff]
  %v61 = vld [vmem:[%s0 + $0x160] sm:$0xff]
  %v62 = vld [vmem:[%s0 + $0x168] sm:$0xff]
  %v63 = vld [vmem:[%s0 + $0x170] sm:$0xff]
  %v64 = vld [vmem:[%s0 + $0x178] sm:$0xff]
  %v65 = vld [vmem:[%s0 + $0x180] sm:$0xff]
  %v66 = vld [vmem:[%s0 + $0x188] sm:$0xff]
  %v67 = vld [vmem:[%s0 + $0x190] sm:$0xff]
  %v68 = vld [vmem:[%s0 + $0x198] sm:$0xff]
  %v69 = vld [vmem:[%s0 + $0x1a0] sm:$0xff]
  %v70 = vld [vmem:[%s0 + $0x1a8] sm:$0xff]
  %v71 = vld [vmem:[%s0 + $0x1b0] sm:$0xff]
  %v72 = vld [vmem:[%s0 + $0x1b8] sm:$0xff]
  %v73 = vld [vmem:[%s0 + $0x1c0] sm:$0xff]
  %v74 = vld [vmem:[%s0 + $0x1c8] sm:$0xff]
  %v75 = vld [vmem:[%s0 + $0x1d0] sm:$0xff]
  %v76 = vld [vmem:[%s0 + $0x1d8] sm:$0xff]
  %v77 = vld [vmem:[%s0 + $0x1e0] sm:$0xff]
  %v78 = vld [vmem:[%s0 + $0x1e8] sm:$0xff]
  %v79 = vld [vmem:[%s0 + $0x1f0] sm:$0xff]
  %v80 = vld [vmem:[%s0 + $0x1f8] sm:$0xff]
  %v81 = vld [vmem:[%s1] sm:$0xff]
  %v82 = vld [vmem:[%s1 + $0x8] sm:$0xff]
  %v83 = vld [vmem:[%s1 + $0x10] sm:$0x3f]
  %v84 = vld [vmem:[%s3] sm:$0x1]
  %v85 = vlaneseq
  %v86 = vshrl.u32 %v85, 7
  %v87 = vsub.s32 0, %v86
  %v88 = vrot.slane %v84, %v87
  %vm89 = vcmask 179200
  %v91 = vsel %vm89, %v17, 0
  %v94 = vsel %vm89, %v18, 0
  %v97 = vsel %vm89, %v19, 0
  %v100 = vsel %vm89, %v20, 0
  %v103 = vsel %vm89, %v21, 0
  %v106 = vsel %vm89, %v22, 0
  %v109 = vsel %vm89, %v23, 0
  %v112 = vsel %vm89, %v24, 0
  %v115 = vsel %vm89, %v25, 0
  %v118 = vsel %vm89, %v26, 0
  %v121 = vsel %vm89, %v27, 0
  %v124 = vsel %vm89, %v28, 0
  %v127 = vsel %vm89, %v29, 0
  %v130 = vsel %vm89, %v30, 0
  %v133 = vsel %vm89, %v31, 0
  %v136 = vsel %vm89, %v32, 0
  %v139 = vsel %vm89, %v33, 0
  %v142 = vsel %vm89, %v34, 0
  %v145 = vsel %vm89, %v35, 0
  %v148 = vsel %vm89, %v36, 0
  %v151 = vsel %vm89, %v37, 0
  %v154 = vsel %vm89, %v38, 0
  %v157 = vsel %vm89, %v39, 0
  %v160 = vsel %vm89, %v40, 0
  %v163 = vsel %vm89, %v41, 0
  %v166 = vsel %vm89, %v42, 0
  %v169 = vsel %vm89, %v43, 0
  %v172 = vsel %vm89, %v44, 0
  %v175 = vsel %vm89, %v45, 0
  %v178 = vsel %vm89, %v46, 0
  %v181 = vsel %vm89, %v47, 0
  %v184 = vsel %vm89, %v48, 0
  %v187 = vsel %vm89, %v49, 0
  %v190 = vsel %vm89, %v50, 0
  %v193 = vsel %vm89, %v51, 0
  %v196 = vsel %vm89, %v52, 0
  %v199 = vsel %vm89, %v53, 0
  %v202 = vsel %vm89, %v54, 0
  %v205 = vsel %vm89, %v55, 0
  %v208 = vsel %vm89, %v56, 0
  %v211 = vsel %vm89, %v57, 0
  %v214 = vsel %vm89, %v58, 0
  %v217 = vsel %vm89, %v59, 0
  %v220 = vsel %vm89, %v60, 0
  %v223 = vsel %vm89, %v61, 0
  %v226 = vsel %vm89, %v62, 0
  %v229 = vsel %vm89, %v63, 0
  %v232 = vsel %vm89, %v64, 0
  %v235 = vsel %vm89, %v65, 0
  %v238 = vsel %vm89, %v66, 0
  %v241 = vsel %vm89, %v67, 0
  %v244 = vsel %vm89, %v68, 0
  %v247 = vsel %vm89, %v69, 0
  %v250 = vsel %vm89, %v70, 0
  %v253 = vsel %vm89, %v71, 0
  %v256 = vsel %vm89, %v72, 0
  %v259 = vsel %vm89, %v73, 0
  %v262 = vsel %vm89, %v74, 0
  %v265 = vsel %vm89, %v75, 0
  %v268 = vsel %vm89, %v76, 0
  %v271 = vsel %vm89, %v77, 0
  %v274 = vsel %vm89, %v78, 0
  %v277 = vsel %vm89, %v79, 0
  %v280 = vsel %vm89, %v80, 0
  %vm282 = vcmask 1045504
  %v284 = vsel %vm282, %v83, 0
  %286 = vmatprep.subr.mxu0 0.0
  %287 = vmatpush1.msra.mxu0 %v81
  %288 = vmatprep.subr.mxu0 0.0
  %289 = vmatpush1.msra.mxu0 %v82
  %290 = vmatprep.subr.mxu0 0.0
  %291 = vmatpush1.msra.mxu0 %v284
  %292 = vmatprep.subr.mxu0 0.0
  %293 = vmatpush1.msra.mxu0 0.0
  %294 = vmatprep.subr.mxu0 0.0
  %295 = vmatpush1.msra.mxu0 0.0
  %296 = vmatprep.subr.mxu0 0.0
  %297 = vmatpush1.msra.mxu0 0.0
  %298 = vmatprep.subr.mxu0 0.0
  %299 = vmatpush1.msra.mxu0 0.0
  %300 = vmatprep.subr.mxu0 0.0
  %301 = vmatpush1.msra.mxu0 0.0
  %302 = vmatprep.subr.mxu0 0.0
  %303 = vmatpush1.msra.mxu0 0.0
  %304 = vmatprep.subr.mxu0 0.0
  %305 = vmatpush1.msra.mxu0 0.0
  %306 = vmatprep.subr.mxu0 0.0
  %307 = vmatpush1.msra.mxu0 0.0
  %308 = vmatprep.subr.mxu0 0.0
  %309 = vmatpush1.msra.mxu0 0.0
  %310 = vmatprep.subr.mxu0 0.0
  %311 = vmatpush1.msra.mxu0 0.0
  %312 = vmatprep.subr.mxu0 0.0
  %313 = vmatpush1.msra.mxu0 0.0
  %314 = vmatprep.subr.mxu0 0.0
  %315 = vmatpush1.msra.mxu0 0.0
  %316 = vmatprep.subr.mxu0 0.0
  %317 = vmatpush1.msra.mxu0 0.0
  %318 = vmatprep.subr.mxu0 0.0
  %319 = vmatpush1.msra.mxu0 0.0
  %320 = vmatprep.subr.mxu0 0.0
  %321 = vmatpush1.msra.mxu0 0.0
  %322 = vmatprep.subr.mxu0 0.0
  %323 = vmatpush1.msra.mxu0 0.0
  %324 = vmatprep.subr.mxu0 0.0
  %325 = vmatpush1.msra.mxu0 0.0
  %326 = vmatprep.subr.mxu0 0.0
  %327 = vmatpush1.msra.mxu0 0.0
  %328 = vmatprep.subr.mxu0 0.0
  %329 = vmatpush1.msra.mxu0 0.0
  %330 = vmatprep.subr.mxu0 0.0
  %331 = vmatpush1.msra.mxu0 0.0
  %332 = vmatprep.subr.mxu0 0.0
  %333 = vmatpush1.msra.mxu0 0.0
  %334 = vmatprep.subr.mxu0 0.0
  %335 = vmatpush1.msra.mxu0 0.0
  %336 = vmatprep.subr.mxu0 0.0
  %337 = vmatpush1.msra.mxu0 0.0
  %338 = vmatprep.subr.mxu0 0.0
  %339 = vmatpush1.msra.mxu0 0.0
  %340 = vmatprep.subr.mxu0 0.0
  %341 = vmatpush1.msra.mxu0 0.0
  %342 = vmatprep.subr.mxu0 0.0
  %343 = vmatpush1.msra.mxu0 0.0
  %344 = vmatprep.subr.mxu0 0.0
  %345 = vmatpush1.msra.mxu0 0.0
  %346 = vmatprep.subr.mxu0 0.0
  %347 = vmatpush1.msra.mxu0 0.0
  %348 = vmatprep.subr.mxu0 0.0
  %349 = vmatpush1.msra.mxu0 0.0
  %350 = vmatprep.mubr.f32.mxu0 0.0
  %351 = vmatmul.mubr.f32.gmra.mrb[0].mxu0 %v91
  %v352 = vpop.f32.mrb[0].mxu0
  %v353 = vadd.f32 %v88, %v352
  %v354 = vpop.f32.mrb[0].mxu0
  %355 = vmatprep.mubr.f32.mxu0 0.0
  %356 = vmatmul.mubr.f32.gmra.mrb[0].mxu0 %v94
  %v357 = vpop.f32.mrb[0].mxu0
  %v358 = vadd.f32 %v88, %v357
  %v359 = vpop.f32.mrb[0].mxu0
  %360 = vmatprep.mubr.f32.mxu0 0.0
  %361 = vmatmul.mubr.f32.gmra.mrb[0].mxu0 %v97
  %v362 = vpop.f32.mrb[0].mxu0
  %v363 = vadd.f32 %v88, %v362
  %v364 = vpop.f32.mrb[0].mxu0
  %365 = vmatprep.mubr.f32.mxu0 0.0
  %366 = vmatmul.mubr.f32.gmra.mrb[0].mxu0 %v100
  %v367 = vpop.f32.mrb[0].mxu0
  %v368 = vadd.f32 %v88, %v367
  %v369 = vpop.f32.mrb[0].mxu0
  %370 = vmatprep.mubr.f32.mxu0 0.0
  %371 = vmatmul.mubr.f32.gmra.mrb[0].mxu0 %v103
  %v372 = vpop.f32.mrb[0].mxu0
  %v373 = vadd.f32 %v88, %v372
  %v374 = vpop.f32.mrb[0].mxu0
  %375 = vmatprep.mubr.f32.mxu0 0.0
  %376 = vmatmul.mubr.f32.gmra.mrb[0].mxu0 %v106
  %v377 = vpop.f32.mrb[0].mxu0
  %v378 = vadd.f32 %v88, %v377
  %v379 = vpop.f32.mrb[0].mxu0
  %380 = vmatprep.mubr.f32.mxu0 0.0
  %381 = vmatmul.mubr.f32.gmra.mrb[0].mxu0 %v109
  %v382 = vpop.f32.mrb[0].mxu0
  %v383 = vadd.f32 %v88, %v382
  %v384 = vpop.f32.mrb[0].mxu0
  %385 = vmatprep.mubr.f32.mxu0 0.0
  %386 = vmatmul.mubr.f32.gmra.mrb[0].mxu0 %v112
  %v387 = vpop.f32.mrb[0].mxu0
  %v388 = vadd.f32 %v88, %v387
  %v389 = vpop.f32.mrb[0].mxu0
  %390 = vmatprep.mubr.f32.mxu0 0.0
  %391 = vmatmul.mubr.f32.gmra.mrb[0].mxu0 %v115
  %v392 = vpop.f32.mrb[0].mxu0
  %v393 = vadd.f32 %v88, %v392
  %v394 = vpop.f32.mrb[0].mxu0
  %395 = vmatprep.mubr.f32.mxu0 0.0
  %396 = vmatmul.mubr.f32.gmra.mrb[0].mxu0 %v118
  %v397 = vpop.f32.mrb[0].mxu0
  %v398 = vadd.f32 %v88, %v397
  %v399 = vpop.f32.mrb[0].mxu0
  %400 = vmatprep.mubr.f32.mxu0 0.0
  %401 = vmatmul.mubr.f32.gmra.mrb[0].mxu0 %v121
  %v402 = vpop.f32.mrb[0].mxu0
  %v403 = vadd.f32 %v88, %v402
  %v404 = vpop.f32.mrb[0].mxu0
  %405 = vmatprep.mubr.f32.mxu0 0.0
  %406 = vmatmul.mubr.f32.gmra.mrb[0].mxu0 %v124
  %v407 = vpop.f32.mrb[0].mxu0
  %v408 = vadd.f32 %v88, %v407
  %v409 = vpop.f32.mrb[0].mxu0
  %410 = vmatprep.mubr.f32.mxu0 0.0
  %411 = vmatmul.mubr.f32.gmra.mrb[0].mxu0 %v127
  %v412 = vpop.f32.mrb[0].mxu0
  %v413 = vadd.f32 %v88, %v412
  %v414 = vpop.f32.mrb[0].mxu0
  %415 = vmatprep.mubr.f32.mxu0 0.0
  %416 = vmatmul.mubr.f32.gmra.mrb[0].mxu0 %v130
  %v417 = vpop.f32.mrb[0].mxu0
  %v418 = vadd.f32 %v88, %v417
  %v419 = vpop.f32.mrb[0].mxu0
  %420 = vmatprep.mubr.f32.mxu0 0.0
  %421 = vmatmul.mubr.f32.gmra.mrb[0].mxu0 %v133
  %v422 = vpop.f32.mrb[0].mxu0
  %v423 = vadd.f32 %v88, %v422
  %v424 = vpop.f32.mrb[0].mxu0
  %425 = vmatprep.mubr.f32.mxu0 0.0
  %426 = vmatmul.mubr.f32.gmra.mrb[0].mxu0 %v136
  %v427 = vpop.f32.mrb[0].mxu0
  %v428 = vadd.f32 %v88, %v427
  %v429 = vpop.f32.mrb[0].mxu0
  %430 = vmatprep.mubr.f32.mxu0 0.0
  %431 = vmatmul.mubr.f32.gmra.mrb[0].mxu0 %v139
  %v432 = vpop.f32.mrb[0].mxu0
  %v433 = vadd.f32 %v88, %v432
  %v434 = vpop.f32.mrb[0].mxu0
  %435 = vmatprep.mubr.f32.mxu0 0.0
  %436 = vmatmul.mubr.f32.gmra.mrb[0].mxu0 %v142
  %v437 = vpop.f32.mrb[0].mxu0
  %v438 = vadd.f32 %v88, %v437
  %v439 = vpop.f32.mrb[0].mxu0
  %440 = vmatprep.mubr.f32.mxu0 0.0
  %441 = vmatmul.mubr.f32.gmra.mrb[0].mxu0 %v145
  %v442 = vpop.f32.mrb[0].mxu0
  %v443 = vadd.f32 %v88, %v442
  %v444 = vpop.f32.mrb[0].mxu0
  %445 = vmatprep.mubr.f32.mxu0 0.0
  %446 = vmatmul.mubr.f32.gmra.mrb[0].mxu0 %v148
  %v447 = vpop.f32.mrb[0].mxu0
  %v448 = vadd.f32 %v88, %v447
  %v449 = vpop.f32.mrb[0].mxu0
  %450 = vmatprep.mubr.f32.mxu0 0.0
  %451 = vmatmul.mubr.f32.gmra.mrb[0].mxu0 %v151
  %v452 = vpop.f32.mrb[0].mxu0
  %v453 = vadd.f32 %v88, %v452
  %v454 = vpop.f32.mrb[0].mxu0
  %455 = vmatprep.mubr.f32.mxu0 0.0
  %456 = vmatmul.mubr.f32.gmra.mrb[0].mxu0 %v154
  %v457 = vpop.f32.mrb[0].mxu0
  %v458 = vadd.f32 %v88, %v457
  %v459 = vpop.f32.mrb[0].mxu0
  %460 = vmatprep.mubr.f32.mxu0 0.0
  %461 = vmatmul.mubr.f32.gmra.mrb[0].mxu0 %v157
  %v462 = vpop.f32.mrb[0].mxu0
  %v463 = vadd.f32 %v88, %v462
  %v464 = vpop.f32.mrb[0].mxu0
  %465 = vmatprep.mubr.f32.mxu0 0.0
  %466 = vmatmul.mubr.f32.gmra.mrb[0].mxu0 %v160
  %v467 = vpop.f32.mrb[0].mxu0
  %v468 = vadd.f32 %v88, %v467
  %v469 = vpop.f32.mrb[0].mxu0
  %470 = vmatprep.mubr.f32.mxu0 0.0
  %471 = vmatmul.mubr.f32.gmra.mrb[0].mxu0 %v163
  %v472 = vpop.f32.mrb[0].mxu0
  %v473 = vadd.f32 %v88, %v472
  %v474 = vpop.f32.mrb[0].mxu0
  %475 = vmatprep.mubr.f32.mxu0 0.0
  %476 = vmatmul.mubr.f32.gmra.mrb[0].mxu0 %v166
  %v477 = vpop.f32.mrb[0].mxu0
  %v478 = vadd.f32 %v88, %v477
  %v479 = vpop.f32.mrb[0].mxu0
  %480 = vmatprep.mubr.f32.mxu0 0.0
  %481 = vmatmul.mubr.f32.gmra.mrb[0].mxu0 %v169
  %v482 = vpop.f32.mrb[0].mxu0
  %v483 = vadd.f32 %v88, %v482
  %v484 = vpop.f32.mrb[0].mxu0
  %485 = vmatprep.mubr.f32.mxu0 0.0
  %486 = vmatmul.mubr.f32.gmra.mrb[0].mxu0 %v172
  %v487 = vpop.f32.mrb[0].mxu0
  %v488 = vadd.f32 %v88, %v487
  %v489 = vpop.f32.mrb[0].mxu0
  %490 = vmatprep.mubr.f32.mxu0 0.0
  %491 = vmatmul.mubr.f32.gmra.mrb[0].mxu0 %v175
  %v492 = vpop.f32.mrb[0].mxu0
  %v493 = vadd.f32 %v88, %v492
  %v494 = vpop.f32.mrb[0].mxu0
  %495 = vmatprep.mubr.f32.mxu0 0.0
  %496 = vmatmul.mubr.f32.gmra.mrb[0].mxu0 %v178
  %v497 = vpop.f32.mrb[0].mxu0
  %v498 = vadd.f32 %v88, %v497
  %v499 = vpop.f32.mrb[0].mxu0
  %500 = vmatprep.mubr.f32.mxu0 0.0
  %501 = vmatmul.mubr.f32.gmra.mrb[0].mxu0 %v181
  %v502 = vpop.f32.mrb[0].mxu0
  %v503 = vadd.f32 %v88, %v502
  %v504 = vpop.f32.mrb[0].mxu0
  %505 = vmatprep.mubr.f32.mxu0 0.0
  %506 = vmatmul.mubr.f32.gmra.mrb[0].mxu0 %v184
  %v507 = vpop.f32.mrb[0].mxu0
  %v508 = vadd.f32 %v88, %v507
  %v509 = vpop.f32.mrb[0].mxu0
  %510 = vmatprep.mubr.f32.mxu0 0.0
  %511 = vmatmul.mubr.f32.gmra.mrb[0].mxu0 %v187
  %v512 = vpop.f32.mrb[0].mxu0
  %v513 = vadd.f32 %v88, %v512
  %v514 = vpop.f32.mrb[0].mxu0
  %515 = vmatprep.mubr.f32.mxu0 0.0
  %516 = vmatmul.mubr.f32.gmra.mrb[0].mxu0 %v190
  %v517 = vpop.f32.mrb[0].mxu0
  %v518 = vadd.f32 %v88, %v517
  %v519 = vpop.f32.mrb[0].mxu0
  %520 = vmatprep.mubr.f32.mxu0 0.0
  %521 = vmatmul.mubr.f32.gmra.mrb[0].mxu0 %v193
  %v522 = vpop.f32.mrb[0].mxu0
  %v523 = vadd.f32 %v88, %v522
  %v524 = vpop.f32.mrb[0].mxu0
  %525 = vmatprep.mubr.f32.mxu0 0.0
  %526 = vmatmul.mubr.f32.gmra.mrb[0].mxu0 %v196
  %v527 = vpop.f32.mrb[0].mxu0
  %v528 = vadd.f32 %v88, %v527
  %v529 = vpop.f32.mrb[0].mxu0
  %530 = vmatprep.mubr.f32.mxu0 0.0
  %531 = vmatmul.mubr.f32.gmra.mrb[0].mxu0 %v199
  %v532 = vpop.f32.mrb[0].mxu0
  %v533 = vadd.f32 %v88, %v532
  %v534 = vpop.f32.mrb[0].mxu0
  %535 = vmatprep.mubr.f32.mxu0 0.0
  %536 = vmatmul.mubr.f32.gmra.mrb[0].mxu0 %v202
  %v537 = vpop.f32.mrb[0].mxu0
  %v538 = vadd.f32 %v88, %v537
  %v539 = vpop.f32.mrb[0].mxu0
  %540 = vmatprep.mubr.f32.mxu0 0.0
  %541 = vmatmul.mubr.f32.gmra.mrb[0].mxu0 %v205
  %v542 = vpop.f32.mrb[0].mxu0
  %v543 = vadd.f32 %v88, %v542
  %v544 = vpop.f32.mrb[0].mxu0
  %545 = vmatprep.mubr.f32.mxu0 0.0
  %546 = vmatmul.mubr.f32.gmra.mrb[0].mxu0 %v208
  %v547 = vpop.f32.mrb[0].mxu0
  %v548 = vadd.f32 %v88, %v547
  %v549 = vpop.f32.mrb[0].mxu0
  %550 = vmatprep.mubr.f32.mxu0 0.0
  %551 = vmatmul.mubr.f32.gmra.mrb[0].mxu0 %v211
  %v552 = vpop.f32.mrb[0].mxu0
  %v553 = vadd.f32 %v88, %v552
  %v554 = vpop.f32.mrb[0].mxu0
  %555 = vmatprep.mubr.f32.mxu0 0.0
  %556 = vmatmul.mubr.f32.gmra.mrb[0].mxu0 %v214
  %v557 = vpop.f32.mrb[0].mxu0
  %v558 = vadd.f32 %v88, %v557
  %v559 = vpop.f32.mrb[0].mxu0
  %560 = vmatprep.mubr.f32.mxu0 0.0
  %561 = vmatmul.mubr.f32.gmra.mrb[0].mxu0 %v217
  %v562 = vpop.f32.mrb[0].mxu0
  %v563 = vadd.f32 %v88, %v562
  %v564 = vpop.f32.mrb[0].mxu0
  %565 = vmatprep.mubr.f32.mxu0 0.0
  %566 = vmatmul.mubr.f32.gmra.mrb[0].mxu0 %v220
  %v567 = vpop.f32.mrb[0].mxu0
  %v568 = vadd.f32 %v88, %v567
  %v569 = vpop.f32.mrb[0].mxu0
  %570 = vmatprep.mubr.f32.mxu0 0.0
  %571 = vmatmul.mubr.f32.gmra.mrb[0].mxu0 %v223
  %v572 = vpop.f32.mrb[0].mxu0
  %v573 = vadd.f32 %v88, %v572
  %v574 = vpop.f32.mrb[0].mxu0
  %575 = vmatprep.mubr.f32.mxu0 0.0
  %576 = vmatmul.mubr.f32.gmra.mrb[0].mxu0 %v226
  %v577 = vpop.f32.mrb[0].mxu0
  %v578 = vadd.f32 %v88, %v577
  %v579 = vpop.f32.mrb[0].mxu0
  %580 = vmatprep.mubr.f32.mxu0 0.0
  %581 = vmatmul.mubr.f32.gmra.mrb[0].mxu0 %v229
  %v582 = vpop.f32.mrb[0].mxu0
  %v583 = vadd.f32 %v88, %v582
  %v584 = vpop.f32.mrb[0].mxu0
  %585 = vmatprep.mubr.f32.mxu0 0.0
  %586 = vmatmul.mubr.f32.gmra.mrb[0].mxu0 %v232
  %v587 = vpop.f32.mrb[0].mxu0
  %v588 = vadd.f32 %v88, %v587
  %v589 = vpop.f32.mrb[0].mxu0
  %590 = vmatprep.mubr.f32.mxu0 0.0
  %591 = vmatmul.mubr.f32.gmra.mrb[0].mxu0 %v235
  %v592 = vpop.f32.mrb[0].mxu0
  %v593 = vadd.f32 %v88, %v592
  %v594 = vpop.f32.mrb[0].mxu0
  %595 = vmatprep.mubr.f32.mxu0 0.0
  %596 = vmatmul.mubr.f32.gmra.mrb[0].mxu0 %v238
  %v597 = vpop.f32.mrb[0].mxu0
  %v598 = vadd.f32 %v88, %v597
  %v599 = vpop.f32.mrb[0].mxu0
  %600 = vmatprep.mubr.f32.mxu0 0.0
  %601 = vmatmul.mubr.f32.gmra.mrb[0].mxu0 %v241
  %v602 = vpop.f32.mrb[0].mxu0
  %v603 = vadd.f32 %v88, %v602
  %v604 = vpop.f32.mrb[0].mxu0
  %605 = vmatprep.mubr.f32.mxu0 0.0
  %606 = vmatmul.mubr.f32.gmra.mrb[0].mxu0 %v244
  %v607 = vpop.f32.mrb[0].mxu0
  %v608 = vadd.f32 %v88, %v607
  %v609 = vpop.f32.mrb[0].mxu0
  %610 = vmatprep.mubr.f32.mxu0 0.0
  %611 = vmatmul.mubr.f32.gmra.mrb[0].mxu0 %v247
  %v612 = vpop.f32.mrb[0].mxu0
  %v613 = vadd.f32 %v88, %v612
  %v614 = vpop.f32.mrb[0].mxu0
  %615 = vmatprep.mubr.f32.mxu0 0.0
  %616 = vmatmul.mubr.f32.gmra.mrb[0].mxu0 %v250
  %v617 = vpop.f32.mrb[0].mxu0
  %v618 = vadd.f32 %v88, %v617
  %v619 = vpop.f32.mrb[0].mxu0
  %620 = vmatprep.mubr.f32.mxu0 0.0
  %621 = vmatmul.mubr.f32.gmra.mrb[0].mxu0 %v253
  %v622 = vpop.f32.mrb[0].mxu0
  %v623 = vadd.f32 %v88, %v622
  %v624 = vpop.f32.mrb[0].mxu0
  %625 = vmatprep.mubr.f32.mxu0 0.0
  %626 = vmatmul.mubr.f32.gmra.mrb[0].mxu0 %v256
  %v627 = vpop.f32.mrb[0].mxu0
  %v628 = vadd.f32 %v88, %v627
  %v629 = vpop.f32.mrb[0].mxu0
  %630 = vmatprep.mubr.f32.mxu0 0.0
  %631 = vmatmul.mubr.f32.gmra.mrb[0].mxu0 %v259
  %v632 = vpop.f32.mrb[0].mxu0
  %v633 = vadd.f32 %v88, %v632
  %v634 = vpop.f32.mrb[0].mxu0
  %635 = vmatprep.mubr.f32.mxu0 0.0
  %636 = vmatmul.mubr.f32.gmra.mrb[0].mxu0 %v262
  %v637 = vpop.f32.mrb[0].mxu0
  %v638 = vadd.f32 %v88, %v637
  %v639 = vpop.f32.mrb[0].mxu0
  %640 = vmatprep.mubr.f32.mxu0 0.0
  %641 = vmatmul.mubr.f32.gmra.mrb[0].mxu0 %v265
  %v642 = vpop.f32.mrb[0].mxu0
  %v643 = vadd.f32 %v88, %v642
  %v644 = vpop.f32.mrb[0].mxu0
  %645 = vmatprep.mubr.f32.mxu0 0.0
  %646 = vmatmul.mubr.f32.gmra.mrb[0].mxu0 %v268
  %v647 = vpop.f32.mrb[0].mxu0
  %v648 = vadd.f32 %v88, %v647
  %v649 = vpop.f32.mrb[0].mxu0
  %650 = vmatprep.mubr.f32.mxu0 0.0
  %651 = vmatmul.mubr.f32.gmra.mrb[0].mxu0 %v271
  %v652 = vpop.f32.mrb[0].mxu0
  %v653 = vadd.f32 %v88, %v652
  %v654 = vpop.f32.mrb[0].mxu0
  %655 = vmatprep.mubr.f32.mxu0 0.0
  %656 = vmatmul.mubr.f32.gmra.mrb[0].mxu0 %v274
  %v657 = vpop.f32.mrb[0].mxu0
  %v658 = vadd.f32 %v88, %v657
  %v659 = vpop.f32.mrb[0].mxu0
  %660 = vmatprep.mubr.f32.mxu0 0.0
  %661 = vmatmul.mubr.f32.gmra.mrb[0].mxu0 %v277
  %v662 = vpop.f32.mrb[0].mxu0
  %v663 = vadd.f32 %v88, %v662
  %v664 = vpop.f32.mrb[0].mxu0
  %665 = vmatprep.mubr.f32.mxu0 0.0
  %666 = vmatmul.mubr.f32.gmra.mrb[0].mxu0 %v280
  %v667 = vpop.f32.mrb[0].mxu0
  %v668 = vadd.f32 %v88, %v667
  %v669 = vpop.f32.mrb[0].mxu0
  %670 = vdwg.mxu0
  %v671 = vmax.f32 %v353, 0.0
  %v672 = vmax.f32 %v358, 0.0
  %v673 = vmax.f32 %v363, 0.0
  %v674 = vmax.f32 %v368, 0.0
  %v675 = vmax.f32 %v373, 0.0
  %v676 = vmax.f32 %v378, 0.0
  %v677 = vmax.f32 %v383, 0.0
  %v678 = vmax.f32 %v388, 0.0
  %v679 = vmax.f32 %v393, 0.0
  %v680 = vmax.f32 %v398, 0.0
  %v681 = vmax.f32 %v403, 0.0
  %v682 = vmax.f32 %v408, 0.0
  %v683 = vmax.f32 %v413, 0.0
  %v684 = vmax.f32 %v418, 0.0
  %v685 = vmax.f32 %v423, 0.0
  %v686 = vmax.f32 %v428, 0.0
  %v687 = vmax.f32 %v433, 0.0
  %v688 = vmax.f32 %v438, 0.0
  %v689 = vmax.f32 %v443, 0.0
  %v690 = vmax.f32 %v448, 0.0
  %v691 = vmax.f32 %v453, 0.0
  %v692 = vmax.f32 %v458, 0.0
  %v693 = vmax.f32 %v463, 0.0
  %v694 = vmax.f32 %v468, 0.0
  %v695 = vmax.f32 %v473, 0.0
  %v696 = vmax.f32 %v478, 0.0
  %v697 = vmax.f32 %v483, 0.0
  %v698 = vmax.f32 %v488, 0.0
  %v699 = vmax.f32 %v493, 0.0
  %v700 = vmax.f32 %v498, 0.0
  %v701 = vmax.f32 %v503, 0.0
  %v702 = vmax.f32 %v508, 0.0
  %v703 = vmax.f32 %v513, 0.0
  %v704 = vmax.f32 %v518, 0.0
  %v705 = vmax.f32 %v523, 0.0
  %v706 = vmax.f32 %v528, 0.0
  %v707 = vmax.f32 %v533, 0.0
  %v708 = vmax.f32 %v538, 0.0
  %v709 = vmax.f32 %v543, 0.0
  %v710 = vmax.f32 %v548, 0.0
  %v711 = vmax.f32 %v553, 0.0
  %v712 = vmax.f32 %v558, 0.0
  %v713 = vmax.f32 %v563, 0.0
  %v714 = vmax.f32 %v568, 0.0
  %v715 = vmax.f32 %v573, 0.0
  %v716 = vmax.f32 %v578, 0.0
  %v717 = vmax.f32 %v583, 0.0
  %v718 = vmax.f32 %v588, 0.0
  %v719 = vmax.f32 %v593, 0.0
  %v720 = vmax.f32 %v598, 0.0
  %v721 = vmax.f32 %v603, 0.0
  %v722 = vmax.f32 %v608, 0.0
  %v723 = vmax.f32 %v613, 0.0
  %v724 = vmax.f32 %v618, 0.0
  %v725 = vmax.f32 %v623, 0.0
  %v726 = vmax.f32 %v628, 0.0
  %v727 = vmax.f32 %v633, 0.0
  %v728 = vmax.f32 %v638, 0.0
  %v729 = vmax.f32 %v643, 0.0
  %v730 = vmax.f32 %v648, 0.0
  %v731 = vmax.f32 %v653, 0.0
  %v732 = vmax.f32 %v658, 0.0
  %v733 = vmax.f32 %v663, 0.0
  %v734 = vmax.f32 %v668, 0.0
  %v735 = vld [vmem:[%s2] sm:$0xff]
  %v736 = vld [vmem:[%s2 + $0x8] sm:$0xff]
  %v737 = vld [vmem:[%s2 + $0x10] sm:$0xff]
  %v738 = vld [vmem:[%s2 + $0x18] sm:$0xff]
  %v739 = vld [vmem:[%s2 + $0x20] sm:$0xff]
  %v740 = vld [vmem:[%s2 + $0x28] sm:$0xff]
  %v741 = vld [vmem:[%s2 + $0x30] sm:$0xff]
  %v742 = vld [vmem:[%s2 + $0x38] sm:$0xff]
  %v743 = vld [vmem:[%s2 + $0x40] sm:$0xff]
  %v744 = vld [vmem:[%s2 + $0x48] sm:$0xff]
  %v745 = vld [vmem:[%s2 + $0x50] sm:$0xff]
  %v746 = vld [vmem:[%s2 + $0x58] sm:$0xff]
  %v747 = vld [vmem:[%s2 + $0x60] sm:$0xff]
  %v748 = vld [vmem:[%s2 + $0x68] sm:$0xff]
  %v749 = vld [vmem:[%s2 + $0x70] sm:$0xff]
  %v750 = vld [vmem:[%s2 + $0x78] sm:$0xff]
  %v751 = vld [vmem:[%s3 + $0x1] sm:$0x1]
  %v752 = vlaneseq
  %v753 = vshrl.u32 %v752, 7
  %v754 = vsub.s32 0, %v753
  %v755 = vrot.slane %v751, %v754
  %756 = vmatprep.subr.mxu0 0.0
  %757 = vmatpush1.msra.mxu0 %v735
  %758 = vmatprep.subr.mxu0 0.0
  %759 = vmatpush1.msra.mxu0 %v736
  %760 = vmatprep.subr.mxu0 0.0
  %761 = vmatpush1.msra.mxu0 %v737
  %762 = vmatprep.subr.mxu0 0.0
  %763 = vmatpush1.msra.mxu0 %v738
  %764 = vmatprep.subr.mxu0 0.0
  %765 = vmatpush1.msra.mxu0 %v739
  %766 = vmatprep.subr.mxu0 0.0
  %767 = vmatpush1.msra.mxu0 %v740
  %768 = vmatprep.subr.mxu0 0.0
  %769 = vmatpush1.msra.mxu0 %v741
  %770 = vmatprep.subr.mxu0 0.0
  %771 = vmatpush1.msra.mxu0 %v742
  %772 = vmatprep.subr.mxu0 0.0
  %773 = vmatpush1.msra.mxu0 %v743
  %774 = vmatprep.subr.mxu0 0.0
  %775 = vmatpush1.msra.mxu0 %v744
  %776 = vmatprep.subr.mxu0 0.0
  %777 = vmatpush1.msra.mxu0 %v745
  %778 = vmatprep.subr.mxu0 0.0
  %779 = vmatpush1.msra.mxu0 %v746
  %780 = vmatprep.subr.mxu0 0.0
  %781 = vmatpush1.msra.mxu0 %v747
  %782 = vmatprep.subr.mxu0 0.0
  %783 = vmatpush1.msra.mxu0 %v748
  %784 = vmatprep.subr.mxu0 0.0
  %785 = vmatpush1.msra.mxu0 %v749
  %786 = vmatprep.subr.mxu0 0.0
  %787 = vmatpush1.msra.mxu0 %v750
  %788 = vmatprep.subr.mxu0 0.0
  %789 = vmatpush1.msra.mxu0 0.0
  %790 = vmatprep.subr.mxu0 0.0
  %791 = vmatpush1.msra.mxu0 0.0
  %792 = vmatprep.subr.mxu0 0.0
  %793 = vmatpush1.msra.mxu0 0.0
  %794 = vmatprep.subr.mxu0 0.0
  %795 = vmatpush1.msra.mxu0 0.0
  %796 = vmatprep.subr.mxu0 0.0
  %797 = vmatpush1.msra.mxu0 0.0
  %798 = vmatprep.subr.mxu0 0.0
  %799 = vmatpush1.msra.mxu0 0.0
  %800 = vmatprep.subr.mxu0 0.0
  %801 = vmatpush1.msra.mxu0 0.0
  %802 = vmatprep.subr.mxu0 0.0
  %803 = vmatpush1.msra.mxu0 0.0
  %804 = vmatprep.subr.mxu0 0.0
  %805 = vmatpush1.msra.mxu0 0.0
  %806 = vmatprep.subr.mxu0 0.0
  %807 = vmatpush1.msra.mxu0 0.0
  %808 = vmatprep.subr.mxu0 0.0
  %809 = vmatpush1.msra.mxu0 0.0
  %810 = vmatprep.subr.mxu0 0.0
  %811 = vmatpush1.msra.mxu0 0.0
  %812 = vmatprep.subr.mxu0 0.0
  %813 = vmatpush1.msra.mxu0 0.0
  %814 = vmatprep.subr.mxu0 0.0
  %815 = vmatpush1.msra.mxu0 0.0
  %816 = vmatprep.subr.mxu0 0.0
  %817 = vmatpush1.msra.mxu0 0.0
  %818 = vmatprep.subr.mxu0 0.0
  %819 = vmatpush1.msra.mxu0 0.0
  %820 = vmatprep.mubr.f32.mxu0 0.0
  %821 = vmatmul.mubr.f32.gmra.mrb[0].mxu0 %v671
  %v822 = vpop.f32.mrb[0].mxu0
  %v823 = vadd.f32 %v755, %v822
  %v824 = vpop.f32.mrb[0].mxu0
  %825 = vmatprep.mubr.f32.mxu0 0.0
  %826 = vmatmul.mubr.f32.gmra.mrb[0].mxu0 %v672
  %v827 = vpop.f32.mrb[0].mxu0
  %v828 = vadd.f32 %v755, %v827
  %v829 = vpop.f32.mrb[0].mxu0
  %830 = vmatprep.mubr.f32.mxu0 0.0
  %831 = vmatmul.mubr.f32.gmra.mrb[0].mxu0 %v673
  %v832 = vpop.f32.mrb[0].mxu0
  %v833 = vadd.f32 %v755, %v832
  %v834 = vpop.f32.mrb[0].mxu0
  %835 = vmatprep.mubr.f32.mxu0 0.0
  %836 = vmatmul.mubr.f32.gmra.mrb[0].mxu0 %v674
  %v837 = vpop.f32.mrb[0].mxu0
  %v838 = vadd.f32 %v755, %v837
  %v839 = vpop.f32.mrb[0].mxu0
  %840 = vmatprep.mubr.f32.mxu0 0.0
  %841 = vmatmul.mubr.f32.gmra.mrb[0].mxu0 %v675
  %v842 = vpop.f32.mrb[0].mxu0
  %v843 = vadd.f32 %v755, %v842
  %v844 = vpop.f32.mrb[0].mxu0
  %845 = vmatprep.mubr.f32.mxu0 0.0
  %846 = vmatmul.mubr.f32.gmra.mrb[0].mxu0 %v676
  %v847 = vpop.f32.mrb[0].mxu0
  %v848 = vadd.f32 %v755, %v847
  %v849 = vpop.f32.mrb[0].mxu0
  %850 = vmatprep.mubr.f32.mxu0 0.0
  %851 = vmatmul.mubr.f32.gmra.mrb[0].mxu0 %v677
  %v852 = vpop.f32.mrb[0].mxu0
  %v853 = vadd.f32 %v755, %v852
  %v854 = vpop.f32.mrb[0].mxu0
  %855 = vmatprep.mubr.f32.mxu0 0.0
  %856 = vmatmul.mubr.f32.gmra.mrb[0].mxu0 %v678
  %v857 = vpop.f32.mrb[0].mxu0
  %v858 = vadd.f32 %v755, %v857
  %v859 = vpop.f32.mrb[0].mxu0
  %860 = vmatprep.mubr.f32.mxu0 0.0
  %861 = vmatmul.mubr.f32.gmra.mrb[0].mxu0 %v679
  %v862 = vpop.f32.mrb[0].mxu0
  %v863 = vadd.f32 %v755, %v862
  %v864 = vpop.f32.mrb[0].mxu0
  %865 = vmatprep.mubr.f32.mxu0 0.0
  %866 = vmatmul.mubr.f32.gmra.mrb[0].mxu0 %v680
  %v867 = vpop.f32.mrb[0].mxu0
  %v868 = vadd.f32 %v755, %v867
  %v869 = vpop.f32.mrb[0].mxu0
  %870 = vmatprep.mubr.f32.mxu0 0.0
  %871 = vmatmul.mubr.f32.gmra.mrb[0].mxu0 %v681
  %v872 = vpop.f32.mrb[0].mxu0
  %v873 = vadd.f32 %v755, %v872
  %v874 = vpop.f32.mrb[0].mxu0
  %875 = vmatprep.mubr.f32.mxu0 0.0
  %876 = vmatmul.mubr.f32.gmra.mrb[0].mxu0 %v682
  %v877 = vpop.f32.mrb[0].mxu0
  %v878 = vadd.f32 %v755, %v877
  %v879 = vpop.f32.mrb[0].mxu0
  %880 = vmatprep.mubr.f32.mxu0 0.0
  %881 = vmatmul.mubr.f32.gmra.mrb[0].mxu0 %v683
  %v882 = vpop.f32.mrb[0].mxu0
  %v883 = vadd.f32 %v755, %v882
  %v884 = vpop.f32.mrb[0].mxu0
  %885 = vmatprep.mubr.f32.mxu0 0.0
  %886 = vmatmul.mubr.f32.gmra.mrb[0].mxu0 %v684
  %v887 = vpop.f32.mrb[0].mxu0
  %v888 = vadd.f32 %v755, %v887
  %v889 = vpop.f32.mrb[0].mxu0
  %890 = vmatprep.mubr.f32.mxu0 0.0
  %891 = vmatmul.mubr.f32.gmra.mrb[0].mxu0 %v685
  %v892 = vpop.f32.mrb[0].mxu0
  %v893 = vadd.f32 %v755, %v892
  %v894 = vpop.f32.mrb[0].mxu0
  %895 = vmatprep.mubr.f32.mxu0 0.0
  %896 = vmatmul.mubr.f32.gmra.mrb[0].mxu0 %v686
  %v897 = vpop.f32.mrb[0].mxu0
  %v898 = vadd.f32 %v755, %v897
  %v899 = vpop.f32.mrb[0].mxu0
  %900 = vmatprep.mubr.f32.mxu0 0.0
  %901 = vmatmul.mubr.f32.gmra.mrb[0].mxu0 %v687
  %v902 = vpop.f32.mrb[0].mxu0
  %v903 = vadd.f32 %v755, %v902
  %v904 = vpop.f32.mrb[0].mxu0
  %905 = vmatprep.mubr.f32.mxu0 0.0
  %906 = vmatmul.mubr.f32.gmra.mrb[0].mxu0 %v688
  %v907 = vpop.f32.mrb[0].mxu0
  %v908 = vadd.f32 %v755, %v907
  %v909 = vpop.f32.mrb[0].mxu0
  %910 = vmatprep.mubr.f32.mxu0 0.0
  %911 = vmatmul.mubr.f32.gmra.mrb[0].mxu0 %v689
  %v912 = vpop.f32.mrb[0].mxu0
  %v913 = vadd.f32 %v755, %v912
  %v914 = vpop.f32.mrb[0].mxu0
  %915 = vmatprep.mubr.f32.mxu0 0.0
  %916 = vmatmul.mubr.f32.gmra.mrb[0].mxu0 %v690
  %v917 = vpop.f32.mrb[0].mxu0
  %v918 = vadd.f32 %v755, %v917
  %v919 = vpop.f32.mrb[0].mxu0
  %920 = vmatprep.mubr.f32.mxu0 0.0
  %921 = vmatmul.mubr.f32.gmra.mrb[0].mxu0 %v691
  %v922 = vpop.f32.mrb[0].mxu0
  %v923 = vadd.f32 %v755, %v922
  %v924 = vpop.f32.mrb[0].mxu0
  %925 = vmatprep.mubr.f32.mxu0 0.0
  %926 = vmatmul.mubr.f32.gmra.mrb[0].mxu0 %v692
  %v927 = vpop.f32.mrb[0].mxu0
  %v928 = vadd.f32 %v755, %v927
  %v929 = vpop.f32.mrb[0].mxu0
  %930 = vmatprep.mubr.f32.mxu0 0.0
  %931 = vmatmul.mubr.f32.gmra.mrb[0].mxu0 %v693
  %v932 = vpop.f32.mrb[0].mxu0
  %v933 = vadd.f32 %v755, %v932
  %v934 = vpop.f32.mrb[0].mxu0
  %935 = vmatprep.mubr.f32.mxu0 0.0
  %936 = vmatmul.mubr.f32.gmra.mrb[0].mxu0 %v694
  %v937 = vpop.f32.mrb[0].mxu0
  %v938 = vadd.f32 %v755, %v937
  %v939 = vpop.f32.mrb[0].mxu0
  %940 = vmatprep.mubr.f32.mxu0 0.0
  %941 = vmatmul.mubr.f32.gmra.mrb[0].mxu0 %v695
  %v942 = vpop.f32.mrb[0].mxu0
  %v943 = vadd.f32 %v755, %v942
  %v944 = vpop.f32.mrb[0].mxu0
  %945 = vmatprep.mubr.f32.mxu0 0.0
  %946 = vmatmul.mubr.f32.gmra.mrb[0].mxu0 %v696
  %v947 = vpop.f32.mrb[0].mxu0
  %v948 = vadd.f32 %v755, %v947
  %v949 = vpop.f32.mrb[0].mxu0
  %950 = vmatprep.mubr.f32.mxu0 0.0
  %951 = vmatmul.mubr.f32.gmra.mrb[0].mxu0 %v697
  %v952 = vpop.f32.mrb[0].mxu0
  %v953 = vadd.f32 %v755, %v952
  %v954 = vpop.f32.mrb[0].mxu0
  %955 = vmatprep.mubr.f32.mxu0 0.0
  %956 = vmatmul.mubr.f32.gmra.mrb[0].mxu0 %v698
  %v957 = vpop.f32.mrb[0].mxu0
  %v958 = vadd.f32 %v755, %v957
  %v959 = vpop.f32.mrb[0].mxu0
  %960 = vmatprep.mubr.f32.mxu0 0.0
  %961 = vmatmul.mubr.f32.gmra.mrb[0].mxu0 %v699
  %v962 = vpop.f32.mrb[0].mxu0
  %v963 = vadd.f32 %v755, %v962
  %v964 = vpop.f32.mrb[0].mxu0
  %965 = vmatprep.mubr.f32.mxu0 0.0
  %966 = vmatmul.mubr.f32.gmra.mrb[0].mxu0 %v700
  %v967 = vpop.f32.mrb[0].mxu0
  %v968 = vadd.f32 %v755, %v967
  %v969 = vpop.f32.mrb[0].mxu0
  %970 = vmatprep.mubr.f32.mxu0 0.0
  %971 = vmatmul.mubr.f32.gmra.mrb[0].mxu0 %v701
  %v972 = vpop.f32.mrb[0].mxu0
  %v973 = vadd.f32 %v755, %v972
  %v974 = vpop.f32.mrb[0].mxu0
  %975 = vmatprep.mubr.f32.mxu0 0.0
  %976 = vmatmul.mubr.f32.gmra.mrb[0].mxu0 %v702
  %v977 = vpop.f32.mrb[0].mxu0
  %v978 = vadd.f32 %v755, %v977
  %v979 = vpop.f32.mrb[0].mxu0
  %980 = vmatprep.mubr.f32.mxu0 0.0
  %981 = vmatmul.mubr.f32.gmra.mrb[0].mxu0 %v703
  %v982 = vpop.f32.mrb[0].mxu0
  %v983 = vadd.f32 %v755, %v982
  %v984 = vpop.f32.mrb[0].mxu0
  %985 = vmatprep.mubr.f32.mxu0 0.0
  %986 = vmatmul.mubr.f32.gmra.mrb[0].mxu0 %v704
  %v987 = vpop.f32.mrb[0].mxu0
  %v988 = vadd.f32 %v755, %v987
  %v989 = vpop.f32.mrb[0].mxu0
  %990 = vmatprep.mubr.f32.mxu0 0.0
  %991 = vmatmul.mubr.f32.gmra.mrb[0].mxu0 %v705
  %v992 = vpop.f32.mrb[0].mxu0
  %v993 = vadd.f32 %v755, %v992
  %v994 = vpop.f32.mrb[0].mxu0
  %995 = vmatprep.mubr.f32.mxu0 0.0
  %996 = vmatmul.mubr.f32.gmra.mrb[0].mxu0 %v706
  %v997 = vpop.f32.mrb[0].mxu0
  %v998 = vadd.f32 %v755, %v997
  %v999 = vpop.f32.mrb[0].mxu0
  %1000 = vmatprep.mubr.f32.mxu0 0.0
  %1001 = vmatmul.mubr.f32.gmra.mrb[0].mxu0 %v707
  %v1002 = vpop.f32.mrb[0].mxu0
  %v1003 = vadd.f32 %v755, %v1002
  %v1004 = vpop.f32.mrb[0].mxu0
  %1005 = vmatprep.mubr.f32.mxu0 0.0
  %1006 = vmatmul.mubr.f32.gmra.mrb[0].mxu0 %v708
  %v1007 = vpop.f32.mrb[0].mxu0
  %v1008 = vadd.f32 %v755, %v1007
  %v1009 = vpop.f32.mrb[0].mxu0
  %1010 = vmatprep.mubr.f32.mxu0 0.0
  %1011 = vmatmul.mubr.f32.gmra.mrb[0].mxu0 %v709
  %v1012 = vpop.f32.mrb[0].mxu0
  %v1013 = vadd.f32 %v755, %v1012
  %v1014 = vpop.f32.mrb[0].mxu0
  %1015 = vmatprep.mubr.f32.mxu0 0.0
  %1016 = vmatmul.mubr.f32.gmra.mrb[0].mxu0 %v710
  %v1017 = vpop.f32.mrb[0].mxu0
  %v1018 = vadd.f32 %v755, %v1017
  %v1019 = vpop.f32.mrb[0].mxu0
  %1020 = vmatprep.mubr.f32.mxu0 0.0
  %1021 = vmatmul.mubr.f32.gmra.mrb[0].mxu0 %v711
  %v1022 = vpop.f32.mrb[0].mxu0
  %v1023 = vadd.f32 %v755, %v1022
  %v1024 = vpop.f32.mrb[0].mxu0
  %1025 = vmatprep.mubr.f32.mxu0 0.0
  %1026 = vmatmul.mubr.f32.gmra.mrb[0].mxu0 %v712
  %v1027 = vpop.f32.mrb[0].mxu0
  %v1028 = vadd.f32 %v755, %v1027
  %v1029 = vpop.f32.mrb[0].mxu0
  %1030 = vmatprep.mubr.f32.mxu0 0.0
  %1031 = vmatmul.mubr.f32.gmra.mrb[0].mxu0 %v713
  %v1032 = vpop.f32.mrb[0].mxu0
  %v1033 = vadd.f32 %v755, %v1032
  %v1034 = vpop.f32.mrb[0].mxu0
  %1035 = vmatprep.mubr.f32.mxu0 0.0
  %1036 = vmatmul.mubr.f32.gmra.mrb[0].mxu0 %v714
  %v1037 = vpop.f32.mrb[0].mxu0
  %v1038 = vadd.f32 %v755, %v1037
  %v1039 = vpop.f32.mrb[0].mxu0
  %1040 = vmatprep.mubr.f32.mxu0 0.0
  %1041 = vmatmul.mubr.f32.gmra.mrb[0].mxu0 %v715
  %v1042 = vpop.f32.mrb[0].mxu0
  %v1043 = vadd.f32 %v755, %v1042
  %v1044 = vpop.f32.mrb[0].mxu0
  %1045 = vmatprep.mubr.f32.mxu0 0.0
  %1046 = vmatmul.mubr.f32.gmra.mrb[0].mxu0 %v716
  %v1047 = vpop.f32.mrb[0].mxu0
  %v1048 = vadd.f32 %v755, %v1047
  %v1049 = vpop.f32.mrb[0].mxu0
  %1050 = vmatprep.mubr.f32.mxu0 0.0
  %1051 = vmatmul.mubr.f32.gmra.mrb[0].mxu0 %v717
  %v1052 = vpop.f32.mrb[0].mxu0
  %v1053 = vadd.f32 %v755, %v1052
  %v1054 = vpop.f32.mrb[0].mxu0
  %1055 = vmatprep.mubr.f32.mxu0 0.0
  %1056 = vmatmul.mubr.f32.gmra.mrb[0].mxu0 %v718
  %v1057 = vpop.f32.mrb[0].mxu0
  %v1058 = vadd.f32 %v755, %v1057
  %v1059 = vpop.f32.mrb[0].mxu0
  %1060 = vmatprep.mubr.f32.mxu0 0.0
  %1061 = vmatmul.mubr.f32.gmra.mrb[0].mxu0 %v719
  %v1062 = vpop.f32.mrb[0].mxu0
  %v1063 = vadd.f32 %v755, %v1062
  %v1064 = vpop.f32.mrb[0].mxu0
  %1065 = vmatprep.mubr.f32.mxu0 0.0
  %1066 = vmatmul.mubr.f32.gmra.mrb[0].mxu0 %v720
  %v1067 = vpop.f32.mrb[0].mxu0
  %v1068 = vadd.f32 %v755, %v1067
  %v1069 = vpop.f32.mrb[0].mxu0
  %1070 = vmatprep.mubr.f32.mxu0 0.0
  %1071 = vmatmul.mubr.f32.gmra.mrb[0].mxu0 %v721
  %v1072 = vpop.f32.mrb[0].mxu0
  %v1073 = vadd.f32 %v755, %v1072
  %v1074 = vpop.f32.mrb[0].mxu0
  %1075 = vmatprep.mubr.f32.mxu0 0.0
  %1076 = vmatmul.mubr.f32.gmra.mrb[0].mxu0 %v722
  %v1077 = vpop.f32.mrb[0].mxu0
  %v1078 = vadd.f32 %v755, %v1077
  %v1079 = vpop.f32.mrb[0].mxu0
  %1080 = vmatprep.mubr.f32.mxu0 0.0
  %1081 = vmatmul.mubr.f32.gmra.mrb[0].mxu0 %v723
  %v1082 = vpop.f32.mrb[0].mxu0
  %v1083 = vadd.f32 %v755, %v1082
  %v1084 = vpop.f32.mrb[0].mxu0
  %1085 = vmatprep.mubr.f32.mxu0 0.0
  %1086 = vmatmul.mubr.f32.gmra.mrb[0].mxu0 %v724
  %v1087 = vpop.f32.mrb[0].mxu0
  %v1088 = vadd.f32 %v755, %v1087
  %v1089 = vpop.f32.mrb[0].mxu0
  %1090 = vmatprep.mubr.f32.mxu0 0.0
  %1091 = vmatmul.mubr.f32.gmra.mrb[0].mxu0 %v725
  %v1092 = vpop.f32.mrb[0].mxu0
  %v1093 = vadd.f32 %v755, %v1092
  %v1094 = vpop.f32.mrb[0].mxu0
  %1095 = vmatprep.mubr.f32.mxu0 0.0
  %1096 = vmatmul.mubr.f32.gmra.mrb[0].mxu0 %v726
  %v1097 = vpop.f32.mrb[0].mxu0
  %v1098 = vadd.f32 %v755, %v1097
  %v1099 = vpop.f32.mrb[0].mxu0
  %1100 = vmatprep.mubr.f32.mxu0 0.0
  %1101 = vmatmul.mubr.f32.gmra.mrb[0].mxu0 %v727
  %v1102 = vpop.f32.mrb[0].mxu0
  %v1103 = vadd.f32 %v755, %v1102
  %v1104 = vpop.f32.mrb[0].mxu0
  %1105 = vmatprep.mubr.f32.mxu0 0.0
  %1106 = vmatmul.mubr.f32.gmra.mrb[0].mxu0 %v728
  %v1107 = vpop.f32.mrb[0].mxu0
  %v1108 = vadd.f32 %v755, %v1107
  %v1109 = vpop.f32.mrb[0].mxu0
  %1110 = vmatprep.mubr.f32.mxu0 0.0
  %1111 = vmatmul.mubr.f32.gmra.mrb[0].mxu0 %v729
  %v1112 = vpop.f32.mrb[0].mxu0
  %v1113 = vadd.f32 %v755, %v1112
  %v1114 = vpop.f32.mrb[0].mxu0
  %1115 = vmatprep.mubr.f32.mxu0 0.0
  %1116 = vmatmul.mubr.f32.gmra.mrb[0].mxu0 %v730
  %v1117 = vpop.f32.mrb[0].mxu0
  %v1118 = vadd.f32 %v755, %v1117
  %v1119 = vpop.f32.mrb[0].mxu0
  %1120 = vmatprep.mubr.f32.mxu0 0.0
  %1121 = vmatmul.mubr.f32.gmra.mrb[0].mxu0 %v731
  %v1122 = vpop.f32.mrb[0].mxu0
  %v1123 = vadd.f32 %v755, %v1122
  %v1124 = vpop.f32.mrb[0].mxu0
  %1125 = vmatprep.mubr.f32.mxu0 0.0
  %1126 = vmatmul.mubr.f32.gmra.mrb[0].mxu0 %v732
  %v1127 = vpop.f32.mrb[0].mxu0
  %v1128 = vadd.f32 %v755, %v1127
  %v1129 = vpop.f32.mrb[0].mxu0
  %1130 = vmatprep.mubr.f32.mxu0 0.0
  %1131 = vmatmul.mubr.f32.gmra.mrb[0].mxu0 %v733
  %v1132 = vpop.f32.mrb[0].mxu0
  %v1133 = vadd.f32 %v755, %v1132
  %v1134 = vpop.f32.mrb[0].mxu0
  %1135 = vmatprep.mubr.f32.mxu0 0.0
  %1136 = vmatmul.mubr.f32.gmra.mrb[0].mxu0 %v734
  %v1137 = vpop.f32.mrb[0].mxu0
  %v1138 = vadd.f32 %v755, %v1137
  %v1139 = vpop.f32.mrb[0].mxu0
  %1140 = vdwg.mxu0
  %v1141 = vmax.f32 %v823, 0.0
  %v1142 = vmax.f32 %v828, 0.0
  %v1143 = vmax.f32 %v833, 0.0
  %v1144 = vmax.f32 %v838, 0.0
  %v1145 = vmax.f32 %v843, 0.0
  %v1146 = vmax.f32 %v848, 0.0
  %v1147 = vmax.f32 %v853, 0.0
  %v1148 = vmax.f32 %v858, 0.0
  %v1149 = vmax.f32 %v863, 0.0
  %v1150 = vmax.f32 %v868, 0.0
  %v1151 = vmax.f32 %v873, 0.0
  %v1152 = vmax.f32 %v878, 0.0
  %v1153 = vmax.f32 %v883, 0.0
  %v1154 = vmax.f32 %v888, 0.0
  %v1155 = vmax.f32 %v893, 0.0
  %v1156 = vmax.f32 %v898, 0.0
  %v1157 = vmax.f32 %v903, 0.0
  %v1158 = vmax.f32 %v908, 0.0
  %v1159 = vmax.f32 %v913, 0.0
  %v1160 = vmax.f32 %v918, 0.0
  %v1161 = vmax.f32 %v923, 0.0
  %v1162 = vmax.f32 %v928, 0.0
  %v1163 = vmax.f32 %v933, 0.0
  %v1164 = vmax.f32 %v938, 0.0
  %v1165 = vmax.f32 %v943, 0.0
  %v1166 = vmax.f32 %v948, 0.0
  %v1167 = vmax.f32 %v953, 0.0
  %v1168 = vmax.f32 %v958, 0.0
  %v1169 = vmax.f32 %v963, 0.0
  %v1170 = vmax.f32 %v968, 0.0
  %v1171 = vmax.f32 %v973, 0.0
  %v1172 = vmax.f32 %v978, 0.0
  %v1173 = vmax.f32 %v983, 0.0
  %v1174 = vmax.f32 %v988, 0.0
  %v1175 = vmax.f32 %v993, 0.0
  %v1176 = vmax.f32 %v998, 0.0
  %v1177 = vmax.f32 %v1003, 0.0
  %v1178 = vmax.f32 %v1008, 0.0
  %v1179 = vmax.f32 %v1013, 0.0
  %v1180 = vmax.f32 %v1018, 0.0
  %v1181 = vmax.f32 %v1023, 0.0
  %v1182 = vmax.f32 %v1028, 0.0
  %v1183 = vmax.f32 %v1033, 0.0
  %v1184 = vmax.f32 %v1038, 0.0
  %v1185 = vmax.f32 %v1043, 0.0
  %v1186 = vmax.f32 %v1048, 0.0
  %v1187 = vmax.f32 %v1053, 0.0
  %v1188 = vmax.f32 %v1058, 0.0
  %v1189 = vmax.f32 %v1063, 0.0
  %v1190 = vmax.f32 %v1068, 0.0
  %v1191 = vmax.f32 %v1073, 0.0
  %v1192 = vmax.f32 %v1078, 0.0
  %v1193 = vmax.f32 %v1083, 0.0
  %v1194 = vmax.f32 %v1088, 0.0
  %v1195 = vmax.f32 %v1093, 0.0
  %v1196 = vmax.f32 %v1098, 0.0
  %v1197 = vmax.f32 %v1103, 0.0
  %v1198 = vmax.f32 %v1108, 0.0
  %v1199 = vmax.f32 %v1113, 0.0
  %v1200 = vmax.f32 %v1118, 0.0
  %v1201 = vmax.f32 %v1123, 0.0
  %v1202 = vmax.f32 %v1128, 0.0
  %v1203 = vmax.f32 %v1133, 0.0
  %v1204 = vmax.f32 %v1138, 0.0
  %s1205 = scalar_lea.vmem %s2, 128
  %v1206 = vld [vmem:[%s1205] sm:$0xff]
  %v1207 = vld [vmem:[%s1205 + $0x8] sm:$0xff]
  %v1208 = vld [vmem:[%s1205 + $0x10] sm:$0xff]
  %v1209 = vld [vmem:[%s1205 + $0x18] sm:$0xff]
  %v1210 = vld [vmem:[%s1205 + $0x20] sm:$0xff]
  %v1211 = vld [vmem:[%s1205 + $0x28] sm:$0xff]
  %v1212 = vld [vmem:[%s1205 + $0x30] sm:$0xff]
  %v1213 = vld [vmem:[%s1205 + $0x38] sm:$0xff]
  %v1214 = vld [vmem:[%s1205 + $0x40] sm:$0xff]
  %v1215 = vld [vmem:[%s1205 + $0x48] sm:$0xff]
  %v1216 = vld [vmem:[%s1205 + $0x50] sm:$0xff]
  %v1217 = vld [vmem:[%s1205 + $0x58] sm:$0xff]
  %v1218 = vld [vmem:[%s1205 + $0x60] sm:$0xff]
  %v1219 = vld [vmem:[%s1205 + $0x68] sm:$0xff]
  %v1220 = vld [vmem:[%s1205 + $0x70] sm:$0xff]
  %v1221 = vld [vmem:[%s1205 + $0x78] sm:$0xff]
  %v1222 = vld [vmem:[%s3 + $0x2] sm:$0x1]
  %v1223 = vlaneseq
  %v1224 = vshrl.u32 %v1223, 7
  %v1225 = vsub.s32 0, %v1224
  %v1226 = vrot.slane %v1222, %v1225
  %1227 = vmatprep.subr.mxu0 0.0
  %1228 = vmatpush1.msra.mxu0 %v1206
  %1229 = vmatprep.subr.mxu0 0.0
  %1230 = vmatpush1.msra.mxu0 %v1207
  %1231 = vmatprep.subr.mxu0 0.0
  %1232 = vmatpush1.msra.mxu0 %v1208
  %1233 = vmatprep.subr.mxu0 0.0
  %1234 = vmatpush1.msra.mxu0 %v1209
  %1235 = vmatprep.subr.mxu0 0.0
  %1236 = vmatpush1.msra.mxu0 %v1210
  %1237 = vmatprep.subr.mxu0 0.0
  %1238 = vmatpush1.msra.mxu0 %v1211
  %1239 = vmatprep.subr.mxu0 0.0
  %1240 = vmatpush1.msra.mxu0 %v1212
  %1241 = vmatprep.subr.mxu0 0.0
  %1242 = vmatpush1.msra.mxu0 %v1213
  %1243 = vmatprep.subr.mxu0 0.0
  %1244 = vmatpush1.msra.mxu0 %v1214
  %1245 = vmatprep.subr.mxu0 0.0
  %1246 = vmatpush1.msra.mxu0 %v1215
  %1247 = vmatprep.subr.mxu0 0.0
  %1248 = vmatpush1.msra.mxu0 %v1216
  %1249 = vmatprep.subr.mxu0 0.0
  %1250 = vmatpush1.msra.mxu0 %v1217
  %1251 = vmatprep.subr.mxu0 0.0
  %1252 = vmatpush1.msra.mxu0 %v1218
  %1253 = vmatprep.subr.mxu0 0.0
  %1254 = vmatpush1.msra.mxu0 %v1219
  %1255 = vmatprep.subr.mxu0 0.0
  %1256 = vmatpush1.msra.mxu0 %v1220
  %1257 = vmatprep.subr.mxu0 0.0
  %1258 = vmatpush1.msra.mxu0 %v1221
  %1259 = vmatprep.subr.mxu0 0.0
  %1260 = vmatpush1.msra.mxu0 0.0
  %1261 = vmatprep.subr.mxu0 0.0
  %1262 = vmatpush1.msra.mxu0 0.0
  %1263 = vmatprep.subr.mxu0 0.0
  %1264 = vmatpush1.msra.mxu0 0.0
  %1265 = vmatprep.subr.mxu0 0.0
  %1266 = vmatpush1.msra.mxu0 0.0
  %1267 = vmatprep.subr.mxu0 0.0
  %1268 = vmatpush1.msra.mxu0 0.0
  %1269 = vmatprep.subr.mxu0 0.0
  %1270 = vmatpush1.msra.mxu0 0.0
  %1271 = vmatprep.subr.mxu0 0.0
  %1272 = vmatpush1.msra.mxu0 0.0
  %1273 = vmatprep.subr.mxu0 0.0
  %1274 = vmatpush1.msra.mxu0 0.0
  %1275 = vmatprep.subr.mxu0 0.0
  %1276 = vmatpush1.msra.mxu0 0.0
  %1277 = vmatprep.subr.mxu0 0.0
  %1278 = vmatpush1.msra.mxu0 0.0
  %1279 = vmatprep.subr.mxu0 0.0
  %1280 = vmatpush1.msra.mxu0 0.0
  %1281 = vmatprep.subr.mxu0 0.0
  %1282 = vmatpush1.msra.mxu0 0.0
  %1283 = vmatprep.subr.mxu0 0.0
  %1284 = vmatpush1.msra.mxu0 0.0
  %1285 = vmatprep.subr.mxu0 0.0
  %1286 = vmatpush1.msra.mxu0 0.0
  %1287 = vmatprep.subr.mxu0 0.0
  %1288 = vmatpush1.msra.mxu0 0.0
  %1289 = vmatprep.subr.mxu0 0.0
  %1290 = vmatpush1.msra.mxu0 0.0
  %1291 = vmatprep.mubr.f32.mxu0 0.0
  %1292 = vmatmul.mubr.f32.gmra.mrb[0].mxu0 %v1141
  %v1293 = vpop.f32.mrb[0].mxu0
  %v1294 = vadd.f32 %v1226, %v1293
  %v1295 = vpop.f32.mrb[0].mxu0
  %1296 = vmatprep.mubr.f32.mxu0 0.0
  %1297 = vmatmul.mubr.f32.gmra.mrb[0].mxu0 %v1142
  %v1298 = vpop.f32.mrb[0].mxu0
  %v1299 = vadd.f32 %v1226, %v1298
  %v1300 = vpop.f32.mrb[0].mxu0
  %1301 = vmatprep.mubr.f32.mxu0 0.0
  %1302 = vmatmul.mubr.f32.gmra.mrb[0].mxu0 %v1143
  %v1303 = vpop.f32.mrb[0].mxu0
  %v1304 = vadd.f32 %v1226, %v1303
  %v1305 = vpop.f32.mrb[0].mxu0
  %1306 = vmatprep.mubr.f32.mxu0 0.0
  %1307 = vmatmul.mubr.f32.gmra.mrb[0].mxu0 %v1144
  %v1308 = vpop.f32.mrb[0].mxu0
  %v1309 = vadd.f32 %v1226, %v1308
  %v1310 = vpop.f32.mrb[0].mxu0
  %1311 = vmatprep.mubr.f32.mxu0 0.0
  %1312 = vmatmul.mubr.f32.gmra.mrb[0].mxu0 %v1145
  %v1313 = vpop.f32.mrb[0].mxu0
  %v1314 = vadd.f32 %v1226, %v1313
  %v1315 = vpop.f32.mrb[0].mxu0
  %1316 = vmatprep.mubr.f32.mxu0 0.0
  %1317 = vmatmul.mubr.f32.gmra.mrb[0].mxu0 %v1146
  %v1318 = vpop.f32.mrb[0].mxu0
  %v1319 = vadd.f32 %v1226, %v1318
  %v1320 = vpop.f32.mrb[0].mxu0
  %1321 = vmatprep.mubr.f32.mxu0 0.0
  %1322 = vmatmul.mubr.f32.gmra.mrb[0].mxu0 %v1147
  %v1323 = vpop.f32.mrb[0].mxu0
  %v1324 = vadd.f32 %v1226, %v1323
  %v1325 = vpop.f32.mrb[0].mxu0
  %1326 = vmatprep.mubr.f32.mxu0 0.0
  %1327 = vmatmul.mubr.f32.gmra.mrb[0].mxu0 %v1148
  %v1328 = vpop.f32.mrb[0].mxu0
  %v1329 = vadd.f32 %v1226, %v1328
  %v1330 = vpop.f32.mrb[0].mxu0
  %1331 = vmatprep.mubr.f32.mxu0 0.0
  %1332 = vmatmul.mubr.f32.gmra.mrb[0].mxu0 %v1149
  %v1333 = vpop.f32.mrb[0].mxu0
  %v1334 = vadd.f32 %v1226, %v1333
  %v1335 = vpop.f32.mrb[0].mxu0
  %1336 = vmatprep.mubr.f32.mxu0 0.0
  %1337 = vmatmul.mubr.f32.gmra.mrb[0].mxu0 %v1150
  %v1338 = vpop.f32.mrb[0].mxu0
  %v1339 = vadd.f32 %v1226, %v1338
  %v1340 = vpop.f32.mrb[0].mxu0
  %1341 = vmatprep.mubr.f32.mxu0 0.0
  %1342 = vmatmul.mubr.f32.gmra.mrb[0].mxu0 %v1151
  %v1343 = vpop.f32.mrb[0].mxu0
  %v1344 = vadd.f32 %v1226, %v1343
  %v1345 = vpop.f32.mrb[0].mxu0
  %1346 = vmatprep.mubr.f32.mxu0 0.0
  %1347 = vmatmul.mubr.f32.gmra.mrb[0].mxu0 %v1152
  %v1348 = vpop.f32.mrb[0].mxu0
  %v1349 = vadd.f32 %v1226, %v1348
  %v1350 = vpop.f32.mrb[0].mxu0
  %1351 = vmatprep.mubr.f32.mxu0 0.0
  %1352 = vmatmul.mubr.f32.gmra.mrb[0].mxu0 %v1153
  %v1353 = vpop.f32.mrb[0].mxu0
  %v1354 = vadd.f32 %v1226, %v1353
  %v1355 = vpop.f32.mrb[0].mxu0
  %1356 = vmatprep.mubr.f32.mxu0 0.0
  %1357 = vmatmul.mubr.f32.gmra.mrb[0].mxu0 %v1154
  %v1358 = vpop.f32.mrb[0].mxu0
  %v1359 = vadd.f32 %v1226, %v1358
  %v1360 = vpop.f32.mrb[0].mxu0
  %1361 = vmatprep.mubr.f32.mxu0 0.0
  %1362 = vmatmul.mubr.f32.gmra.mrb[0].mxu0 %v1155
  %v1363 = vpop.f32.mrb[0].mxu0
  %v1364 = vadd.f32 %v1226, %v1363
  %v1365 = vpop.f32.mrb[0].mxu0
  %1366 = vmatprep.mubr.f32.mxu0 0.0
  %1367 = vmatmul.mubr.f32.gmra.mrb[0].mxu0 %v1156
  %v1368 = vpop.f32.mrb[0].mxu0
  %v1369 = vadd.f32 %v1226, %v1368
  %v1370 = vpop.f32.mrb[0].mxu0
  %1371 = vmatprep.mubr.f32.mxu0 0.0
  %1372 = vmatmul.mubr.f32.gmra.mrb[0].mxu0 %v1157
  %v1373 = vpop.f32.mrb[0].mxu0
  %v1374 = vadd.f32 %v1226, %v1373
  %v1375 = vpop.f32.mrb[0].mxu0
  %1376 = vmatprep.mubr.f32.mxu0 0.0
  %1377 = vmatmul.mubr.f32.gmra.mrb[0].mxu0 %v1158
  %v1378 = vpop.f32.mrb[0].mxu0
  %v1379 = vadd.f32 %v1226, %v1378
  %v1380 = vpop.f32.mrb[0].mxu0
  %1381 = vmatprep.mubr.f32.mxu0 0.0
  %1382 = vmatmul.mubr.f32.gmra.mrb[0].mxu0 %v1159
  %v1383 = vpop.f32.mrb[0].mxu0
  %v1384 = vadd.f32 %v1226, %v1383
  %v1385 = vpop.f32.mrb[0].mxu0
  %1386 = vmatprep.mubr.f32.mxu0 0.0
  %1387 = vmatmul.mubr.f32.gmra.mrb[0].mxu0 %v1160
  %v1388 = vpop.f32.mrb[0].mxu0
  %v1389 = vadd.f32 %v1226, %v1388
  %v1390 = vpop.f32.mrb[0].mxu0
  %1391 = vmatprep.mubr.f32.mxu0 0.0
  %1392 = vmatmul.mubr.f32.gmra.mrb[0].mxu0 %v1161
  %v1393 = vpop.f32.mrb[0].mxu0
  %v1394 = vadd.f32 %v1226, %v1393
  %v1395 = vpop.f32.mrb[0].mxu0
  %1396 = vmatprep.mubr.f32.mxu0 0.0
  %1397 = vmatmul.mubr.f32.gmra.mrb[0].mxu0 %v1162
  %v1398 = vpop.f32.mrb[0].mxu0
  %v1399 = vadd.f32 %v1226, %v1398
  %v1400 = vpop.f32.mrb[0].mxu0
  %1401 = vmatprep.mubr.f32.mxu0 0.0
  %1402 = vmatmul.mubr.f32.gmra.mrb[0].mxu0 %v1163
  %v1403 = vpop.f32.mrb[0].mxu0
  %v1404 = vadd.f32 %v1226, %v1403
  %v1405 = vpop.f32.mrb[0].mxu0
  %1406 = vmatprep.mubr.f32.mxu0 0.0
  %1407 = vmatmul.mubr.f32.gmra.mrb[0].mxu0 %v1164
  %v1408 = vpop.f32.mrb[0].mxu0
  %v1409 = vadd.f32 %v1226, %v1408
  %v1410 = vpop.f32.mrb[0].mxu0
  %1411 = vmatprep.mubr.f32.mxu0 0.0
  %1412 = vmatmul.mubr.f32.gmra.mrb[0].mxu0 %v1165
  %v1413 = vpop.f32.mrb[0].mxu0
  %v1414 = vadd.f32 %v1226, %v1413
  %v1415 = vpop.f32.mrb[0].mxu0
  %1416 = vmatprep.mubr.f32.mxu0 0.0
  %1417 = vmatmul.mubr.f32.gmra.mrb[0].mxu0 %v1166
  %v1418 = vpop.f32.mrb[0].mxu0
  %v1419 = vadd.f32 %v1226, %v1418
  %v1420 = vpop.f32.mrb[0].mxu0
  %1421 = vmatprep.mubr.f32.mxu0 0.0
  %1422 = vmatmul.mubr.f32.gmra.mrb[0].mxu0 %v1167
  %v1423 = vpop.f32.mrb[0].mxu0
  %v1424 = vadd.f32 %v1226, %v1423
  %v1425 = vpop.f32.mrb[0].mxu0
  %1426 = vmatprep.mubr.f32.mxu0 0.0
  %1427 = vmatmul.mubr.f32.gmra.mrb[0].mxu0 %v1168
  %v1428 = vpop.f32.mrb[0].mxu0
  %v1429 = vadd.f32 %v1226, %v1428
  %v1430 = vpop.f32.mrb[0].mxu0
  %1431 = vmatprep.mubr.f32.mxu0 0.0
  %1432 = vmatmul.mubr.f32.gmra.mrb[0].mxu0 %v1169
  %v1433 = vpop.f32.mrb[0].mxu0
  %v1434 = vadd.f32 %v1226, %v1433
  %v1435 = vpop.f32.mrb[0].mxu0
  %1436 = vmatprep.mubr.f32.mxu0 0.0
  %1437 = vmatmul.mubr.f32.gmra.mrb[0].mxu0 %v1170
  %v1438 = vpop.f32.mrb[0].mxu0
  %v1439 = vadd.f32 %v1226, %v1438
  %v1440 = vpop.f32.mrb[0].mxu0
  %1441 = vmatprep.mubr.f32.mxu0 0.0
  %1442 = vmatmul.mubr.f32.gmra.mrb[0].mxu0 %v1171
  %v1443 = vpop.f32.mrb[0].mxu0
  %v1444 = vadd.f32 %v1226, %v1443
  %v1445 = vpop.f32.mrb[0].mxu0
  %1446 = vmatprep.mubr.f32.mxu0 0.0
  %1447 = vmatmul.mubr.f32.gmra.mrb[0].mxu0 %v1172
  %v1448 = vpop.f32.mrb[0].mxu0
  %v1449 = vadd.f32 %v1226, %v1448
  %v1450 = vpop.f32.mrb[0].mxu0
  %1451 = vmatprep.mubr.f32.mxu0 0.0
  %1452 = vmatmul.mubr.f32.gmra.mrb[0].mxu0 %v1173
  %v1453 = vpop.f32.mrb[0].mxu0
  %v1454 = vadd.f32 %v1226, %v1453
  %v1455 = vpop.f32.mrb[0].mxu0
  %1456 = vmatprep.mubr.f32.mxu0 0.0
  %1457 = vmatmul.mubr.f32.gmra.mrb[0].mxu0 %v1174
  %v1458 = vpop.f32.mrb[0].mxu0
  %v1459 = vadd.f32 %v1226, %v1458
  %v1460 = vpop.f32.mrb[0].mxu0
  %1461 = vmatprep.mubr.f32.mxu0 0.0
  %1462 = vmatmul.mubr.f32.gmra.mrb[0].mxu0 %v1175
  %v1463 = vpop.f32.mrb[0].mxu0
  %v1464 = vadd.f32 %v1226, %v1463
  %v1465 = vpop.f32.mrb[0].mxu0
  %1466 = vmatprep.mubr.f32.mxu0 0.0
  %1467 = vmatmul.mubr.f32.gmra.mrb[0].mxu0 %v1176
  %v1468 = vpop.f32.mrb[0].mxu0
  %v1469 = vadd.f32 %v1226, %v1468
  %v1470 = vpop.f32.mrb[0].mxu0
  %1471 = vmatprep.mubr.f32.mxu0 0.0
  %1472 = vmatmul.mubr.f32.gmra.mrb[0].mxu0 %v1177
  %v1473 = vpop.f32.mrb[0].mxu0
  %v1474 = vadd.f32 %v1226, %v1473
  %v1475 = vpop.f32.mrb[0].mxu0
  %1476 = vmatprep.mubr.f32.mxu0 0.0
  %1477 = vmatmul.mubr.f32.gmra.mrb[0].mxu0 %v1178
  %v1478 = vpop.f32.mrb[0].mxu0
  %v1479 = vadd.f32 %v1226, %v1478
  %v1480 = vpop.f32.mrb[0].mxu0
  %1481 = vmatprep.mubr.f32.mxu0 0.0
  %1482 = vmatmul.mubr.f32.gmra.mrb[0].mxu0 %v1179
  %v1483 = vpop.f32.mrb[0].mxu0
  %v1484 = vadd.f32 %v1226, %v1483
  %v1485 = vpop.f32.mrb[0].mxu0
  %1486 = vmatprep.mubr.f32.mxu0 0.0
  %1487 = vmatmul.mubr.f32.gmra.mrb[0].mxu0 %v1180
  %v1488 = vpop.f32.mrb[0].mxu0
  %v1489 = vadd.f32 %v1226, %v1488
  %v1490 = vpop.f32.mrb[0].mxu0
  %1491 = vmatprep.mubr.f32.mxu0 0.0
  %1492 = vmatmul.mubr.f32.gmra.mrb[0].mxu0 %v1181
  %v1493 = vpop.f32.mrb[0].mxu0
  %v1494 = vadd.f32 %v1226, %v1493
  %v1495 = vpop.f32.mrb[0].mxu0
  %1496 = vmatprep.mubr.f32.mxu0 0.0
  %1497 = vmatmul.mubr.f32.gmra.mrb[0].mxu0 %v1182
  %v1498 = vpop.f32.mrb[0].mxu0
  %v1499 = vadd.f32 %v1226, %v1498
  %v1500 = vpop.f32.mrb[0].mxu0
  %1501 = vmatprep.mubr.f32.mxu0 0.0
  %1502 = vmatmul.mubr.f32.gmra.mrb[0].mxu0 %v1183
  %v1503 = vpop.f32.mrb[0].mxu0
  %v1504 = vadd.f32 %v1226, %v1503
  %v1505 = vpop.f32.mrb[0].mxu0
  %1506 = vmatprep.mubr.f32.mxu0 0.0
  %1507 = vmatmul.mubr.f32.gmra.mrb[0].mxu0 %v1184
  %v1508 = vpop.f32.mrb[0].mxu0
  %v1509 = vadd.f32 %v1226, %v1508
  %v1510 = vpop.f32.mrb[0].mxu0
  %1511 = vmatprep.mubr.f32.mxu0 0.0
  %1512 = vmatmul.mubr.f32.gmra.mrb[0].mxu0 %v1185
  %v1513 = vpop.f32.mrb[0].mxu0
  %v1514 = vadd.f32 %v1226, %v1513
  %v1515 = vpop.f32.mrb[0].mxu0
  %1516 = vmatprep.mubr.f32.mxu0 0.0
  %1517 = vmatmul.mubr.f32.gmra.mrb[0].mxu0 %v1186
  %v1518 = vpop.f32.mrb[0].mxu0
  %v1519 = vadd.f32 %v1226, %v1518
  %v1520 = vpop.f32.mrb[0].mxu0
  %1521 = vmatprep.mubr.f32.mxu0 0.0
  %1522 = vmatmul.mubr.f32.gmra.mrb[0].mxu0 %v1187
  %v1523 = vpop.f32.mrb[0].mxu0
  %v1524 = vadd.f32 %v1226, %v1523
  %v1525 = vpop.f32.mrb[0].mxu0
  %1526 = vmatprep.mubr.f32.mxu0 0.0
  %1527 = vmatmul.mubr.f32.gmra.mrb[0].mxu0 %v1188
  %v1528 = vpop.f32.mrb[0].mxu0
  %v1529 = vadd.f32 %v1226, %v1528
  %v1530 = vpop.f32.mrb[0].mxu0
  %1531 = vmatprep.mubr.f32.mxu0 0.0
  %1532 = vmatmul.mubr.f32.gmra.mrb[0].mxu0 %v1189
  %v1533 = vpop.f32.mrb[0].mxu0
  %v1534 = vadd.f32 %v1226, %v1533
  %v1535 = vpop.f32.mrb[0].mxu0
  %1536 = vmatprep.mubr.f32.mxu0 0.0
  %1537 = vmatmul.mubr.f32.gmra.mrb[0].mxu0 %v1190
  %v1538 = vpop.f32.mrb[0].mxu0
  %v1539 = vadd.f32 %v1226, %v1538
  %v1540 = vpop.f32.mrb[0].mxu0
  %1541 = vmatprep.mubr.f32.mxu0 0.0
  %1542 = vmatmul.mubr.f32.gmra.mrb[0].mxu0 %v1191
  %v1543 = vpop.f32.mrb[0].mxu0
  %v1544 = vadd.f32 %v1226, %v1543
  %v1545 = vpop.f32.mrb[0].mxu0
  %1546 = vmatprep.mubr.f32.mxu0 0.0
  %1547 = vmatmul.mubr.f32.gmra.mrb[0].mxu0 %v1192
  %v1548 = vpop.f32.mrb[0].mxu0
  %v1549 = vadd.f32 %v1226, %v1548
  %v1550 = vpop.f32.mrb[0].mxu0
  %1551 = vmatprep.mubr.f32.mxu0 0.0
  %1552 = vmatmul.mubr.f32.gmra.mrb[0].mxu0 %v1193
  %v1553 = vpop.f32.mrb[0].mxu0
  %v1554 = vadd.f32 %v1226, %v1553
  %v1555 = vpop.f32.mrb[0].mxu0
  %1556 = vmatprep.mubr.f32.mxu0 0.0
  %1557 = vmatmul.mubr.f32.gmra.mrb[0].mxu0 %v1194
  %v1558 = vpop.f32.mrb[0].mxu0
  %v1559 = vadd.f32 %v1226, %v1558
  %v1560 = vpop.f32.mrb[0].mxu0
  %1561 = vmatprep.mubr.f32.mxu0 0.0
  %1562 = vmatmul.mubr.f32.gmra.mrb[0].mxu0 %v1195
  %v1563 = vpop.f32.mrb[0].mxu0
  %v1564 = vadd.f32 %v1226, %v1563
  %v1565 = vpop.f32.mrb[0].mxu0
  %1566 = vmatprep.mubr.f32.mxu0 0.0
  %1567 = vmatmul.mubr.f32.gmra.mrb[0].mxu0 %v1196
  %v1568 = vpop.f32.mrb[0].mxu0
  %v1569 = vadd.f32 %v1226, %v1568
  %v1570 = vpop.f32.mrb[0].mxu0
  %1571 = vmatprep.mubr.f32.mxu0 0.0
  %1572 = vmatmul.mubr.f32.gmra.mrb[0].mxu0 %v1197
  %v1573 = vpop.f32.mrb[0].mxu0
  %v1574 = vadd.f32 %v1226, %v1573
  %v1575 = vpop.f32.mrb[0].mxu0
  %1576 = vmatprep.mubr.f32.mxu0 0.0
  %1577 = vmatmul.mubr.f32.gmra.mrb[0].mxu0 %v1198
  %v1578 = vpop.f32.mrb[0].mxu0
  %v1579 = vadd.f32 %v1226, %v1578
  %v1580 = vpop.f32.mrb[0].mxu0
  %1581 = vmatprep.mubr.f32.mxu0 0.0
  %1582 = vmatmul.mubr.f32.gmra.mrb[0].mxu0 %v1199
  %v1583 = vpop.f32.mrb[0].mxu0
  %v1584 = vadd.f32 %v1226, %v1583
  %v1585 = vpop.f32.mrb[0].mxu0
  %1586 = vmatprep.mubr.f32.mxu0 0.0
  %1587 = vmatmul.mubr.f32.gmra.mrb[0].mxu0 %v1200
  %v1588 = vpop.f32.mrb[0].mxu0
  %v1589 = vadd.f32 %v1226, %v1588
  %v1590 = vpop.f32.mrb[0].mxu0
  %1591 = vmatprep.mubr.f32.mxu0 0.0
  %1592 = vmatmul.mubr.f32.gmra.mrb[0].mxu0 %v1201
  %v1593 = vpop.f32.mrb[0].mxu0
  %v1594 = vadd.f32 %v1226, %v1593
  %v1595 = vpop.f32.mrb[0].mxu0
  %1596 = vmatprep.mubr.f32.mxu0 0.0
  %1597 = vmatmul.mubr.f32.gmra.mrb[0].mxu0 %v1202
  %v1598 = vpop.f32.mrb[0].mxu0
  %v1599 = vadd.f32 %v1226, %v1598
  %v1600 = vpop.f32.mrb[0].mxu0
  %1601 = vmatprep.mubr.f32.mxu0 0.0
  %1602 = vmatmul.mubr.f32.gmra.mrb[0].mxu0 %v1203
  %v1603 = vpop.f32.mrb[0].mxu0
  %v1604 = vadd.f32 %v1226, %v1603
  %v1605 = vpop.f32.mrb[0].mxu0
  %1606 = vmatprep.mubr.f32.mxu0 0.0
  %1607 = vmatmul.mubr.f32.gmra.mrb[0].mxu0 %v1204
  %v1608 = vpop.f32.mrb[0].mxu0
  %v1609 = vadd.f32 %v1226, %v1608
  %v1610 = vpop.f32.mrb[0].mxu0
  %1611 = vdwg.mxu0
  %s1612 = scalar_lea.vmem %s2, 256
  %v1613 = vld [vmem:[%s1612] sm:$0xff]
  %v1614 = vld [vmem:[%s1612 + $0x8] sm:$0xff]
  %v1615 = vld [vmem:[%s1612 + $0x10] sm:$0xff]
  %v1616 = vld [vmem:[%s1612 + $0x18] sm:$0xff]
  %v1617 = vld [vmem:[%s1612 + $0x20] sm:$0xff]
  %v1618 = vld [vmem:[%s1612 + $0x28] sm:$0xff]
  %v1619 = vld [vmem:[%s1612 + $0x30] sm:$0xff]
  %v1620 = vld [vmem:[%s1612 + $0x38] sm:$0xff]
  %v1621 = vld [vmem:[%s1612 + $0x40] sm:$0xff]
  %v1622 = vld [vmem:[%s1612 + $0x48] sm:$0xff]
  %v1623 = vld [vmem:[%s1612 + $0x50] sm:$0xff]
  %v1624 = vld [vmem:[%s1612 + $0x58] sm:$0xff]
  %v1625 = vld [vmem:[%s1612 + $0x60] sm:$0xff]
  %v1626 = vld [vmem:[%s1612 + $0x68] sm:$0xff]
  %v1627 = vld [vmem:[%s1612 + $0x70] sm:$0xff]
  %v1628 = vld [vmem:[%s1612 + $0x78] sm:$0xff]
  %v1629 = vld [vmem:[%s3 + $0x3] sm:$0x1]
  %v1630 = vlaneseq
  %v1631 = vshrl.u32 %v1630, 7
  %v1632 = vsub.s32 0, %v1631
  %v1633 = vrot.slane %v1629, %v1632
  %1634 = vmatprep.subr.mxu0 0.0
  %1635 = vmatpush1.msra.mxu0 %v1613
  %1636 = vmatprep.subr.mxu0 0.0
  %1637 = vmatpush1.msra.mxu0 %v1614
  %1638 = vmatprep.subr.mxu0 0.0
  %1639 = vmatpush1.msra.mxu0 %v1615
  %1640 = vmatprep.subr.mxu0 0.0
  %1641 = vmatpush1.msra.mxu0 %v1616
  %1642 = vmatprep.subr.mxu0 0.0
  %1643 = vmatpush1.msra.mxu0 %v1617
  %1644 = vmatprep.subr.mxu0 0.0
  %1645 = vmatpush1.msra.mxu0 %v1618
  %1646 = vmatprep.subr.mxu0 0.0
  %1647 = vmatpush1.msra.mxu0 %v1619
  %1648 = vmatprep.subr.mxu0 0.0
  %1649 = vmatpush1.msra.mxu0 %v1620
  %1650 = vmatprep.subr.mxu0 0.0
  %1651 = vmatpush1.msra.mxu0 %v1621
  %1652 = vmatprep.subr.mxu0 0.0
  %1653 = vmatpush1.msra.mxu0 %v1622
  %1654 = vmatprep.subr.mxu0 0.0
  %1655 = vmatpush1.msra.mxu0 %v1623
  %1656 = vmatprep.subr.mxu0 0.0
  %1657 = vmatpush1.msra.mxu0 %v1624
  %1658 = vmatprep.subr.mxu0 0.0
  %1659 = vmatpush1.msra.mxu0 %v1625
  %1660 = vmatprep.subr.mxu0 0.0
  %1661 = vmatpush1.msra.mxu0 %v1626
  %1662 = vmatprep.subr.mxu0 0.0
  %1663 = vmatpush1.msra.mxu0 %v1627
  %1664 = vmatprep.subr.mxu0 0.0
  %1665 = vmatpush1.msra.mxu0 %v1628
  %1666 = vmatprep.subr.mxu0 0.0
  %1667 = vmatpush1.msra.mxu0 0.0
  %1668 = vmatprep.subr.mxu0 0.0
  %1669 = vmatpush1.msra.mxu0 0.0
  %1670 = vmatprep.subr.mxu0 0.0
  %1671 = vmatpush1.msra.mxu0 0.0
  %1672 = vmatprep.subr.mxu0 0.0
  %1673 = vmatpush1.msra.mxu0 0.0
  %1674 = vmatprep.subr.mxu0 0.0
  %1675 = vmatpush1.msra.mxu0 0.0
  %1676 = vmatprep.subr.mxu0 0.0
  %1677 = vmatpush1.msra.mxu0 0.0
  %1678 = vmatprep.subr.mxu0 0.0
  %1679 = vmatpush1.msra.mxu0 0.0
  %1680 = vmatprep.subr.mxu0 0.0
  %1681 = vmatpush1.msra.mxu0 0.0
  %1682 = vmatprep.subr.mxu0 0.0
  %1683 = vmatpush1.msra.mxu0 0.0
  %1684 = vmatprep.subr.mxu0 0.0
  %1685 = vmatpush1.msra.mxu0 0.0
  %1686 = vmatprep.subr.mxu0 0.0
  %1687 = vmatpush1.msra.mxu0 0.0
  %1688 = vmatprep.subr.mxu0 0.0
  %1689 = vmatpush1.msra.mxu0 0.0
  %1690 = vmatprep.subr.mxu0 0.0
  %1691 = vmatpush1.msra.mxu0 0.0
  %1692 = vmatprep.subr.mxu0 0.0
  %1693 = vmatpush1.msra.mxu0 0.0
  %1694 = vmatprep.subr.mxu0 0.0
  %1695 = vmatpush1.msra.mxu0 0.0
  %1696 = vmatprep.subr.mxu0 0.0
  %1697 = vmatpush1.msra.mxu0 0.0
  %1698 = vmatprep.mubr.f32.mxu0 0.0
  %1699 = vmatmul.mubr.f32.gmra.mrb[0].mxu0 %v1294
  %v1700 = vpop.f32.mrb[0].mxu0
  %v1701 = vadd.f32 %v1633, %v1700
  %v1702 = vpop.f32.mrb[0].mxu0
  %1703 = vmatprep.mubr.f32.mxu0 0.0
  %1704 = vmatmul.mubr.f32.gmra.mrb[0].mxu0 %v1299
  %v1705 = vpop.f32.mrb[0].mxu0
  %v1706 = vadd.f32 %v1633, %v1705
  %v1707 = vpop.f32.mrb[0].mxu0
  %1708 = vmatprep.mubr.f32.mxu0 0.0
  %1709 = vmatmul.mubr.f32.gmra.mrb[0].mxu0 %v1304
  %v1710 = vpop.f32.mrb[0].mxu0
  %v1711 = vadd.f32 %v1633, %v1710
  %v1712 = vpop.f32.mrb[0].mxu0
  %1713 = vmatprep.mubr.f32.mxu0 0.0
  %1714 = vmatmul.mubr.f32.gmra.mrb[0].mxu0 %v1309
  %v1715 = vpop.f32.mrb[0].mxu0
  %v1716 = vadd.f32 %v1633, %v1715
  %v1717 = vpop.f32.mrb[0].mxu0
  %1718 = vmatprep.mubr.f32.mxu0 0.0
  %1719 = vmatmul.mubr.f32.gmra.mrb[0].mxu0 %v1314
  %v1720 = vpop.f32.mrb[0].mxu0
  %v1721 = vadd.f32 %v1633, %v1720
  %v1722 = vpop.f32.mrb[0].mxu0
  %1723 = vmatprep.mubr.f32.mxu0 0.0
  %1724 = vmatmul.mubr.f32.gmra.mrb[0].mxu0 %v1319
  %v1725 = vpop.f32.mrb[0].mxu0
  %v1726 = vadd.f32 %v1633, %v1725
  %v1727 = vpop.f32.mrb[0].mxu0
  %1728 = vmatprep.mubr.f32.mxu0 0.0
  %1729 = vmatmul.mubr.f32.gmra.mrb[0].mxu0 %v1324
  %v1730 = vpop.f32.mrb[0].mxu0
  %v1731 = vadd.f32 %v1633, %v1730
  %v1732 = vpop.f32.mrb[0].mxu0
  %1733 = vmatprep.mubr.f32.mxu0 0.0
  %1734 = vmatmul.mubr.f32.gmra.mrb[0].mxu0 %v1329
  %v1735 = vpop.f32.mrb[0].mxu0
  %v1736 = vadd.f32 %v1633, %v1735
  %v1737 = vpop.f32.mrb[0].mxu0
  %1738 = vmatprep.mubr.f32.mxu0 0.0
  %1739 = vmatmul.mubr.f32.gmra.mrb[0].mxu0 %v1334
  %v1740 = vpop.f32.mrb[0].mxu0
  %v1741 = vadd.f32 %v1633, %v1740
  %v1742 = vpop.f32.mrb[0].mxu0
  %1743 = vmatprep.mubr.f32.mxu0 0.0
  %1744 = vmatmul.mubr.f32.gmra.mrb[0].mxu0 %v1339
  %v1745 = vpop.f32.mrb[0].mxu0
  %v1746 = vadd.f32 %v1633, %v1745
  %v1747 = vpop.f32.mrb[0].mxu0
  %1748 = vmatprep.mubr.f32.mxu0 0.0
  %1749 = vmatmul.mubr.f32.gmra.mrb[0].mxu0 %v1344
  %v1750 = vpop.f32.mrb[0].mxu0
  %v1751 = vadd.f32 %v1633, %v1750
  %v1752 = vpop.f32.mrb[0].mxu0
  %1753 = vmatprep.mubr.f32.mxu0 0.0
  %1754 = vmatmul.mubr.f32.gmra.mrb[0].mxu0 %v1349
  %v1755 = vpop.f32.mrb[0].mxu0
  %v1756 = vadd.f32 %v1633, %v1755
  %v1757 = vpop.f32.mrb[0].mxu0
  %1758 = vmatprep.mubr.f32.mxu0 0.0
  %1759 = vmatmul.mubr.f32.gmra.mrb[0].mxu0 %v1354
  %v1760 = vpop.f32.mrb[0].mxu0
  %v1761 = vadd.f32 %v1633, %v1760
  %v1762 = vpop.f32.mrb[0].mxu0
  %1763 = vmatprep.mubr.f32.mxu0 0.0
  %1764 = vmatmul.mubr.f32.gmra.mrb[0].mxu0 %v1359
  %v1765 = vpop.f32.mrb[0].mxu0
  %v1766 = vadd.f32 %v1633, %v1765
  %v1767 = vpop.f32.mrb[0].mxu0
  %1768 = vmatprep.mubr.f32.mxu0 0.0
  %1769 = vmatmul.mubr.f32.gmra.mrb[0].mxu0 %v1364
  %v1770 = vpop.f32.mrb[0].mxu0
  %v1771 = vadd.f32 %v1633, %v1770
  %v1772 = vpop.f32.mrb[0].mxu0
  %1773 = vmatprep.mubr.f32.mxu0 0.0
  %1774 = vmatmul.mubr.f32.gmra.mrb[0].mxu0 %v1369
  %v1775 = vpop.f32.mrb[0].mxu0
  %v1776 = vadd.f32 %v1633, %v1775
  %v1777 = vpop.f32.mrb[0].mxu0
  %1778 = vmatprep.mubr.f32.mxu0 0.0
  %1779 = vmatmul.mubr.f32.gmra.mrb[0].mxu0 %v1374
  %v1780 = vpop.f32.mrb[0].mxu0
  %v1781 = vadd.f32 %v1633, %v1780
  %v1782 = vpop.f32.mrb[0].mxu0
  %1783 = vmatprep.mubr.f32.mxu0 0.0
  %1784 = vmatmul.mubr.f32.gmra.mrb[0].mxu0 %v1379
  %v1785 = vpop.f32.mrb[0].mxu0
  %v1786 = vadd.f32 %v1633, %v1785
  %v1787 = vpop.f32.mrb[0].mxu0
  %1788 = vmatprep.mubr.f32.mxu0 0.0
  %1789 = vmatmul.mubr.f32.gmra.mrb[0].mxu0 %v1384
  %v1790 = vpop.f32.mrb[0].mxu0
  %v1791 = vadd.f32 %v1633, %v1790
  %v1792 = vpop.f32.mrb[0].mxu0
  %1793 = vmatprep.mubr.f32.mxu0 0.0
  %1794 = vmatmul.mubr.f32.gmra.mrb[0].mxu0 %v1389
  %v1795 = vpop.f32.mrb[0].mxu0
  %v1796 = vadd.f32 %v1633, %v1795
  %v1797 = vpop.f32.mrb[0].mxu0
  %1798 = vmatprep.mubr.f32.mxu0 0.0
  %1799 = vmatmul.mubr.f32.gmra.mrb[0].mxu0 %v1394
  %v1800 = vpop.f32.mrb[0].mxu0
  %v1801 = vadd.f32 %v1633, %v1800
  %v1802 = vpop.f32.mrb[0].mxu0
  %1803 = vmatprep.mubr.f32.mxu0 0.0
  %1804 = vmatmul.mubr.f32.gmra.mrb[0].mxu0 %v1399
  %v1805 = vpop.f32.mrb[0].mxu0
  %v1806 = vadd.f32 %v1633, %v1805
  %v1807 = vpop.f32.mrb[0].mxu0
  %1808 = vmatprep.mubr.f32.mxu0 0.0
  %1809 = vmatmul.mubr.f32.gmra.mrb[0].mxu0 %v1404
  %v1810 = vpop.f32.mrb[0].mxu0
  %v1811 = vadd.f32 %v1633, %v1810
  %v1812 = vpop.f32.mrb[0].mxu0
  %1813 = vmatprep.mubr.f32.mxu0 0.0
  %1814 = vmatmul.mubr.f32.gmra.mrb[0].mxu0 %v1409
  %v1815 = vpop.f32.mrb[0].mxu0
  %v1816 = vadd.f32 %v1633, %v1815
  %v1817 = vpop.f32.mrb[0].mxu0
  %1818 = vmatprep.mubr.f32.mxu0 0.0
  %1819 = vmatmul.mubr.f32.gmra.mrb[0].mxu0 %v1414
  %v1820 = vpop.f32.mrb[0].mxu0
  %v1821 = vadd.f32 %v1633, %v1820
  %v1822 = vpop.f32.mrb[0].mxu0
  %1823 = vmatprep.mubr.f32.mxu0 0.0
  %1824 = vmatmul.mubr.f32.gmra.mrb[0].mxu0 %v1419
  %v1825 = vpop.f32.mrb[0].mxu0
  %v1826 = vadd.f32 %v1633, %v1825
  %v1827 = vpop.f32.mrb[0].mxu0
  %1828 = vmatprep.mubr.f32.mxu0 0.0
  %1829 = vmatmul.mubr.f32.gmra.mrb[0].mxu0 %v1424
  %v1830 = vpop.f32.mrb[0].mxu0
  %v1831 = vadd.f32 %v1633, %v1830
  %v1832 = vpop.f32.mrb[0].mxu0
  %1833 = vmatprep.mubr.f32.mxu0 0.0
  %1834 = vmatmul.mubr.f32.gmra.mrb[0].mxu0 %v1429
  %v1835 = vpop.f32.mrb[0].mxu0
  %v1836 = vadd.f32 %v1633, %v1835
  %v1837 = vpop.f32.mrb[0].mxu0
  %1838 = vmatprep.mubr.f32.mxu0 0.0
  %1839 = vmatmul.mubr.f32.gmra.mrb[0].mxu0 %v1434
  %v1840 = vpop.f32.mrb[0].mxu0
  %v1841 = vadd.f32 %v1633, %v1840
  %v1842 = vpop.f32.mrb[0].mxu0
  %1843 = vmatprep.mubr.f32.mxu0 0.0
  %1844 = vmatmul.mubr.f32.gmra.mrb[0].mxu0 %v1439
  %v1845 = vpop.f32.mrb[0].mxu0
  %v1846 = vadd.f32 %v1633, %v1845
  %v1847 = vpop.f32.mrb[0].mxu0
  %1848 = vmatprep.mubr.f32.mxu0 0.0
  %1849 = vmatmul.mubr.f32.gmra.mrb[0].mxu0 %v1444
  %v1850 = vpop.f32.mrb[0].mxu0
  %v1851 = vadd.f32 %v1633, %v1850
  %v1852 = vpop.f32.mrb[0].mxu0
  %1853 = vmatprep.mubr.f32.mxu0 0.0
  %1854 = vmatmul.mubr.f32.gmra.mrb[0].mxu0 %v1449
  %v1855 = vpop.f32.mrb[0].mxu0
  %v1856 = vadd.f32 %v1633, %v1855
  %v1857 = vpop.f32.mrb[0].mxu0
  %1858 = vmatprep.mubr.f32.mxu0 0.0
  %1859 = vmatmul.mubr.f32.gmra.mrb[0].mxu0 %v1454
  %v1860 = vpop.f32.mrb[0].mxu0
  %v1861 = vadd.f32 %v1633, %v1860
  %v1862 = vpop.f32.mrb[0].mxu0
  %1863 = vmatprep.mubr.f32.mxu0 0.0
  %1864 = vmatmul.mubr.f32.gmra.mrb[0].mxu0 %v1459
  %v1865 = vpop.f32.mrb[0].mxu0
  %v1866 = vadd.f32 %v1633, %v1865
  %v1867 = vpop.f32.mrb[0].mxu0
  %1868 = vmatprep.mubr.f32.mxu0 0.0
  %1869 = vmatmul.mubr.f32.gmra.mrb[0].mxu0 %v1464
  %v1870 = vpop.f32.mrb[0].mxu0
  %v1871 = vadd.f32 %v1633, %v1870
  %v1872 = vpop.f32.mrb[0].mxu0
  %1873 = vmatprep.mubr.f32.mxu0 0.0
  %1874 = vmatmul.mubr.f32.gmra.mrb[0].mxu0 %v1469
  %v1875 = vpop.f32.mrb[0].mxu0
  %v1876 = vadd.f32 %v1633, %v1875
  %v1877 = vpop.f32.mrb[0].mxu0
  %1878 = vmatprep.mubr.f32.mxu0 0.0
  %1879 = vmatmul.mubr.f32.gmra.mrb[0].mxu0 %v1474
  %v1880 = vpop.f32.mrb[0].mxu0
  %v1881 = vadd.f32 %v1633, %v1880
  %v1882 = vpop.f32.mrb[0].mxu0
  %1883 = vmatprep.mubr.f32.mxu0 0.0
  %1884 = vmatmul.mubr.f32.gmra.mrb[0].mxu0 %v1479
  %v1885 = vpop.f32.mrb[0].mxu0
  %v1886 = vadd.f32 %v1633, %v1885
  %v1887 = vpop.f32.mrb[0].mxu0
  %1888 = vmatprep.mubr.f32.mxu0 0.0
  %1889 = vmatmul.mubr.f32.gmra.mrb[0].mxu0 %v1484
  %v1890 = vpop.f32.mrb[0].mxu0
  %v1891 = vadd.f32 %v1633, %v1890
  %v1892 = vpop.f32.mrb[0].mxu0
  %1893 = vmatprep.mubr.f32.mxu0 0.0
  %1894 = vmatmul.mubr.f32.gmra.mrb[0].mxu0 %v1489
  %v1895 = vpop.f32.mrb[0].mxu0
  %v1896 = vadd.f32 %v1633, %v1895
  %v1897 = vpop.f32.mrb[0].mxu0
  %1898 = vmatprep.mubr.f32.mxu0 0.0
  %1899 = vmatmul.mubr.f32.gmra.mrb[0].mxu0 %v1494
  %v1900 = vpop.f32.mrb[0].mxu0
  %v1901 = vadd.f32 %v1633, %v1900
  %v1902 = vpop.f32.mrb[0].mxu0
  %1903 = vmatprep.mubr.f32.mxu0 0.0
  %1904 = vmatmul.mubr.f32.gmra.mrb[0].mxu0 %v1499
  %v1905 = vpop.f32.mrb[0].mxu0
  %v1906 = vadd.f32 %v1633, %v1905
  %v1907 = vpop.f32.mrb[0].mxu0
  %1908 = vmatprep.mubr.f32.mxu0 0.0
  %1909 = vmatmul.mubr.f32.gmra.mrb[0].mxu0 %v1504
  %v1910 = vpop.f32.mrb[0].mxu0
  %v1911 = vadd.f32 %v1633, %v1910
  %v1912 = vpop.f32.mrb[0].mxu0
  %1913 = vmatprep.mubr.f32.mxu0 0.0
  %1914 = vmatmul.mubr.f32.gmra.mrb[0].mxu0 %v1509
  %v1915 = vpop.f32.mrb[0].mxu0
  %v1916 = vadd.f32 %v1633, %v1915
  %v1917 = vpop.f32.mrb[0].mxu0
  %1918 = vmatprep.mubr.f32.mxu0 0.0
  %1919 = vmatmul.mubr.f32.gmra.mrb[0].mxu0 %v1514
  %v1920 = vpop.f32.mrb[0].mxu0
  %v1921 = vadd.f32 %v1633, %v1920
  %v1922 = vpop.f32.mrb[0].mxu0
  %1923 = vmatprep.mubr.f32.mxu0 0.0
  %1924 = vmatmul.mubr.f32.gmra.mrb[0].mxu0 %v1519
  %v1925 = vpop.f32.mrb[0].mxu0
  %v1926 = vadd.f32 %v1633, %v1925
  %v1927 = vpop.f32.mrb[0].mxu0
  %1928 = vmatprep.mubr.f32.mxu0 0.0
  %1929 = vmatmul.mubr.f32.gmra.mrb[0].mxu0 %v1524
  %v1930 = vpop.f32.mrb[0].mxu0
  %v1931 = vadd.f32 %v1633, %v1930
  %v1932 = vpop.f32.mrb[0].mxu0
  %1933 = vmatprep.mubr.f32.mxu0 0.0
  %1934 = vmatmul.mubr.f32.gmra.mrb[0].mxu0 %v1529
  %v1935 = vpop.f32.mrb[0].mxu0
  %v1936 = vadd.f32 %v1633, %v1935
  %v1937 = vpop.f32.mrb[0].mxu0
  %1938 = vmatprep.mubr.f32.mxu0 0.0
  %1939 = vmatmul.mubr.f32.gmra.mrb[0].mxu0 %v1534
  %v1940 = vpop.f32.mrb[0].mxu0
  %v1941 = vadd.f32 %v1633, %v1940
  %v1942 = vpop.f32.mrb[0].mxu0
  %1943 = vmatprep.mubr.f32.mxu0 0.0
  %1944 = vmatmul.mubr.f32.gmra.mrb[0].mxu0 %v1539
  %v1945 = vpop.f32.mrb[0].mxu0
  %v1946 = vadd.f32 %v1633, %v1945
  %v1947 = vpop.f32.mrb[0].mxu0
  %1948 = vmatprep.mubr.f32.mxu0 0.0
  %1949 = vmatmul.mubr.f32.gmra.mrb[0].mxu0 %v1544
  %v1950 = vpop.f32.mrb[0].mxu0
  %v1951 = vadd.f32 %v1633, %v1950
  %v1952 = vpop.f32.mrb[0].mxu0
  %1953 = vmatprep.mubr.f32.mxu0 0.0
  %1954 = vmatmul.mubr.f32.gmra.mrb[0].mxu0 %v1549
  %v1955 = vpop.f32.mrb[0].mxu0
  %v1956 = vadd.f32 %v1633, %v1955
  %v1957 = vpop.f32.mrb[0].mxu0
  %1958 = vmatprep.mubr.f32.mxu0 0.0
  %1959 = vmatmul.mubr.f32.gmra.mrb[0].mxu0 %v1554
  %v1960 = vpop.f32.mrb[0].mxu0
  %v1961 = vadd.f32 %v1633, %v1960
  %v1962 = vpop.f32.mrb[0].mxu0
  %1963 = vmatprep.mubr.f32.mxu0 0.0
  %1964 = vmatmul.mubr.f32.gmra.mrb[0].mxu0 %v1559
  %v1965 = vpop.f32.mrb[0].mxu0
  %v1966 = vadd.f32 %v1633, %v1965
  %v1967 = vpop.f32.mrb[0].mxu0
  %1968 = vmatprep.mubr.f32.mxu0 0.0
  %1969 = vmatmul.mubr.f32.gmra.mrb[0].mxu0 %v1564
  %v1970 = vpop.f32.mrb[0].mxu0
  %v1971 = vadd.f32 %v1633, %v1970
  %v1972 = vpop.f32.mrb[0].mxu0
  %1973 = vmatprep.mubr.f32.mxu0 0.0
  %1974 = vmatmul.mubr.f32.gmra.mrb[0].mxu0 %v1569
  %v1975 = vpop.f32.mrb[0].mxu0
  %v1976 = vadd.f32 %v1633, %v1975
  %v1977 = vpop.f32.mrb[0].mxu0
  %1978 = vmatprep.mubr.f32.mxu0 0.0
  %1979 = vmatmul.mubr.f32.gmra.mrb[0].mxu0 %v1574
  %v1980 = vpop.f32.mrb[0].mxu0
  %v1981 = vadd.f32 %v1633, %v1980
  %v1982 = vpop.f32.mrb[0].mxu0
  %1983 = vmatprep.mubr.f32.mxu0 0.0
  %1984 = vmatmul.mubr.f32.gmra.mrb[0].mxu0 %v1579
  %v1985 = vpop.f32.mrb[0].mxu0
  %v1986 = vadd.f32 %v1633, %v1985
  %v1987 = vpop.f32.mrb[0].mxu0
  %1988 = vmatprep.mubr.f32.mxu0 0.0
  %1989 = vmatmul.mubr.f32.gmra.mrb[0].mxu0 %v1584
  %v1990 = vpop.f32.mrb[0].mxu0
  %v1991 = vadd.f32 %v1633, %v1990
  %v1992 = vpop.f32.mrb[0].mxu0
  %1993 = vmatprep.mubr.f32.mxu0 0.0
  %1994 = vmatmul.mubr.f32.gmra.mrb[0].mxu0 %v1589
  %v1995 = vpop.f32.mrb[0].mxu0
  %v1996 = vadd.f32 %v1633, %v1995
  %v1997 = vpop.f32.mrb[0].mxu0
  %1998 = vmatprep.mubr.f32.mxu0 0.0
  %1999 = vmatmul.mubr.f32.gmra.mrb[0].mxu0 %v1594
  %v2000 = vpop.f32.mrb[0].mxu0
  %v2001 = vadd.f32 %v1633, %v2000
  %v2002 = vpop.f32.mrb[0].mxu0
  %2003 = vmatprep.mubr.f32.mxu0 0.0
  %2004 = vmatmul.mubr.f32.gmra.mrb[0].mxu0 %v1599
  %v2005 = vpop.f32.mrb[0].mxu0
  %v2006 = vadd.f32 %v1633, %v2005
  %v2007 = vpop.f32.mrb[0].mxu0
  %2008 = vmatprep.mubr.f32.mxu0 0.0
  %2009 = vmatmul.mubr.f32.gmra.mrb[0].mxu0 %v1604
  %v2010 = vpop.f32.mrb[0].mxu0
  %v2011 = vadd.f32 %v1633, %v2010
  %v2012 = vpop.f32.mrb[0].mxu0
  %2013 = vmatprep.mubr.f32.mxu0 0.0
  %2014 = vmatmul.mubr.f32.gmra.mrb[0].mxu0 %v1609
  %v2015 = vpop.f32.mrb[0].mxu0
  %v2016 = vadd.f32 %v1633, %v2015
  %v2017 = vpop.f32.mrb[0].mxu0
  %2018 = vdwg.mxu0
  %v2019 = vmax.f32 %v1701, 0.0
  %v2020 = vmax.f32 %v1706, 0.0
  %v2021 = vmax.f32 %v1711, 0.0
  %v2022 = vmax.f32 %v1716, 0.0
  %v2023 = vmax.f32 %v1721, 0.0
  %v2024 = vmax.f32 %v1726, 0.0
  %v2025 = vmax.f32 %v1731, 0.0
  %v2026 = vmax.f32 %v1736, 0.0
  %v2027 = vmax.f32 %v1741, 0.0
  %v2028 = vmax.f32 %v1746, 0.0
  %v2029 = vmax.f32 %v1751, 0.0
  %v2030 = vmax.f32 %v1756, 0.0
  %v2031 = vmax.f32 %v1761, 0.0
  %v2032 = vmax.f32 %v1766, 0.0
  %v2033 = vmax.f32 %v1771, 0.0
  %v2034 = vmax.f32 %v1776, 0.0
  %v2035 = vmax.f32 %v1781, 0.0
  %v2036 = vmax.f32 %v1786, 0.0
  %v2037 = vmax.f32 %v1791, 0.0
  %v2038 = vmax.f32 %v1796, 0.0
  %v2039 = vmax.f32 %v1801, 0.0
  %v2040 = vmax.f32 %v1806, 0.0
  %v2041 = vmax.f32 %v1811, 0.0
  %v2042 = vmax.f32 %v1816, 0.0
  %v2043 = vmax.f32 %v1821, 0.0
  %v2044 = vmax.f32 %v1826, 0.0
  %v2045 = vmax.f32 %v1831, 0.0
  %v2046 = vmax.f32 %v1836, 0.0
  %v2047 = vmax.f32 %v1841, 0.0
  %v2048 = vmax.f32 %v1846, 0.0
  %v2049 = vmax.f32 %v1851, 0.0
  %v2050 = vmax.f32 %v1856, 0.0
  %v2051 = vmax.f32 %v1861, 0.0
  %v2052 = vmax.f32 %v1866, 0.0
  %v2053 = vmax.f32 %v1871, 0.0
  %v2054 = vmax.f32 %v1876, 0.0
  %v2055 = vmax.f32 %v1881, 0.0
  %v2056 = vmax.f32 %v1886, 0.0
  %v2057 = vmax.f32 %v1891, 0.0
  %v2058 = vmax.f32 %v1896, 0.0
  %v2059 = vmax.f32 %v1901, 0.0
  %v2060 = vmax.f32 %v1906, 0.0
  %v2061 = vmax.f32 %v1911, 0.0
  %v2062 = vmax.f32 %v1916, 0.0
  %v2063 = vmax.f32 %v1921, 0.0
  %v2064 = vmax.f32 %v1926, 0.0
  %v2065 = vmax.f32 %v1931, 0.0
  %v2066 = vmax.f32 %v1936, 0.0
  %v2067 = vmax.f32 %v1941, 0.0
  %v2068 = vmax.f32 %v1946, 0.0
  %v2069 = vmax.f32 %v1951, 0.0
  %v2070 = vmax.f32 %v1956, 0.0
  %v2071 = vmax.f32 %v1961, 0.0
  %v2072 = vmax.f32 %v1966, 0.0
  %v2073 = vmax.f32 %v1971, 0.0
  %v2074 = vmax.f32 %v1976, 0.0
  %v2075 = vmax.f32 %v1981, 0.0
  %v2076 = vmax.f32 %v1986, 0.0
  %v2077 = vmax.f32 %v1991, 0.0
  %v2078 = vmax.f32 %v1996, 0.0
  %v2079 = vmax.f32 %v2001, 0.0
  %v2080 = vmax.f32 %v2006, 0.0
  %v2081 = vmax.f32 %v2011, 0.0
  %v2082 = vmax.f32 %v2016, 0.0
  %s2083 = scalar_lea.vmem %s2, 384
  %v2084 = vld [vmem:[%s2083] sm:$0xff]
  %v2085 = vld [vmem:[%s2083 + $0x8] sm:$0xff]
  %v2086 = vld [vmem:[%s2083 + $0x10] sm:$0xff]
  %v2087 = vld [vmem:[%s2083 + $0x18] sm:$0xff]
  %v2088 = vld [vmem:[%s2083 + $0x20] sm:$0xff]
  %v2089 = vld [vmem:[%s2083 + $0x28] sm:$0xff]
  %v2090 = vld [vmem:[%s2083 + $0x30] sm:$0xff]
  %v2091 = vld [vmem:[%s2083 + $0x38] sm:$0xff]
  %v2092 = vld [vmem:[%s2083 + $0x40] sm:$0xff]
  %v2093 = vld [vmem:[%s2083 + $0x48] sm:$0xff]
  %v2094 = vld [vmem:[%s2083 + $0x50] sm:$0xff]
  %v2095 = vld [vmem:[%s2083 + $0x58] sm:$0xff]
  %v2096 = vld [vmem:[%s2083 + $0x60] sm:$0xff]
  %v2097 = vld [vmem:[%s2083 + $0x68] sm:$0xff]
  %v2098 = vld [vmem:[%s2083 + $0x70] sm:$0xff]
  %v2099 = vld [vmem:[%s2083 + $0x78] sm:$0xff]
  %v2100 = vld [vmem:[%s3 + $0x4] sm:$0x1]
  %v2101 = vlaneseq
  %v2102 = vshrl.u32 %v2101, 7
  %v2103 = vsub.s32 0, %v2102
  %v2104 = vrot.slane %v2100, %v2103
  %2105 = vmatprep.subr.mxu0 0.0
  %2106 = vmatpush1.msra.mxu0 %v2084
  %2107 = vmatprep.subr.mxu0 0.0
  %2108 = vmatpush1.msra.mxu0 %v2085
  %2109 = vmatprep.subr.mxu0 0.0
  %2110 = vmatpush1.msra.mxu0 %v2086
  %2111 = vmatprep.subr.mxu0 0.0
  %2112 = vmatpush1.msra.mxu0 %v2087
  %2113 = vmatprep.subr.mxu0 0.0
  %2114 = vmatpush1.msra.mxu0 %v2088
  %2115 = vmatprep.subr.mxu0 0.0
  %2116 = vmatpush1.msra.mxu0 %v2089
  %2117 = vmatprep.subr.mxu0 0.0
  %2118 = vmatpush1.msra.mxu0 %v2090
  %2119 = vmatprep.subr.mxu0 0.0
  %2120 = vmatpush1.msra.mxu0 %v2091
  %2121 = vmatprep.subr.mxu0 0.0
  %2122 = vmatpush1.msra.mxu0 %v2092
  %2123 = vmatprep.subr.mxu0 0.0
  %2124 = vmatpush1.msra.mxu0 %v2093
  %2125 = vmatprep.subr.mxu0 0.0
  %2126 = vmatpush1.msra.mxu0 %v2094
  %2127 = vmatprep.subr.mxu0 0.0
  %2128 = vmatpush1.msra.mxu0 %v2095
  %2129 = vmatprep.subr.mxu0 0.0
  %2130 = vmatpush1.msra.mxu0 %v2096
  %2131 = vmatprep.subr.mxu0 0.0
  %2132 = vmatpush1.msra.mxu0 %v2097
  %2133 = vmatprep.subr.mxu0 0.0
  %2134 = vmatpush1.msra.mxu0 %v2098
  %2135 = vmatprep.subr.mxu0 0.0
  %2136 = vmatpush1.msra.mxu0 %v2099
  %2137 = vmatprep.subr.mxu0 0.0
  %2138 = vmatpush1.msra.mxu0 0.0
  %2139 = vmatprep.subr.mxu0 0.0
  %2140 = vmatpush1.msra.mxu0 0.0
  %2141 = vmatprep.subr.mxu0 0.0
  %2142 = vmatpush1.msra.mxu0 0.0
  %2143 = vmatprep.subr.mxu0 0.0
  %2144 = vmatpush1.msra.mxu0 0.0
  %2145 = vmatprep.subr.mxu0 0.0
  %2146 = vmatpush1.msra.mxu0 0.0
  %2147 = vmatprep.subr.mxu0 0.0
  %2148 = vmatpush1.msra.mxu0 0.0
  %2149 = vmatprep.subr.mxu0 0.0
  %2150 = vmatpush1.msra.mxu0 0.0
  %2151 = vmatprep.subr.mxu0 0.0
  %2152 = vmatpush1.msra.mxu0 0.0
  %2153 = vmatprep.subr.mxu0 0.0
  %2154 = vmatpush1.msra.mxu0 0.0
  %2155 = vmatprep.subr.mxu0 0.0
  %2156 = vmatpush1.msra.mxu0 0.0
  %2157 = vmatprep.subr.mxu0 0.0
  %2158 = vmatpush1.msra.mxu0 0.0
  %2159 = vmatprep.subr.mxu0 0.0
  %2160 = vmatpush1.msra.mxu0 0.0
  %2161 = vmatprep.subr.mxu0 0.0
  %2162 = vmatpush1.msra.mxu0 0.0
  %2163 = vmatprep.subr.mxu0 0.0
  %2164 = vmatpush1.msra.mxu0 0.0
  %2165 = vmatprep.subr.mxu0 0.0
  %2166 = vmatpush1.msra.mxu0 0.0
  %2167 = vmatprep.subr.mxu0 0.0
  %2168 = vmatpush1.msra.mxu0 0.0
  %2169 = vmatprep.mubr.f32.mxu0 0.0
  %2170 = vmatmul.mubr.f32.gmra.mrb[0].mxu0 %v2019
  %v2171 = vpop.f32.mrb[0].mxu0
  %v2172 = vadd.f32 %v2104, %v2171
  %v2173 = vpop.f32.mrb[0].mxu0
  %2174 = vmatprep.mubr.f32.mxu0 0.0
  %2175 = vmatmul.mubr.f32.gmra.mrb[0].mxu0 %v2020
  %v2176 = vpop.f32.mrb[0].mxu0
  %v2177 = vadd.f32 %v2104, %v2176
  %v2178 = vpop.f32.mrb[0].mxu0
  %2179 = vmatprep.mubr.f32.mxu0 0.0
  %2180 = vmatmul.mubr.f32.gmra.mrb[0].mxu0 %v2021
  %v2181 = vpop.f32.mrb[0].mxu0
  %v2182 = vadd.f32 %v2104, %v2181
  %v2183 = vpop.f32.mrb[0].mxu0
  %2184 = vmatprep.mubr.f32.mxu0 0.0
  %2185 = vmatmul.mubr.f32.gmra.mrb[0].mxu0 %v2022
  %v2186 = vpop.f32.mrb[0].mxu0
  %v2187 = vadd.f32 %v2104, %v2186
  %v2188 = vpop.f32.mrb[0].mxu0
  %2189 = vmatprep.mubr.f32.mxu0 0.0
  %2190 = vmatmul.mubr.f32.gmra.mrb[0].mxu0 %v2023
  %v2191 = vpop.f32.mrb[0].mxu0
  %v2192 = vadd.f32 %v2104, %v2191
  %v2193 = vpop.f32.mrb[0].mxu0
  %2194 = vmatprep.mubr.f32.mxu0 0.0
  %2195 = vmatmul.mubr.f32.gmra.mrb[0].mxu0 %v2024
  %v2196 = vpop.f32.mrb[0].mxu0
  %v2197 = vadd.f32 %v2104, %v2196
  %v2198 = vpop.f32.mrb[0].mxu0
  %2199 = vmatprep.mubr.f32.mxu0 0.0
  %2200 = vmatmul.mubr.f32.gmra.mrb[0].mxu0 %v2025
  %v2201 = vpop.f32.mrb[0].mxu0
  %v2202 = vadd.f32 %v2104, %v2201
  %v2203 = vpop.f32.mrb[0].mxu0
  %2204 = vmatprep.mubr.f32.mxu0 0.0
  %2205 = vmatmul.mubr.f32.gmra.mrb[0].mxu0 %v2026
  %v2206 = vpop.f32.mrb[0].mxu0
  %v2207 = vadd.f32 %v2104, %v2206
  %v2208 = vpop.f32.mrb[0].mxu0
  %2209 = vmatprep.mubr.f32.mxu0 0.0
  %2210 = vmatmul.mubr.f32.gmra.mrb[0].mxu0 %v2027
  %v2211 = vpop.f32.mrb[0].mxu0
  %v2212 = vadd.f32 %v2104, %v2211
  %v2213 = vpop.f32.mrb[0].mxu0
  %2214 = vmatprep.mubr.f32.mxu0 0.0
  %2215 = vmatmul.mubr.f32.gmra.mrb[0].mxu0 %v2028
  %v2216 = vpop.f32.mrb[0].mxu0
  %v2217 = vadd.f32 %v2104, %v2216
  %v2218 = vpop.f32.mrb[0].mxu0
  %2219 = vmatprep.mubr.f32.mxu0 0.0
  %2220 = vmatmul.mubr.f32.gmra.mrb[0].mxu0 %v2029
  %v2221 = vpop.f32.mrb[0].mxu0
  %v2222 = vadd.f32 %v2104, %v2221
  %v2223 = vpop.f32.mrb[0].mxu0
  %2224 = vmatprep.mubr.f32.mxu0 0.0
  %2225 = vmatmul.mubr.f32.gmra.mrb[0].mxu0 %v2030
  %v2226 = vpop.f32.mrb[0].mxu0
  %v2227 = vadd.f32 %v2104, %v2226
  %v2228 = vpop.f32.mrb[0].mxu0
  %2229 = vmatprep.mubr.f32.mxu0 0.0
  %2230 = vmatmul.mubr.f32.gmra.mrb[0].mxu0 %v2031
  %v2231 = vpop.f32.mrb[0].mxu0
  %v2232 = vadd.f32 %v2104, %v2231
  %v2233 = vpop.f32.mrb[0].mxu0
  %2234 = vmatprep.mubr.f32.mxu0 0.0
  %2235 = vmatmul.mubr.f32.gmra.mrb[0].mxu0 %v2032
  %v2236 = vpop.f32.mrb[0].mxu0
  %v2237 = vadd.f32 %v2104, %v2236
  %v2238 = vpop.f32.mrb[0].mxu0
  %2239 = vmatprep.mubr.f32.mxu0 0.0
  %2240 = vmatmul.mubr.f32.gmra.mrb[0].mxu0 %v2033
  %v2241 = vpop.f32.mrb[0].mxu0
  %v2242 = vadd.f32 %v2104, %v2241
  %v2243 = vpop.f32.mrb[0].mxu0
  %2244 = vmatprep.mubr.f32.mxu0 0.0
  %2245 = vmatmul.mubr.f32.gmra.mrb[0].mxu0 %v2034
  %v2246 = vpop.f32.mrb[0].mxu0
  %v2247 = vadd.f32 %v2104, %v2246
  %v2248 = vpop.f32.mrb[0].mxu0
  %2249 = vmatprep.mubr.f32.mxu0 0.0
  %2250 = vmatmul.mubr.f32.gmra.mrb[0].mxu0 %v2035
  %v2251 = vpop.f32.mrb[0].mxu0
  %v2252 = vadd.f32 %v2104, %v2251
  %v2253 = vpop.f32.mrb[0].mxu0
  %2254 = vmatprep.mubr.f32.mxu0 0.0
  %2255 = vmatmul.mubr.f32.gmra.mrb[0].mxu0 %v2036
  %v2256 = vpop.f32.mrb[0].mxu0
  %v2257 = vadd.f32 %v2104, %v2256
  %v2258 = vpop.f32.mrb[0].mxu0
  %2259 = vmatprep.mubr.f32.mxu0 0.0
  %2260 = vmatmul.mubr.f32.gmra.mrb[0].mxu0 %v2037
  %v2261 = vpop.f32.mrb[0].mxu0
  %v2262 = vadd.f32 %v2104, %v2261
  %v2263 = vpop.f32.mrb[0].mxu0
  %2264 = vmatprep.mubr.f32.mxu0 0.0
  %2265 = vmatmul.mubr.f32.gmra.mrb[0].mxu0 %v2038
  %v2266 = vpop.f32.mrb[0].mxu0
  %v2267 = vadd.f32 %v2104, %v2266
  %v2268 = vpop.f32.mrb[0].mxu0
  %2269 = vmatprep.mubr.f32.mxu0 0.0
  %2270 = vmatmul.mubr.f32.gmra.mrb[0].mxu0 %v2039
  %v2271 = vpop.f32.mrb[0].mxu0
  %v2272 = vadd.f32 %v2104, %v2271
  %v2273 = vpop.f32.mrb[0].mxu0
  %2274 = vmatprep.mubr.f32.mxu0 0.0
  %2275 = vmatmul.mubr.f32.gmra.mrb[0].mxu0 %v2040
  %v2276 = vpop.f32.mrb[0].mxu0
  %v2277 = vadd.f32 %v2104, %v2276
  %v2278 = vpop.f32.mrb[0].mxu0
  %2279 = vmatprep.mubr.f32.mxu0 0.0
  %2280 = vmatmul.mubr.f32.gmra.mrb[0].mxu0 %v2041
  %v2281 = vpop.f32.mrb[0].mxu0
  %v2282 = vadd.f32 %v2104, %v2281
  %v2283 = vpop.f32.mrb[0].mxu0
  %2284 = vmatprep.mubr.f32.mxu0 0.0
  %2285 = vmatmul.mubr.f32.gmra.mrb[0].mxu0 %v2042
  %v2286 = vpop.f32.mrb[0].mxu0
  %v2287 = vadd.f32 %v2104, %v2286
  %v2288 = vpop.f32.mrb[0].mxu0
  %2289 = vmatprep.mubr.f32.mxu0 0.0
  %2290 = vmatmul.mubr.f32.gmra.mrb[0].mxu0 %v2043
  %v2291 = vpop.f32.mrb[0].mxu0
  %v2292 = vadd.f32 %v2104, %v2291
  %v2293 = vpop.f32.mrb[0].mxu0
  %2294 = vmatprep.mubr.f32.mxu0 0.0
  %2295 = vmatmul.mubr.f32.gmra.mrb[0].mxu0 %v2044
  %v2296 = vpop.f32.mrb[0].mxu0
  %v2297 = vadd.f32 %v2104, %v2296
  %v2298 = vpop.f32.mrb[0].mxu0
  %2299 = vmatprep.mubr.f32.mxu0 0.0
  %2300 = vmatmul.mubr.f32.gmra.mrb[0].mxu0 %v2045
  %v2301 = vpop.f32.mrb[0].mxu0
  %v2302 = vadd.f32 %v2104, %v2301
  %v2303 = vpop.f32.mrb[0].mxu0
  %2304 = vmatprep.mubr.f32.mxu0 0.0
  %2305 = vmatmul.mubr.f32.gmra.mrb[0].mxu0 %v2046
  %v2306 = vpop.f32.mrb[0].mxu0
  %v2307 = vadd.f32 %v2104, %v2306
  %v2308 = vpop.f32.mrb[0].mxu0
  %2309 = vmatprep.mubr.f32.mxu0 0.0
  %2310 = vmatmul.mubr.f32.gmra.mrb[0].mxu0 %v2047
  %v2311 = vpop.f32.mrb[0].mxu0
  %v2312 = vadd.f32 %v2104, %v2311
  %v2313 = vpop.f32.mrb[0].mxu0
  %2314 = vmatprep.mubr.f32.mxu0 0.0
  %2315 = vmatmul.mubr.f32.gmra.mrb[0].mxu0 %v2048
  %v2316 = vpop.f32.mrb[0].mxu0
  %v2317 = vadd.f32 %v2104, %v2316
  %v2318 = vpop.f32.mrb[0].mxu0
  %2319 = vmatprep.mubr.f32.mxu0 0.0
  %2320 = vmatmul.mubr.f32.gmra.mrb[0].mxu0 %v2049
  %v2321 = vpop.f32.mrb[0].mxu0
  %v2322 = vadd.f32 %v2104, %v2321
  %v2323 = vpop.f32.mrb[0].mxu0
  %2324 = vmatprep.mubr.f32.mxu0 0.0
  %2325 = vmatmul.mubr.f32.gmra.mrb[0].mxu0 %v2050
  %v2326 = vpop.f32.mrb[0].mxu0
  %v2327 = vadd.f32 %v2104, %v2326
  %v2328 = vpop.f32.mrb[0].mxu0
  %2329 = vmatprep.mubr.f32.mxu0 0.0
  %2330 = vmatmul.mubr.f32.gmra.mrb[0].mxu0 %v2051
  %v2331 = vpop.f32.mrb[0].mxu0
  %v2332 = vadd.f32 %v2104, %v2331
  %v2333 = vpop.f32.mrb[0].mxu0
  %2334 = vmatprep.mubr.f32.mxu0 0.0
  %2335 = vmatmul.mubr.f32.gmra.mrb[0].mxu0 %v2052
  %v2336 = vpop.f32.mrb[0].mxu0
  %v2337 = vadd.f32 %v2104, %v2336
  %v2338 = vpop.f32.mrb[0].mxu0
  %2339 = vmatprep.mubr.f32.mxu0 0.0
  %2340 = vmatmul.mubr.f32.gmra.mrb[0].mxu0 %v2053
  %v2341 = vpop.f32.mrb[0].mxu0
  %v2342 = vadd.f32 %v2104, %v2341
  %v2343 = vpop.f32.mrb[0].mxu0
  %2344 = vmatprep.mubr.f32.mxu0 0.0
  %2345 = vmatmul.mubr.f32.gmra.mrb[0].mxu0 %v2054
  %v2346 = vpop.f32.mrb[0].mxu0
  %v2347 = vadd.f32 %v2104, %v2346
  %v2348 = vpop.f32.mrb[0].mxu0
  %2349 = vmatprep.mubr.f32.mxu0 0.0
  %2350 = vmatmul.mubr.f32.gmra.mrb[0].mxu0 %v2055
  %v2351 = vpop.f32.mrb[0].mxu0
  %v2352 = vadd.f32 %v2104, %v2351
  %v2353 = vpop.f32.mrb[0].mxu0
  %2354 = vmatprep.mubr.f32.mxu0 0.0
  %2355 = vmatmul.mubr.f32.gmra.mrb[0].mxu0 %v2056
  %v2356 = vpop.f32.mrb[0].mxu0
  %v2357 = vadd.f32 %v2104, %v2356
  %v2358 = vpop.f32.mrb[0].mxu0
  %2359 = vmatprep.mubr.f32.mxu0 0.0
  %2360 = vmatmul.mubr.f32.gmra.mrb[0].mxu0 %v2057
  %v2361 = vpop.f32.mrb[0].mxu0
  %v2362 = vadd.f32 %v2104, %v2361
  %v2363 = vpop.f32.mrb[0].mxu0
  %2364 = vmatprep.mubr.f32.mxu0 0.0
  %2365 = vmatmul.mubr.f32.gmra.mrb[0].mxu0 %v2058
  %v2366 = vpop.f32.mrb[0].mxu0
  %v2367 = vadd.f32 %v2104, %v2366
  %v2368 = vpop.f32.mrb[0].mxu0
  %2369 = vmatprep.mubr.f32.mxu0 0.0
  %2370 = vmatmul.mubr.f32.gmra.mrb[0].mxu0 %v2059
  %v2371 = vpop.f32.mrb[0].mxu0
  %v2372 = vadd.f32 %v2104, %v2371
  %v2373 = vpop.f32.mrb[0].mxu0
  %2374 = vmatprep.mubr.f32.mxu0 0.0
  %2375 = vmatmul.mubr.f32.gmra.mrb[0].mxu0 %v2060
  %v2376 = vpop.f32.mrb[0].mxu0
  %v2377 = vadd.f32 %v2104, %v2376
  %v2378 = vpop.f32.mrb[0].mxu0
  %2379 = vmatprep.mubr.f32.mxu0 0.0
  %2380 = vmatmul.mubr.f32.gmra.mrb[0].mxu0 %v2061
  %v2381 = vpop.f32.mrb[0].mxu0
  %v2382 = vadd.f32 %v2104, %v2381
  %v2383 = vpop.f32.mrb[0].mxu0
  %2384 = vmatprep.mubr.f32.mxu0 0.0
  %2385 = vmatmul.mubr.f32.gmra.mrb[0].mxu0 %v2062
  %v2386 = vpop.f32.mrb[0].mxu0
  %v2387 = vadd.f32 %v2104, %v2386
  %v2388 = vpop.f32.mrb[0].mxu0
  %2389 = vmatprep.mubr.f32.mxu0 0.0
  %2390 = vmatmul.mubr.f32.gmra.mrb[0].mxu0 %v2063
  %v2391 = vpop.f32.mrb[0].mxu0
  %v2392 = vadd.f32 %v2104, %v2391
  %v2393 = vpop.f32.mrb[0].mxu0
  %2394 = vmatprep.mubr.f32.mxu0 0.0
  %2395 = vmatmul.mubr.f32.gmra.mrb[0].mxu0 %v2064
  %v2396 = vpop.f32.mrb[0].mxu0
  %v2397 = vadd.f32 %v2104, %v2396
  %v2398 = vpop.f32.mrb[0].mxu0
  %2399 = vmatprep.mubr.f32.mxu0 0.0
  %2400 = vmatmul.mubr.f32.gmra.mrb[0].mxu0 %v2065
  %v2401 = vpop.f32.mrb[0].mxu0
  %v2402 = vadd.f32 %v2104, %v2401
  %v2403 = vpop.f32.mrb[0].mxu0
  %2404 = vmatprep.mubr.f32.mxu0 0.0
  %2405 = vmatmul.mubr.f32.gmra.mrb[0].mxu0 %v2066
  %v2406 = vpop.f32.mrb[0].mxu0
  %v2407 = vadd.f32 %v2104, %v2406
  %v2408 = vpop.f32.mrb[0].mxu0
  %2409 = vmatprep.mubr.f32.mxu0 0.0
  %2410 = vmatmul.mubr.f32.gmra.mrb[0].mxu0 %v2067
  %v2411 = vpop.f32.mrb[0].mxu0
  %v2412 = vadd.f32 %v2104, %v2411
  %v2413 = vpop.f32.mrb[0].mxu0
  %2414 = vmatprep.mubr.f32.mxu0 0.0
  %2415 = vmatmul.mubr.f32.gmra.mrb[0].mxu0 %v2068
  %v2416 = vpop.f32.mrb[0].mxu0
  %v2417 = vadd.f32 %v2104, %v2416
  %v2418 = vpop.f32.mrb[0].mxu0
  %2419 = vmatprep.mubr.f32.mxu0 0.0
  %2420 = vmatmul.mubr.f32.gmra.mrb[0].mxu0 %v2069
  %v2421 = vpop.f32.mrb[0].mxu0
  %v2422 = vadd.f32 %v2104, %v2421
  %v2423 = vpop.f32.mrb[0].mxu0
  %2424 = vmatprep.mubr.f32.mxu0 0.0
  %2425 = vmatmul.mubr.f32.gmra.mrb[0].mxu0 %v2070
  %v2426 = vpop.f32.mrb[0].mxu0
  %v2427 = vadd.f32 %v2104, %v2426
  %v2428 = vpop.f32.mrb[0].mxu0
  %2429 = vmatprep.mubr.f32.mxu0 0.0
  %2430 = vmatmul.mubr.f32.gmra.mrb[0].mxu0 %v2071
  %v2431 = vpop.f32.mrb[0].mxu0
  %v2432 = vadd.f32 %v2104, %v2431
  %v2433 = vpop.f32.mrb[0].mxu0
  %2434 = vmatprep.mubr.f32.mxu0 0.0
  %2435 = vmatmul.mubr.f32.gmra.mrb[0].mxu0 %v2072
  %v2436 = vpop.f32.mrb[0].mxu0
  %v2437 = vadd.f32 %v2104, %v2436
  %v2438 = vpop.f32.mrb[0].mxu0
  %2439 = vmatprep.mubr.f32.mxu0 0.0
  %2440 = vmatmul.mubr.f32.gmra.mrb[0].mxu0 %v2073
  %v2441 = vpop.f32.mrb[0].mxu0
  %v2442 = vadd.f32 %v2104, %v2441
  %v2443 = vpop.f32.mrb[0].mxu0
  %2444 = vmatprep.mubr.f32.mxu0 0.0
  %2445 = vmatmul.mubr.f32.gmra.mrb[0].mxu0 %v2074
  %v2446 = vpop.f32.mrb[0].mxu0
  %v2447 = vadd.f32 %v2104, %v2446
  %v2448 = vpop.f32.mrb[0].mxu0
  %2449 = vmatprep.mubr.f32.mxu0 0.0
  %2450 = vmatmul.mubr.f32.gmra.mrb[0].mxu0 %v2075
  %v2451 = vpop.f32.mrb[0].mxu0
  %v2452 = vadd.f32 %v2104, %v2451
  %v2453 = vpop.f32.mrb[0].mxu0
  %2454 = vmatprep.mubr.f32.mxu0 0.0
  %2455 = vmatmul.mubr.f32.gmra.mrb[0].mxu0 %v2076
  %v2456 = vpop.f32.mrb[0].mxu0
  %v2457 = vadd.f32 %v2104, %v2456
  %v2458 = vpop.f32.mrb[0].mxu0
  %2459 = vmatprep.mubr.f32.mxu0 0.0
  %2460 = vmatmul.mubr.f32.gmra.mrb[0].mxu0 %v2077
  %v2461 = vpop.f32.mrb[0].mxu0
  %v2462 = vadd.f32 %v2104, %v2461
  %v2463 = vpop.f32.mrb[0].mxu0
  %2464 = vmatprep.mubr.f32.mxu0 0.0
  %2465 = vmatmul.mubr.f32.gmra.mrb[0].mxu0 %v2078
  %v2466 = vpop.f32.mrb[0].mxu0
  %v2467 = vadd.f32 %v2104, %v2466
  %v2468 = vpop.f32.mrb[0].mxu0
  %2469 = vmatprep.mubr.f32.mxu0 0.0
  %2470 = vmatmul.mubr.f32.gmra.mrb[0].mxu0 %v2079
  %v2471 = vpop.f32.mrb[0].mxu0
  %v2472 = vadd.f32 %v2104, %v2471
  %v2473 = vpop.f32.mrb[0].mxu0
  %2474 = vmatprep.mubr.f32.mxu0 0.0
  %2475 = vmatmul.mubr.f32.gmra.mrb[0].mxu0 %v2080
  %v2476 = vpop.f32.mrb[0].mxu0
  %v2477 = vadd.f32 %v2104, %v2476
  %v2478 = vpop.f32.mrb[0].mxu0
  %2479 = vmatprep.mubr.f32.mxu0 0.0
  %2480 = vmatmul.mubr.f32.gmra.mrb[0].mxu0 %v2081
  %v2481 = vpop.f32.mrb[0].mxu0
  %v2482 = vadd.f32 %v2104, %v2481
  %v2483 = vpop.f32.mrb[0].mxu0
  %2484 = vmatprep.mubr.f32.mxu0 0.0
  %2485 = vmatmul.mubr.f32.gmra.mrb[0].mxu0 %v2082
  %v2486 = vpop.f32.mrb[0].mxu0
  %v2487 = vadd.f32 %v2104, %v2486
  %v2488 = vpop.f32.mrb[0].mxu0
  %2489 = vdwg.mxu0
  %v2490 = vmax.f32 %v2172, 0.0
  %v2491 = vmax.f32 %v2177, 0.0
  %v2492 = vmax.f32 %v2182, 0.0
  %v2493 = vmax.f32 %v2187, 0.0
  %v2494 = vmax.f32 %v2192, 0.0
  %v2495 = vmax.f32 %v2197, 0.0
  %v2496 = vmax.f32 %v2202, 0.0
  %v2497 = vmax.f32 %v2207, 0.0
  %v2498 = vmax.f32 %v2212, 0.0
  %v2499 = vmax.f32 %v2217, 0.0
  %v2500 = vmax.f32 %v2222, 0.0
  %v2501 = vmax.f32 %v2227, 0.0
  %v2502 = vmax.f32 %v2232, 0.0
  %v2503 = vmax.f32 %v2237, 0.0
  %v2504 = vmax.f32 %v2242, 0.0
  %v2505 = vmax.f32 %v2247, 0.0
  %v2506 = vmax.f32 %v2252, 0.0
  %v2507 = vmax.f32 %v2257, 0.0
  %v2508 = vmax.f32 %v2262, 0.0
  %v2509 = vmax.f32 %v2267, 0.0
  %v2510 = vmax.f32 %v2272, 0.0
  %v2511 = vmax.f32 %v2277, 0.0
  %v2512 = vmax.f32 %v2282, 0.0
  %v2513 = vmax.f32 %v2287, 0.0
  %v2514 = vmax.f32 %v2292, 0.0
  %v2515 = vmax.f32 %v2297, 0.0
  %v2516 = vmax.f32 %v2302, 0.0
  %v2517 = vmax.f32 %v2307, 0.0
  %v2518 = vmax.f32 %v2312, 0.0
  %v2519 = vmax.f32 %v2317, 0.0
  %v2520 = vmax.f32 %v2322, 0.0
  %v2521 = vmax.f32 %v2327, 0.0
  %v2522 = vmax.f32 %v2332, 0.0
  %v2523 = vmax.f32 %v2337, 0.0
  %v2524 = vmax.f32 %v2342, 0.0
  %v2525 = vmax.f32 %v2347, 0.0
  %v2526 = vmax.f32 %v2352, 0.0
  %v2527 = vmax.f32 %v2357, 0.0
  %v2528 = vmax.f32 %v2362, 0.0
  %v2529 = vmax.f32 %v2367, 0.0
  %v2530 = vmax.f32 %v2372, 0.0
  %v2531 = vmax.f32 %v2377, 0.0
  %v2532 = vmax.f32 %v2382, 0.0
  %v2533 = vmax.f32 %v2387, 0.0
  %v2534 = vmax.f32 %v2392, 0.0
  %v2535 = vmax.f32 %v2397, 0.0
  %v2536 = vmax.f32 %v2402, 0.0
  %v2537 = vmax.f32 %v2407, 0.0
  %v2538 = vmax.f32 %v2412, 0.0
  %v2539 = vmax.f32 %v2417, 0.0
  %v2540 = vmax.f32 %v2422, 0.0
  %v2541 = vmax.f32 %v2427, 0.0
  %v2542 = vmax.f32 %v2432, 0.0
  %v2543 = vmax.f32 %v2437, 0.0
  %v2544 = vmax.f32 %v2442, 0.0
  %v2545 = vmax.f32 %v2447, 0.0
  %v2546 = vmax.f32 %v2452, 0.0
  %v2547 = vmax.f32 %v2457, 0.0
  %v2548 = vmax.f32 %v2462, 0.0
  %v2549 = vmax.f32 %v2467, 0.0
  %v2550 = vmax.f32 %v2472, 0.0
  %v2551 = vmax.f32 %v2477, 0.0
  %v2552 = vmax.f32 %v2482, 0.0
  %v2553 = vmax.f32 %v2487, 0.0
  %s2554 = scalar_lea.vmem %s2, 512
  %v2555 = vld [vmem:[%s2554] sm:$0xff]
  %v2556 = vld [vmem:[%s2554 + $0x8] sm:$0xff]
  %v2557 = vld [vmem:[%s2554 + $0x10] sm:$0xff]
  %v2558 = vld [vmem:[%s2554 + $0x18] sm:$0xff]
  %v2559 = vld [vmem:[%s2554 + $0x20] sm:$0xff]
  %v2560 = vld [vmem:[%s2554 + $0x28] sm:$0xff]
  %v2561 = vld [vmem:[%s2554 + $0x30] sm:$0xff]
  %v2562 = vld [vmem:[%s2554 + $0x38] sm:$0xff]
  %v2563 = vld [vmem:[%s2554 + $0x40] sm:$0xff]
  %v2564 = vld [vmem:[%s2554 + $0x48] sm:$0xff]
  %v2565 = vld [vmem:[%s2554 + $0x50] sm:$0xff]
  %v2566 = vld [vmem:[%s2554 + $0x58] sm:$0xff]
  %v2567 = vld [vmem:[%s2554 + $0x60] sm:$0xff]
  %v2568 = vld [vmem:[%s2554 + $0x68] sm:$0xff]
  %v2569 = vld [vmem:[%s2554 + $0x70] sm:$0xff]
  %v2570 = vld [vmem:[%s2554 + $0x78] sm:$0xff]
  %v2571 = vld [vmem:[%s3 + $0x5] sm:$0x1]
  %v2572 = vlaneseq
  %v2573 = vshrl.u32 %v2572, 7
  %v2574 = vsub.s32 0, %v2573
  %v2575 = vrot.slane %v2571, %v2574
  %2576 = vmatprep.subr.mxu0 0.0
  %2577 = vmatpush1.msra.mxu0 %v2555
  %2578 = vmatprep.subr.mxu0 0.0
  %2579 = vmatpush1.msra.mxu0 %v2556
  %2580 = vmatprep.subr.mxu0 0.0
  %2581 = vmatpush1.msra.mxu0 %v2557
  %2582 = vmatprep.subr.mxu0 0.0
  %2583 = vmatpush1.msra.mxu0 %v2558
  %2584 = vmatprep.subr.mxu0 0.0
  %2585 = vmatpush1.msra.mxu0 %v2559
  %2586 = vmatprep.subr.mxu0 0.0
  %2587 = vmatpush1.msra.mxu0 %v2560
  %2588 = vmatprep.subr.mxu0 0.0
  %2589 = vmatpush1.msra.mxu0 %v2561
  %2590 = vmatprep.subr.mxu0 0.0
  %2591 = vmatpush1.msra.mxu0 %v2562
  %2592 = vmatprep.subr.mxu0 0.0
  %2593 = vmatpush1.msra.mxu0 %v2563
  %2594 = vmatprep.subr.mxu0 0.0
  %2595 = vmatpush1.msra.mxu0 %v2564
  %2596 = vmatprep.subr.mxu0 0.0
  %2597 = vmatpush1.msra.mxu0 %v2565
  %2598 = vmatprep.subr.mxu0 0.0
  %2599 = vmatpush1.msra.mxu0 %v2566
  %2600 = vmatprep.subr.mxu0 0.0
  %2601 = vmatpush1.msra.mxu0 %v2567
  %2602 = vmatprep.subr.mxu0 0.0
  %2603 = vmatpush1.msra.mxu0 %v2568
  %2604 = vmatprep.subr.mxu0 0.0
  %2605 = vmatpush1.msra.mxu0 %v2569
  %2606 = vmatprep.subr.mxu0 0.0
  %2607 = vmatpush1.msra.mxu0 %v2570
  %2608 = vmatprep.subr.mxu0 0.0
  %2609 = vmatpush1.msra.mxu0 0.0
  %2610 = vmatprep.subr.mxu0 0.0
  %2611 = vmatpush1.msra.mxu0 0.0
  %2612 = vmatprep.subr.mxu0 0.0
  %2613 = vmatpush1.msra.mxu0 0.0
  %2614 = vmatprep.subr.mxu0 0.0
  %2615 = vmatpush1.msra.mxu0 0.0
  %2616 = vmatprep.subr.mxu0 0.0
  %2617 = vmatpush1.msra.mxu0 0.0
  %2618 = vmatprep.subr.mxu0 0.0
  %2619 = vmatpush1.msra.mxu0 0.0
  %2620 = vmatprep.subr.mxu0 0.0
  %2621 = vmatpush1.msra.mxu0 0.0
  %2622 = vmatprep.subr.mxu0 0.0
  %2623 = vmatpush1.msra.mxu0 0.0
  %2624 = vmatprep.subr.mxu0 0.0
  %2625 = vmatpush1.msra.mxu0 0.0
  %2626 = vmatprep.subr.mxu0 0.0
  %2627 = vmatpush1.msra.mxu0 0.0
  %2628 = vmatprep.subr.mxu0 0.0
  %2629 = vmatpush1.msra.mxu0 0.0
  %2630 = vmatprep.subr.mxu0 0.0
  %2631 = vmatpush1.msra.mxu0 0.0
  %2632 = vmatprep.subr.mxu0 0.0
  %2633 = vmatpush1.msra.mxu0 0.0
  %2634 = vmatprep.subr.mxu0 0.0
  %2635 = vmatpush1.msra.mxu0 0.0
  %2636 = vmatprep.subr.mxu0 0.0
  %2637 = vmatpush1.msra.mxu0 0.0
  %2638 = vmatprep.subr.mxu0 0.0
  %2639 = vmatpush1.msra.mxu0 0.0
  %2640 = vmatprep.mubr.f32.mxu0 0.0
  %2641 = vmatmul.mubr.f32.gmra.mrb[0].mxu0 %v2490
  %v2642 = vpop.f32.mrb[0].mxu0
  %v2643 = vadd.f32 %v2575, %v2642
  %v2644 = vpop.f32.mrb[0].mxu0
  %2645 = vmatprep.mubr.f32.mxu0 0.0
  %2646 = vmatmul.mubr.f32.gmra.mrb[0].mxu0 %v2491
  %v2647 = vpop.f32.mrb[0].mxu0
  %v2648 = vadd.f32 %v2575, %v2647
  %v2649 = vpop.f32.mrb[0].mxu0
  %2650 = vmatprep.mubr.f32.mxu0 0.0
  %2651 = vmatmul.mubr.f32.gmra.mrb[0].mxu0 %v2492
  %v2652 = vpop.f32.mrb[0].mxu0
  %v2653 = vadd.f32 %v2575, %v2652
  %v2654 = vpop.f32.mrb[0].mxu0
  %2655 = vmatprep.mubr.f32.mxu0 0.0
  %2656 = vmatmul.mubr.f32.gmra.mrb[0].mxu0 %v2493
  %v2657 = vpop.f32.mrb[0].mxu0
  %v2658 = vadd.f32 %v2575, %v2657
  %v2659 = vpop.f32.mrb[0].mxu0
  %2660 = vmatprep.mubr.f32.mxu0 0.0
  %2661 = vmatmul.mubr.f32.gmra.mrb[0].mxu0 %v2494
  %v2662 = vpop.f32.mrb[0].mxu0
  %v2663 = vadd.f32 %v2575, %v2662
  %v2664 = vpop.f32.mrb[0].mxu0
  %2665 = vmatprep.mubr.f32.mxu0 0.0
  %2666 = vmatmul.mubr.f32.gmra.mrb[0].mxu0 %v2495
  %v2667 = vpop.f32.mrb[0].mxu0
  %v2668 = vadd.f32 %v2575, %v2667
  %v2669 = vpop.f32.mrb[0].mxu0
  %2670 = vmatprep.mubr.f32.mxu0 0.0
  %2671 = vmatmul.mubr.f32.gmra.mrb[0].mxu0 %v2496
  %v2672 = vpop.f32.mrb[0].mxu0
  %v2673 = vadd.f32 %v2575, %v2672
  %v2674 = vpop.f32.mrb[0].mxu0
  %2675 = vmatprep.mubr.f32.mxu0 0.0
  %2676 = vmatmul.mubr.f32.gmra.mrb[0].mxu0 %v2497
  %v2677 = vpop.f32.mrb[0].mxu0
  %v2678 = vadd.f32 %v2575, %v2677
  %v2679 = vpop.f32.mrb[0].mxu0
  %2680 = vmatprep.mubr.f32.mxu0 0.0
  %2681 = vmatmul.mubr.f32.gmra.mrb[0].mxu0 %v2498
  %v2682 = vpop.f32.mrb[0].mxu0
  %v2683 = vadd.f32 %v2575, %v2682
  %v2684 = vpop.f32.mrb[0].mxu0
  %2685 = vmatprep.mubr.f32.mxu0 0.0
  %2686 = vmatmul.mubr.f32.gmra.mrb[0].mxu0 %v2499
  %v2687 = vpop.f32.mrb[0].mxu0
  %v2688 = vadd.f32 %v2575, %v2687
  %v2689 = vpop.f32.mrb[0].mxu0
  %2690 = vmatprep.mubr.f32.mxu0 0.0
  %2691 = vmatmul.mubr.f32.gmra.mrb[0].mxu0 %v2500
  %v2692 = vpop.f32.mrb[0].mxu0
  %v2693 = vadd.f32 %v2575, %v2692
  %v2694 = vpop.f32.mrb[0].mxu0
  %2695 = vmatprep.mubr.f32.mxu0 0.0
  %2696 = vmatmul.mubr.f32.gmra.mrb[0].mxu0 %v2501
  %v2697 = vpop.f32.mrb[0].mxu0
  %v2698 = vadd.f32 %v2575, %v2697
  %v2699 = vpop.f32.mrb[0].mxu0
  %2700 = vmatprep.mubr.f32.mxu0 0.0
  %2701 = vmatmul.mubr.f32.gmra.mrb[0].mxu0 %v2502
  %v2702 = vpop.f32.mrb[0].mxu0
  %v2703 = vadd.f32 %v2575, %v2702
  %v2704 = vpop.f32.mrb[0].mxu0
  %2705 = vmatprep.mubr.f32.mxu0 0.0
  %2706 = vmatmul.mubr.f32.gmra.mrb[0].mxu0 %v2503
  %v2707 = vpop.f32.mrb[0].mxu0
  %v2708 = vadd.f32 %v2575, %v2707
  %v2709 = vpop.f32.mrb[0].mxu0
  %2710 = vmatprep.mubr.f32.mxu0 0.0
  %2711 = vmatmul.mubr.f32.gmra.mrb[0].mxu0 %v2504
  %v2712 = vpop.f32.mrb[0].mxu0
  %v2713 = vadd.f32 %v2575, %v2712
  %v2714 = vpop.f32.mrb[0].mxu0
  %2715 = vmatprep.mubr.f32.mxu0 0.0
  %2716 = vmatmul.mubr.f32.gmra.mrb[0].mxu0 %v2505
  %v2717 = vpop.f32.mrb[0].mxu0
  %v2718 = vadd.f32 %v2575, %v2717
  %v2719 = vpop.f32.mrb[0].mxu0
  %2720 = vmatprep.mubr.f32.mxu0 0.0
  %2721 = vmatmul.mubr.f32.gmra.mrb[0].mxu0 %v2506
  %v2722 = vpop.f32.mrb[0].mxu0
  %v2723 = vadd.f32 %v2575, %v2722
  %v2724 = vpop.f32.mrb[0].mxu0
  %2725 = vmatprep.mubr.f32.mxu0 0.0
  %2726 = vmatmul.mubr.f32.gmra.mrb[0].mxu0 %v2507
  %v2727 = vpop.f32.mrb[0].mxu0
  %v2728 = vadd.f32 %v2575, %v2727
  %v2729 = vpop.f32.mrb[0].mxu0
  %2730 = vmatprep.mubr.f32.mxu0 0.0
  %2731 = vmatmul.mubr.f32.gmra.mrb[0].mxu0 %v2508
  %v2732 = vpop.f32.mrb[0].mxu0
  %v2733 = vadd.f32 %v2575, %v2732
  %v2734 = vpop.f32.mrb[0].mxu0
  %2735 = vmatprep.mubr.f32.mxu0 0.0
  %2736 = vmatmul.mubr.f32.gmra.mrb[0].mxu0 %v2509
  %v2737 = vpop.f32.mrb[0].mxu0
  %v2738 = vadd.f32 %v2575, %v2737
  %v2739 = vpop.f32.mrb[0].mxu0
  %2740 = vmatprep.mubr.f32.mxu0 0.0
  %2741 = vmatmul.mubr.f32.gmra.mrb[0].mxu0 %v2510
  %v2742 = vpop.f32.mrb[0].mxu0
  %v2743 = vadd.f32 %v2575, %v2742
  %v2744 = vpop.f32.mrb[0].mxu0
  %2745 = vmatprep.mubr.f32.mxu0 0.0
  %2746 = vmatmul.mubr.f32.gmra.mrb[0].mxu0 %v2511
  %v2747 = vpop.f32.mrb[0].mxu0
  %v2748 = vadd.f32 %v2575, %v2747
  %v2749 = vpop.f32.mrb[0].mxu0
  %2750 = vmatprep.mubr.f32.mxu0 0.0
  %2751 = vmatmul.mubr.f32.gmra.mrb[0].mxu0 %v2512
  %v2752 = vpop.f32.mrb[0].mxu0
  %v2753 = vadd.f32 %v2575, %v2752
  %v2754 = vpop.f32.mrb[0].mxu0
  %2755 = vmatprep.mubr.f32.mxu0 0.0
  %2756 = vmatmul.mubr.f32.gmra.mrb[0].mxu0 %v2513
  %v2757 = vpop.f32.mrb[0].mxu0
  %v2758 = vadd.f32 %v2575, %v2757
  %v2759 = vpop.f32.mrb[0].mxu0
  %2760 = vmatprep.mubr.f32.mxu0 0.0
  %2761 = vmatmul.mubr.f32.gmra.mrb[0].mxu0 %v2514
  %v2762 = vpop.f32.mrb[0].mxu0
  %v2763 = vadd.f32 %v2575, %v2762
  %v2764 = vpop.f32.mrb[0].mxu0
  %2765 = vmatprep.mubr.f32.mxu0 0.0
  %2766 = vmatmul.mubr.f32.gmra.mrb[0].mxu0 %v2515
  %v2767 = vpop.f32.mrb[0].mxu0
  %v2768 = vadd.f32 %v2575, %v2767
  %v2769 = vpop.f32.mrb[0].mxu0
  %2770 = vmatprep.mubr.f32.mxu0 0.0
  %2771 = vmatmul.mubr.f32.gmra.mrb[0].mxu0 %v2516
  %v2772 = vpop.f32.mrb[0].mxu0
  %v2773 = vadd.f32 %v2575, %v2772
  %v2774 = vpop.f32.mrb[0].mxu0
  %2775 = vmatprep.mubr.f32.mxu0 0.0
  %2776 = vmatmul.mubr.f32.gmra.mrb[0].mxu0 %v2517
  %v2777 = vpop.f32.mrb[0].mxu0
  %v2778 = vadd.f32 %v2575, %v2777
  %v2779 = vpop.f32.mrb[0].mxu0
  %2780 = vmatprep.mubr.f32.mxu0 0.0
  %2781 = vmatmul.mubr.f32.gmra.mrb[0].mxu0 %v2518
  %v2782 = vpop.f32.mrb[0].mxu0
  %v2783 = vadd.f32 %v2575, %v2782
  %v2784 = vpop.f32.mrb[0].mxu0
  %2785 = vmatprep.mubr.f32.mxu0 0.0
  %2786 = vmatmul.mubr.f32.gmra.mrb[0].mxu0 %v2519
  %v2787 = vpop.f32.mrb[0].mxu0
  %v2788 = vadd.f32 %v2575, %v2787
  %v2789 = vpop.f32.mrb[0].mxu0
  %2790 = vmatprep.mubr.f32.mxu0 0.0
  %2791 = vmatmul.mubr.f32.gmra.mrb[0].mxu0 %v2520
  %v2792 = vpop.f32.mrb[0].mxu0
  %v2793 = vadd.f32 %v2575, %v2792
  %v2794 = vpop.f32.mrb[0].mxu0
  %2795 = vmatprep.mubr.f32.mxu0 0.0
  %2796 = vmatmul.mubr.f32.gmra.mrb[0].mxu0 %v2521
  %v2797 = vpop.f32.mrb[0].mxu0
  %v2798 = vadd.f32 %v2575, %v2797
  %v2799 = vpop.f32.mrb[0].mxu0
  %2800 = vmatprep.mubr.f32.mxu0 0.0
  %2801 = vmatmul.mubr.f32.gmra.mrb[0].mxu0 %v2522
  %v2802 = vpop.f32.mrb[0].mxu0
  %v2803 = vadd.f32 %v2575, %v2802
  %v2804 = vpop.f32.mrb[0].mxu0
  %2805 = vmatprep.mubr.f32.mxu0 0.0
  %2806 = vmatmul.mubr.f32.gmra.mrb[0].mxu0 %v2523
  %v2807 = vpop.f32.mrb[0].mxu0
  %v2808 = vadd.f32 %v2575, %v2807
  %v2809 = vpop.f32.mrb[0].mxu0
  %2810 = vmatprep.mubr.f32.mxu0 0.0
  %2811 = vmatmul.mubr.f32.gmra.mrb[0].mxu0 %v2524
  %v2812 = vpop.f32.mrb[0].mxu0
  %v2813 = vadd.f32 %v2575, %v2812
  %v2814 = vpop.f32.mrb[0].mxu0
  %2815 = vmatprep.mubr.f32.mxu0 0.0
  %2816 = vmatmul.mubr.f32.gmra.mrb[0].mxu0 %v2525
  %v2817 = vpop.f32.mrb[0].mxu0
  %v2818 = vadd.f32 %v2575, %v2817
  %v2819 = vpop.f32.mrb[0].mxu0
  %2820 = vmatprep.mubr.f32.mxu0 0.0
  %2821 = vmatmul.mubr.f32.gmra.mrb[0].mxu0 %v2526
  %v2822 = vpop.f32.mrb[0].mxu0
  %v2823 = vadd.f32 %v2575, %v2822
  %v2824 = vpop.f32.mrb[0].mxu0
  %2825 = vmatprep.mubr.f32.mxu0 0.0
  %2826 = vmatmul.mubr.f32.gmra.mrb[0].mxu0 %v2527
  %v2827 = vpop.f32.mrb[0].mxu0
  %v2828 = vadd.f32 %v2575, %v2827
  %v2829 = vpop.f32.mrb[0].mxu0
  %2830 = vmatprep.mubr.f32.mxu0 0.0
  %2831 = vmatmul.mubr.f32.gmra.mrb[0].mxu0 %v2528
  %v2832 = vpop.f32.mrb[0].mxu0
  %v2833 = vadd.f32 %v2575, %v2832
  %v2834 = vpop.f32.mrb[0].mxu0
  %2835 = vmatprep.mubr.f32.mxu0 0.0
  %2836 = vmatmul.mubr.f32.gmra.mrb[0].mxu0 %v2529
  %v2837 = vpop.f32.mrb[0].mxu0
  %v2838 = vadd.f32 %v2575, %v2837
  %v2839 = vpop.f32.mrb[0].mxu0
  %2840 = vmatprep.mubr.f32.mxu0 0.0
  %2841 = vmatmul.mubr.f32.gmra.mrb[0].mxu0 %v2530
  %v2842 = vpop.f32.mrb[0].mxu0
  %v2843 = vadd.f32 %v2575, %v2842
  %v2844 = vpop.f32.mrb[0].mxu0
  %2845 = vmatprep.mubr.f32.mxu0 0.0
  %2846 = vmatmul.mubr.f32.gmra.mrb[0].mxu0 %v2531
  %v2847 = vpop.f32.mrb[0].mxu0
  %v2848 = vadd.f32 %v2575, %v2847
  %v2849 = vpop.f32.mrb[0].mxu0
  %2850 = vmatprep.mubr.f32.mxu0 0.0
  %2851 = vmatmul.mubr.f32.gmra.mrb[0].mxu0 %v2532
  %v2852 = vpop.f32.mrb[0].mxu0
  %v2853 = vadd.f32 %v2575, %v2852
  %v2854 = vpop.f32.mrb[0].mxu0
  %2855 = vmatprep.mubr.f32.mxu0 0.0
  %2856 = vmatmul.mubr.f32.gmra.mrb[0].mxu0 %v2533
  %v2857 = vpop.f32.mrb[0].mxu0
  %v2858 = vadd.f32 %v2575, %v2857
  %v2859 = vpop.f32.mrb[0].mxu0
  %2860 = vmatprep.mubr.f32.mxu0 0.0
  %2861 = vmatmul.mubr.f32.gmra.mrb[0].mxu0 %v2534
  %v2862 = vpop.f32.mrb[0].mxu0
  %v2863 = vadd.f32 %v2575, %v2862
  %v2864 = vpop.f32.mrb[0].mxu0
  %2865 = vmatprep.mubr.f32.mxu0 0.0
  %2866 = vmatmul.mubr.f32.gmra.mrb[0].mxu0 %v2535
  %v2867 = vpop.f32.mrb[0].mxu0
  %v2868 = vadd.f32 %v2575, %v2867
  %v2869 = vpop.f32.mrb[0].mxu0
  %2870 = vmatprep.mubr.f32.mxu0 0.0
  %2871 = vmatmul.mubr.f32.gmra.mrb[0].mxu0 %v2536
  %v2872 = vpop.f32.mrb[0].mxu0
  %v2873 = vadd.f32 %v2575, %v2872
  %v2874 = vpop.f32.mrb[0].mxu0
  %2875 = vmatprep.mubr.f32.mxu0 0.0
  %2876 = vmatmul.mubr.f32.gmra.mrb[0].mxu0 %v2537
  %v2877 = vpop.f32.mrb[0].mxu0
  %v2878 = vadd.f32 %v2575, %v2877
  %v2879 = vpop.f32.mrb[0].mxu0
  %2880 = vmatprep.mubr.f32.mxu0 0.0
  %2881 = vmatmul.mubr.f32.gmra.mrb[0].mxu0 %v2538
  %v2882 = vpop.f32.mrb[0].mxu0
  %v2883 = vadd.f32 %v2575, %v2882
  %v2884 = vpop.f32.mrb[0].mxu0
  %2885 = vmatprep.mubr.f32.mxu0 0.0
  %2886 = vmatmul.mubr.f32.gmra.mrb[0].mxu0 %v2539
  %v2887 = vpop.f32.mrb[0].mxu0
  %v2888 = vadd.f32 %v2575, %v2887
  %v2889 = vpop.f32.mrb[0].mxu0
  %2890 = vmatprep.mubr.f32.mxu0 0.0
  %2891 = vmatmul.mubr.f32.gmra.mrb[0].mxu0 %v2540
  %v2892 = vpop.f32.mrb[0].mxu0
  %v2893 = vadd.f32 %v2575, %v2892
  %v2894 = vpop.f32.mrb[0].mxu0
  %2895 = vmatprep.mubr.f32.mxu0 0.0
  %2896 = vmatmul.mubr.f32.gmra.mrb[0].mxu0 %v2541
  %v2897 = vpop.f32.mrb[0].mxu0
  %v2898 = vadd.f32 %v2575, %v2897
  %v2899 = vpop.f32.mrb[0].mxu0
  %2900 = vmatprep.mubr.f32.mxu0 0.0
  %2901 = vmatmul.mubr.f32.gmra.mrb[0].mxu0 %v2542
  %v2902 = vpop.f32.mrb[0].mxu0
  %v2903 = vadd.f32 %v2575, %v2902
  %v2904 = vpop.f32.mrb[0].mxu0
  %2905 = vmatprep.mubr.f32.mxu0 0.0
  %2906 = vmatmul.mubr.f32.gmra.mrb[0].mxu0 %v2543
  %v2907 = vpop.f32.mrb[0].mxu0
  %v2908 = vadd.f32 %v2575, %v2907
  %v2909 = vpop.f32.mrb[0].mxu0
  %2910 = vmatprep.mubr.f32.mxu0 0.0
  %2911 = vmatmul.mubr.f32.gmra.mrb[0].mxu0 %v2544
  %v2912 = vpop.f32.mrb[0].mxu0
  %v2913 = vadd.f32 %v2575, %v2912
  %v2914 = vpop.f32.mrb[0].mxu0
  %2915 = vmatprep.mubr.f32.mxu0 0.0
  %2916 = vmatmul.mubr.f32.gmra.mrb[0].mxu0 %v2545
  %v2917 = vpop.f32.mrb[0].mxu0
  %v2918 = vadd.f32 %v2575, %v2917
  %v2919 = vpop.f32.mrb[0].mxu0
  %2920 = vmatprep.mubr.f32.mxu0 0.0
  %2921 = vmatmul.mubr.f32.gmra.mrb[0].mxu0 %v2546
  %v2922 = vpop.f32.mrb[0].mxu0
  %v2923 = vadd.f32 %v2575, %v2922
  %v2924 = vpop.f32.mrb[0].mxu0
  %2925 = vmatprep.mubr.f32.mxu0 0.0
  %2926 = vmatmul.mubr.f32.gmra.mrb[0].mxu0 %v2547
  %v2927 = vpop.f32.mrb[0].mxu0
  %v2928 = vadd.f32 %v2575, %v2927
  %v2929 = vpop.f32.mrb[0].mxu0
  %2930 = vmatprep.mubr.f32.mxu0 0.0
  %2931 = vmatmul.mubr.f32.gmra.mrb[0].mxu0 %v2548
  %v2932 = vpop.f32.mrb[0].mxu0
  %v2933 = vadd.f32 %v2575, %v2932
  %v2934 = vpop.f32.mrb[0].mxu0
  %2935 = vmatprep.mubr.f32.mxu0 0.0
  %2936 = vmatmul.mubr.f32.gmra.mrb[0].mxu0 %v2549
  %v2937 = vpop.f32.mrb[0].mxu0
  %v2938 = vadd.f32 %v2575, %v2937
  %v2939 = vpop.f32.mrb[0].mxu0
  %2940 = vmatprep.mubr.f32.mxu0 0.0
  %2941 = vmatmul.mubr.f32.gmra.mrb[0].mxu0 %v2550
  %v2942 = vpop.f32.mrb[0].mxu0
  %v2943 = vadd.f32 %v2575, %v2942
  %v2944 = vpop.f32.mrb[0].mxu0
  %2945 = vmatprep.mubr.f32.mxu0 0.0
  %2946 = vmatmul.mubr.f32.gmra.mrb[0].mxu0 %v2551
  %v2947 = vpop.f32.mrb[0].mxu0
  %v2948 = vadd.f32 %v2575, %v2947
  %v2949 = vpop.f32.mrb[0].mxu0
  %2950 = vmatprep.mubr.f32.mxu0 0.0
  %2951 = vmatmul.mubr.f32.gmra.mrb[0].mxu0 %v2552
  %v2952 = vpop.f32.mrb[0].mxu0
  %v2953 = vadd.f32 %v2575, %v2952
  %v2954 = vpop.f32.mrb[0].mxu0
  %2955 = vmatprep.mubr.f32.mxu0 0.0
  %2956 = vmatmul.mubr.f32.gmra.mrb[0].mxu0 %v2553
  %v2957 = vpop.f32.mrb[0].mxu0
  %v2958 = vadd.f32 %v2575, %v2957
  %v2959 = vpop.f32.mrb[0].mxu0
  %2960 = vdwg.mxu0
  %v2961 = vadd.f32 %v1294, %v2643
  %v2962 = vadd.f32 %v1299, %v2648
  %v2963 = vadd.f32 %v1304, %v2653
  %v2964 = vadd.f32 %v1309, %v2658
  %v2965 = vadd.f32 %v1314, %v2663
  %v2966 = vadd.f32 %v1319, %v2668
  %v2967 = vadd.f32 %v1324, %v2673
  %v2968 = vadd.f32 %v1329, %v2678
  %v2969 = vadd.f32 %v1334, %v2683
  %v2970 = vadd.f32 %v1339, %v2688
  %v2971 = vadd.f32 %v1344, %v2693
  %v2972 = vadd.f32 %v1349, %v2698
  %v2973 = vadd.f32 %v1354, %v2703
  %v2974 = vadd.f32 %v1359, %v2708
  %v2975 = vadd.f32 %v1364, %v2713
  %v2976 = vadd.f32 %v1369, %v2718
  %v2977 = vadd.f32 %v1374, %v2723
  %v2978 = vadd.f32 %v1379, %v2728
  %v2979 = vadd.f32 %v1384, %v2733
  %v2980 = vadd.f32 %v1389, %v2738
  %v2981 = vadd.f32 %v1394, %v2743
  %v2982 = vadd.f32 %v1399, %v2748
  %v2983 = vadd.f32 %v1404, %v2753
  %v2984 = vadd.f32 %v1409, %v2758
  %v2985 = vadd.f32 %v1414, %v2763
  %v2986 = vadd.f32 %v1419, %v2768
  %v2987 = vadd.f32 %v1424, %v2773
  %v2988 = vadd.f32 %v1429, %v2778
  %v2989 = vadd.f32 %v1434, %v2783
  %v2990 = vadd.f32 %v1439, %v2788
  %v2991 = vadd.f32 %v1444, %v2793
  %v2992 = vadd.f32 %v1449, %v2798
  %v2993 = vadd.f32 %v1454, %v2803
  %v2994 = vadd.f32 %v1459, %v2808
  %v2995 = vadd.f32 %v1464, %v2813
  %v2996 = vadd.f32 %v1469, %v2818
  %v2997 = vadd.f32 %v1474, %v2823
  %v2998 = vadd.f32 %v1479, %v2828
  %v2999 = vadd.f32 %v1484, %v2833
  %v3000 = vadd.f32 %v1489, %v2838
  %v3001 = vadd.f32 %v1494, %v2843
  %v3002 = vadd.f32 %v1499, %v2848
  %v3003 = vadd.f32 %v1504, %v2853
  %v3004 = vadd.f32 %v1509, %v2858
  %v3005 = vadd.f32 %v1514, %v2863
  %v3006 = vadd.f32 %v1519, %v2868
  %v3007 = vadd.f32 %v1524, %v2873
  %v3008 = vadd.f32 %v1529, %v2878
  %v3009 = vadd.f32 %v1534, %v2883
  %v3010 = vadd.f32 %v1539, %v2888
  %v3011 = vadd.f32 %v1544, %v2893
  %v3012 = vadd.f32 %v1549, %v2898
  %v3013 = vadd.f32 %v1554, %v2903
  %v3014 = vadd.f32 %v1559, %v2908
  %v3015 = vadd.f32 %v1564, %v2913
  %v3016 = vadd.f32 %v1569, %v2918
  %v3017 = vadd.f32 %v1574, %v2923
  %v3018 = vadd.f32 %v1579, %v2928
  %v3019 = vadd.f32 %v1584, %v2933
  %v3020 = vadd.f32 %v1589, %v2938
  %v3021 = vadd.f32 %v1594, %v2943
  %v3022 = vadd.f32 %v1599, %v2948
  %v3023 = vadd.f32 %v1604, %v2953
  %v3024 = vadd.f32 %v1609, %v2958
  %3025 = vst [vmem:[%s4] sm:$0xff] %v2961
  %3026 = vst [vmem:[%s4 + $0x8] sm:$0xff] %v2962
  %3027 = vst [vmem:[%s4 + $0x10] sm:$0xff] %v2963
  %3028 = vst [vmem:[%s4 + $0x18] sm:$0xff] %v2964
  %3029 = vst [vmem:[%s4 + $0x20] sm:$0xff] %v2965
  %3030 = vst [vmem:[%s4 + $0x28] sm:$0xff] %v2966
  %3031 = vst [vmem:[%s4 + $0x30] sm:$0xff] %v2967
  %3032 = vst [vmem:[%s4 + $0x38] sm:$0xff] %v2968
  %3033 = vst [vmem:[%s4 + $0x40] sm:$0xff] %v2969
  %3034 = vst [vmem:[%s4 + $0x48] sm:$0xff] %v2970
  %3035 = vst [vmem:[%s4 + $0x50] sm:$0xff] %v2971
  %3036 = vst [vmem:[%s4 + $0x58] sm:$0xff] %v2972
  %3037 = vst [vmem:[%s4 + $0x60] sm:$0xff] %v2973
  %3038 = vst [vmem:[%s4 + $0x68] sm:$0xff] %v2974
  %3039 = vst [vmem:[%s4 + $0x70] sm:$0xff] %v2975
  %3040 = vst [vmem:[%s4 + $0x78] sm:$0xff] %v2976
  %3041 = vst [vmem:[%s4 + $0x80] sm:$0xff] %v2977
  %3042 = vst [vmem:[%s4 + $0x88] sm:$0xff] %v2978
  %3043 = vst [vmem:[%s4 + $0x90] sm:$0xff] %v2979
  %3044 = vst [vmem:[%s4 + $0x98] sm:$0xff] %v2980
  %3045 = vst [vmem:[%s4 + $0xa0] sm:$0xff] %v2981
  %3046 = vst [vmem:[%s4 + $0xa8] sm:$0xff] %v2982
  %3047 = vst [vmem:[%s4 + $0xb0] sm:$0xff] %v2983
  %3048 = vst [vmem:[%s4 + $0xb8] sm:$0xff] %v2984
  %3049 = vst [vmem:[%s4 + $0xc0] sm:$0xff] %v2985
  %3050 = vst [vmem:[%s4 + $0xc8] sm:$0xff] %v2986
  %3051 = vst [vmem:[%s4 + $0xd0] sm:$0xff] %v2987
  %3052 = vst [vmem:[%s4 + $0xd8] sm:$0xff] %v2988
  %3053 = vst [vmem:[%s4 + $0xe0] sm:$0xff] %v2989
  %3054 = vst [vmem:[%s4 + $0xe8] sm:$0xff] %v2990
  %3055 = vst [vmem:[%s4 + $0xf0] sm:$0xff] %v2991
  %3056 = vst [vmem:[%s4 + $0xf8] sm:$0xff] %v2992
  %3057 = vst [vmem:[%s4 + $0x100] sm:$0xff] %v2993
  %3058 = vst [vmem:[%s4 + $0x108] sm:$0xff] %v2994
  %3059 = vst [vmem:[%s4 + $0x110] sm:$0xff] %v2995
  %3060 = vst [vmem:[%s4 + $0x118] sm:$0xff] %v2996
  %3061 = vst [vmem:[%s4 + $0x120] sm:$0xff] %v2997
  %3062 = vst [vmem:[%s4 + $0x128] sm:$0xff] %v2998
  %3063 = vst [vmem:[%s4 + $0x130] sm:$0xff] %v2999
  %3064 = vst [vmem:[%s4 + $0x138] sm:$0xff] %v3000
  %3065 = vst [vmem:[%s4 + $0x140] sm:$0xff] %v3001
  %3066 = vst [vmem:[%s4 + $0x148] sm:$0xff] %v3002
  %3067 = vst [vmem:[%s4 + $0x150] sm:$0xff] %v3003
  %3068 = vst [vmem:[%s4 + $0x158] sm:$0xff] %v3004
  %3069 = vst [vmem:[%s4 + $0x160] sm:$0xff] %v3005
  %3070 = vst [vmem:[%s4 + $0x168] sm:$0xff] %v3006
  %3071 = vst [vmem:[%s4 + $0x170] sm:$0xff] %v3007
  %3072 = vst [vmem:[%s4 + $0x178] sm:$0xff] %v3008
  %3073 = vst [vmem:[%s4 + $0x180] sm:$0xff] %v3009
  %3074 = vst [vmem:[%s4 + $0x188] sm:$0xff] %v3010
  %3075 = vst [vmem:[%s4 + $0x190] sm:$0xff] %v3011
  %3076 = vst [vmem:[%s4 + $0x198] sm:$0xff] %v3012
  %3077 = vst [vmem:[%s4 + $0x1a0] sm:$0xff] %v3013
  %3078 = vst [vmem:[%s4 + $0x1a8] sm:$0xff] %v3014
  %3079 = vst [vmem:[%s4 + $0x1b0] sm:$0xff] %v3015
  %3080 = vst [vmem:[%s4 + $0x1b8] sm:$0xff] %v3016
  %3081 = vst [vmem:[%s4 + $0x1c0] sm:$0xff] %v3017
  %3082 = vst [vmem:[%s4 + $0x1c8] sm:$0xff] %v3018
  %3083 = vst [vmem:[%s4 + $0x1d0] sm:$0xff] %v3019
  %3084 = vst [vmem:[%s4 + $0x1d8] sm:$0xff] %v3020
  %3085 = vst [vmem:[%s4 + $0x1e0] sm:$0xff] %v3021
  %3086 = vst [vmem:[%s4 + $0x1e8] sm:$0xff] %v3022
  %3087 = vst [vmem:[%s4 + $0x1f0] sm:$0xff] %v3023
  %3088 = vst [vmem:[%s4 + $0x1f8] sm:$0xff] %v3024
  // Predicated region
  $region18: #{tabular_autoencoder_forward.1} parent=0 // pred_check
    _
  $region19: #{tabular_autoencoder_forward.1} parent=0 // pred_check_branch
    %3090 = sbr.rel (0) target = $region21
  $region20: #{tabular_autoencoder_forward.1} parent=0 // pred_region
    _
  $region21: #{tabular_autoencoder_forward.1} parent=0 // pred_fallthru
    _
  // Predicated region
  $region22: #{tabular_autoencoder_forward.1} parent=0 // pred_check
    _
  $region23: #{tabular_autoencoder_forward.1} parent=0 // pred_check_branch
    %3092 = sbr.rel (0) target = $region25
  $region24: #{tabular_autoencoder_forward.1} parent=0 // pred_region
    _
  $region25: #{tabular_autoencoder_forward.1} parent=0 // pred_fallthru
    _

</llo_original>
